<compile_context>
chip_gen: v7x
topology: tpu7x:2x2x1
jax: 0.10.0
libtpu: 0.0.40
codegen_flags: <defaults>
</compile_context>

<pallas_src>
import numpy as np
import jax
import jax.numpy as jnp
from jax.experimental import pallas as pl
from jax.experimental.pallas import tpu as pltpu


# ---------------------------------------------------------------------------
# Model hyper-parameters (consistent with the module's __init__)
# ---------------------------------------------------------------------------
INPUT_SHAPE = (4, 16, 16)                    # (C, H, W)
OBS_FEATURES = int(np.prod(INPUT_SHAPE))     # 1024
LATENT_FEATURES = 32
H1, H2 = 256, 128                            # encoder hidden sizes (decoder mirrors)


def _round_up(n: int, m: int) -> int:
    return -(-n // m) * m


# ---------------------------------------------------------------------------
# Pallas kernel: full VAE forward pass for one batch tile
# ---------------------------------------------------------------------------
def vae_forward_kernel(
    x_ref, eps_ref,
    w1_ref, b1_ref, w2_ref, b2_ref,                    # encoder trunk
    w3m_ref, b3m_ref, w3s_ref, b3s_ref,                # encoder heads (mu / log_sigma)
    w4_ref, b4_ref, w5_ref, b5_ref,                    # decoder trunk
    w6m_ref, b6m_ref, w6s_ref, b6s_ref,                # decoder heads (mu / log_sigma)
    latent_ref, px_mu_ref, px_sigma_ref,
):
    x = x_ref[...]                                     # (TB, OBS)  bf16
    eps = eps_ref[...]                                 # (TB, L)    f32

    # ---------------- encoder: Linear -> ReLU -> Linear -> ReLU -------------
    h = jnp.dot(x, w1_ref[...], preferred_element_type=jnp.float32) + b1_ref[...]
    h = jnp.maximum(h, 0.0).astype(jnp.bfloat16)
    h = jnp.dot(h, w2_ref[...], preferred_element_type=jnp.float32) + b2_ref[...]
    h = jnp.maximum(h, 0.0).astype(jnp.bfloat16)

    # encoder heads (== chunk(2, dim=-1) of the fused (.., 2L) Linear)
    qz_mu = jnp.dot(h, w3m_ref[...], preferred_element_type=jnp.float32) + b3m_ref[...]
    qz_log_sigma = jnp.dot(h, w3s_ref[...], preferred_element_type=jnp.float32) + b3s_ref[...]
    qz_sigma = jnp.exp(qz_log_sigma)

    # ---------------- reparameterized sample: z = mu + sigma * eps ----------
    z = qz_mu + qz_sigma * eps

    # ---------------- decoder: Linear -> ReLU -> Linear -> ReLU -------------
    d = jnp.dot(z.astype(jnp.bfloat16), w4_ref[...],
                preferred_element_type=jnp.float32) + b4_ref[...]
    d = jnp.maximum(d, 0.0).astype(jnp.bfloat16)
    d = jnp.dot(d, w5_ref[...], preferred_element_type=jnp.float32) + b5_ref[...]
    d = jnp.maximum(d, 0.0).astype(jnp.bfloat16)

    # decoder heads (== chunk(2, dim=-1) of the fused (.., 2*OBS) Linear)
    px_mu = jnp.dot(d, w6m_ref[...], preferred_element_type=jnp.float32) + b6m_ref[...]
    px_log_sigma = jnp.dot(d, w6s_ref[...], preferred_element_type=jnp.float32) + b6s_ref[...]

    # ---------------- lane-dense writes --------------------------------------
    # pack the four (TB, 32) latent-side results into one (TB, 128) slab
    latent_ref[...] = jnp.concatenate([qz_mu, qz_log_sigma, qz_sigma, z], axis=-1)
    px_mu_ref[...] = px_mu
    px_sigma_ref[...] = jnp.exp(px_log_sigma)          # Normal(loc=mu, scale=exp(log_sigma))


# ---------------------------------------------------------------------------
# Parameter init (shapes per the nn.Linear layers; stored as (in, out) = W.T)
# ---------------------------------------------------------------------------
def init_params(key):
    def linear(key, fan_in, fan_out):
        k1, k2 = jax.random.split(key)
        bound = 1.0 / np.sqrt(fan_in)
        w = jax.random.uniform(k1, (fan_in, fan_out), jnp.float32, -bound, bound)
        b = jax.random.uniform(k2, (1, fan_out), jnp.float32, -bound, bound)
        return w, b

    keys = jax.random.split(key, 6)
    params = {}
    params["w1"], params["b1"] = linear(keys[0], OBS_FEATURES, H1)
    params["w2"], params["b2"] = linear(keys[1], H1, H2)
    params["w3"], params["b3"] = linear(keys[2], H2, 2 * LATENT_FEATURES)
    params["w4"], params["b4"] = linear(keys[3], LATENT_FEATURES, H2)
    params["w5"], params["b5"] = linear(keys[4], H2, H1)
    params["w6"], params["b6"] = linear(keys[5], H1, 2 * OBS_FEATURES)
    return params


# ---------------------------------------------------------------------------
# Wrapper: parameter prep, batch padding, pallas_call, output unpacking
# ---------------------------------------------------------------------------
def vae_forward(x_nchw, eps, params, *, batch_tile=None):
    B = x_nchw.shape[0]
    OBS, L = OBS_FEATURES, LATENT_FEATURES

    # Batch tile: 128 rows when there is real batch to pipeline (one MXU row
    # tile on v5e, half a tile on v6e/v7x), else round the tiny batch up to
    # the bf16 sublane packing (16).
    if batch_tile is None:
        batch_tile = 128 if B >= 128 else _round_up(B, 16)
    TB = batch_tile
    B_pad = _round_up(B, TB)

    x_flat = x_nchw.reshape(B, -1)                     # == torch .reshape(B, -1)

    def pad_rows(a, dtype):
        a = a.astype(dtype)
        if B_pad == B:
            return a
        return jnp.pad(a, ((0, B_pad - B), (0, 0)))

    x_p = pad_rows(x_flat, jnp.bfloat16)               # (B_pad, OBS) bf16
    eps_p = pad_rows(eps, jnp.float32)                 # (B_pad, L)   f32

    # Split the two-head layers; bf16 weights, f32 biases.
    bf = lambda a: a.astype(jnp.bfloat16)
    w3, b3, w6, b6 = params["w3"], params["b3"], params["w6"], params["b6"]
    weights = (
        bf(params["w1"]), params["b1"],
        bf(params["w2"]), params["b2"],
        bf(w3[:, :L]), b3[:, :L], bf(w3[:, L:]), b3[:, L:],
        bf(params["w4"]), params["b4"],
        bf(params["w5"]), params["b5"],
        bf(w6[:, :OBS]), b6[:, :OBS], bf(w6[:, OBS:]), b6[:, OBS:],
    )

    def batch_spec(n):
        return pl.BlockSpec((TB, n), lambda i: (i, 0))

    def resident_spec(a):
        return pl.BlockSpec(a.shape, lambda i: (0, 0))  # VMEM-resident across grid

    in_specs = [batch_spec(OBS), batch_spec(L)] + [resident_spec(w) for w in weights]
    out_specs = (batch_spec(4 * L), batch_spec(OBS), batch_spec(OBS))
    out_shape = (
        jax.ShapeDtypeStruct((B_pad, 4 * L), jnp.float32),   # [qz_mu|qz_log_sig|qz_sig|z]
        jax.ShapeDtypeStruct((B_pad, OBS), jnp.float32),     # px mu (flat)
        jax.ShapeDtypeStruct((B_pad, OBS), jnp.float32),     # px sigma (flat)
    )

    # Advisory cost estimate so XLA schedules the custom call sensibly.
    flops = 2 * B_pad * (OBS * H1 + H1 * H2 + H2 * 2 * L + L * H2 + H2 * H1 + H1 * 2 * OBS)
    transcendentals = B_pad * (L + OBS)
    weight_bytes = sum(int(w.size) * w.dtype.itemsize for w in weights)
    bytes_accessed = int(
        weight_bytes
        + x_p.size * x_p.dtype.itemsize + eps_p.size * eps_p.dtype.itemsize
        + B_pad * (4 * L + 2 * OBS) * 4
    )

    latent, px_mu_flat, px_sigma_flat = pl.pallas_call(
        vae_forward_kernel,
        out_shape=out_shape,
        grid=(B_pad // TB,),
        in_specs=in_specs,
        out_specs=out_specs,
        compiler_params=pltpu.CompilerParams(
            dimension_semantics=("parallel",),        # megacore sharding on v7x
        ),
        cost_estimate=pl.CostEstimate(
            flops=int(flops),
            transcendentals=int(transcendentals),
            bytes_accessed=bytes_accessed,
        ),
    )(x_p, eps_p, *weights)

    # Unpack lane-dense latent slab, strip batch padding.
    latent = latent[:B]
    qz_mu = latent[:, :L]
    qz_sigma = latent[:, 2 * L:3 * L]
    z = latent[:, 3 * L:]

    px_mu = px_mu_flat[:B].reshape(B, *INPUT_SHAPE)
    px_sigma = px_sigma_flat[:B].reshape(B, *INPUT_SHAPE)

    # prior(): zeros buffer expanded to batch -> mu = 0, sigma = exp(0) = 1.
    pz_mu = jnp.zeros((B, L), jnp.float32)
    pz_sigma = jnp.ones((B, L), jnp.float32)

    # TODO(synk): torch.distributions Distribution objects have no Pallas/JAX
    # equivalent here; we return their (mu, sigma) parameters instead.
    return {
        "px": {"mu": px_mu, "sigma": px_sigma},
        "pz": {"mu": pz_mu, "sigma": pz_sigma},
        "qz": {"mu": qz_mu, "sigma": qz_sigma},
        "z": z,
    }


# ---------------------------------------------------------------------------
# Pure-JAX reference (same bf16-operand / f32-accumulate numerics)
# ---------------------------------------------------------------------------
def vae_forward_ref(x_nchw, eps, params):
    B = x_nchw.shape[0]
    bf = lambda a: a.astype(jnp.bfloat16)
    dot = lambda a, b: jnp.dot(a, b, preferred_element_type=jnp.float32)

    x = bf(x_nchw.reshape(B, -1))
    h = jnp.maximum(dot(x, bf(params["w1"])) + params["b1"], 0.0)
    h = jnp.maximum(dot(bf(h), bf(params["w2"])) + params["b2"], 0.0)
    h_x = dot(bf(h), bf(params["w3"])) + params["b3"]
    mu, log_sigma = jnp.split(h_x, 2, axis=-1)
    sigma = jnp.exp(log_sigma)
    z = mu + sigma * eps
    d = jnp.maximum(dot(bf(z), bf(params["w4"])) + params["b4"], 0.0)
    d = jnp.maximum(dot(bf(d), bf(params["w5"])) + params["b5"], 0.0)
    h_z = dot(bf(d), bf(params["w6"])) + params["b6"]
    px_mu, px_log_sigma = jnp.split(h_z, 2, axis=-1)
    return (mu, sigma, z,
            px_mu.reshape(B, *INPUT_SHAPE),
            jnp.exp(px_log_sigma).reshape(B, *INPUT_SHAPE))


if __name__ == "__main__":
    key = jax.random.PRNGKey(0)
    k_x, k_eps, k_params = jax.random.split(key, 3)

    B = 2
    x = jax.random.normal(k_x, (B, *INPUT_SHAPE), jnp.float32)     # NCHW input
    eps = jax.random.normal(k_eps, (B, LATENT_FEATURES), jnp.float32)
    params = init_params(k_params)

    out = vae_forward(x, eps, params)
    out = jax.block_until_ready(out)

    # sanity check against the pure-JAX reference (same bf16 matmul numerics)
    r_mu, r_sigma, r_z, r_px_mu, r_px_sigma = vae_forward_ref(x, eps, params)
    np.testing.assert_allclose(out["qz"]["mu"], r_mu, rtol=5e-3, atol=5e-3)
    np.testing.assert_allclose(out["qz"]["sigma"], r_sigma, rtol=5e-3, atol=5e-3)
    np.testing.assert_allclose(out["z"], r_z, rtol=5e-3, atol=5e-3)
    np.testing.assert_allclose(out["px"]["mu"], r_px_mu, rtol=5e-3, atol=5e-3)
    np.testing.assert_allclose(out["px"]["sigma"], r_px_sigma, rtol=5e-3, atol=5e-3)

    print("KERNEL_OK")
</pallas_src>

<mosaic_0001>
module attributes {stable_mosaic.version = 11 : i64} {
  func.func @vae_forward_kernel(%arg0: i32, %arg1: memref<16x1024xbf16, #tpu.memory_space<vmem>>, %arg2: memref<16x32xf32, #tpu.memory_space<vmem>>, %arg3: memref<1024x256xbf16, #tpu.memory_space<vmem>>, %arg4: memref<1x256xf32, #tpu.memory_space<vmem>>, %arg5: memref<256x128xbf16, #tpu.memory_space<vmem>>, %arg6: memref<1x128xf32, #tpu.memory_space<vmem>>, %arg7: memref<128x32xbf16, #tpu.memory_space<vmem>>, %arg8: memref<1x32xf32, #tpu.memory_space<vmem>>, %arg9: memref<128x32xbf16, #tpu.memory_space<vmem>>, %arg10: memref<1x32xf32, #tpu.memory_space<vmem>>, %arg11: memref<32x128xbf16, #tpu.memory_space<vmem>>, %arg12: memref<1x128xf32, #tpu.memory_space<vmem>>, %arg13: memref<128x256xbf16, #tpu.memory_space<vmem>>, %arg14: memref<1x256xf32, #tpu.memory_space<vmem>>, %arg15: memref<256x1024xbf16, #tpu.memory_space<vmem>>, %arg16: memref<1x1024xf32, #tpu.memory_space<vmem>>, %arg17: memref<256x1024xbf16, #tpu.memory_space<vmem>>, %arg18: memref<1x1024xf32, #tpu.memory_space<vmem>>, %arg19: memref<16x128xf32, #tpu.memory_space<vmem>>, %arg20: memref<16x1024xf32, #tpu.memory_space<vmem>>, %arg21: memref<16x1024xf32, #tpu.memory_space<vmem>>) attributes {dimension_semantics = [#tpu.dimension_semantics<parallel>], iteration_bounds = array<i64: 1>, scalar_prefetch = 0 : i64, scratch_operands = 0 : i64, tpu.core_type = #tpu.core_type<tc>, window_params = [{transform_indices = @transform_0, window_bounds = array<i64: 16, 1024>}, {transform_indices = @transform_1, window_bounds = array<i64: 16, 32>}, {pipeline_mode = #tpu.pipeline_mode<synchronous>, transform_indices = @transform_2, window_bounds = array<i64: 1024, 256>}, {pipeline_mode = #tpu.pipeline_mode<synchronous>, transform_indices = @transform_3, window_bounds = array<i64: 1, 256>}, {pipeline_mode = #tpu.pipeline_mode<synchronous>, transform_indices = @transform_4, window_bounds = array<i64: 256, 128>}, {pipeline_mode = #tpu.pipeline_mode<synchronous>, transform_indices = @transform_5, window_bounds = array<i64: 1, 128>}, {pipeline_mode = #tpu.pipeline_mode<synchronous>, transform_indices = @transform_6, window_bounds = array<i64: 128, 32>}, {pipeline_mode = #tpu.pipeline_mode<synchronous>, transform_indices = @transform_7, window_bounds = array<i64: 1, 32>}, {pipeline_mode = #tpu.pipeline_mode<synchronous>, transform_indices = @transform_8, window_bounds = array<i64: 128, 32>}, {pipeline_mode = #tpu.pipeline_mode<synchronous>, transform_indices = @transform_9, window_bounds = array<i64: 1, 32>}, {pipeline_mode = #tpu.pipeline_mode<synchronous>, transform_indices = @transform_10, window_bounds = array<i64: 32, 128>}, {pipeline_mode = #tpu.pipeline_mode<synchronous>, transform_indices = @transform_11, window_bounds = array<i64: 1, 128>}, {pipeline_mode = #tpu.pipeline_mode<synchronous>, transform_indices = @transform_12, window_bounds = array<i64: 128, 256>}, {pipeline_mode = #tpu.pipeline_mode<synchronous>, transform_indices = @transform_13, window_bounds = array<i64: 1, 256>}, {pipeline_mode = #tpu.pipeline_mode<synchronous>, transform_indices = @transform_14, window_bounds = array<i64: 256, 1024>}, {pipeline_mode = #tpu.pipeline_mode<synchronous>, transform_indices = @transform_15, window_bounds = array<i64: 1, 1024>}, {pipeline_mode = #tpu.pipeline_mode<synchronous>, transform_indices = @transform_16, window_bounds = array<i64: 256, 1024>}, {pipeline_mode = #tpu.pipeline_mode<synchronous>, transform_indices = @transform_17, window_bounds = array<i64: 1, 1024>}, {transform_indices = @transform_18, window_bounds = array<i64: 16, 128>}, {transform_indices = @transform_19, window_bounds = array<i64: 16, 1024>}, {transform_indices = @transform_20, window_bounds = array<i64: 16, 1024>}]} {
    %c0 = arith.constant 0 : index
    %c0_0 = arith.constant 0 : index
    %0 = vector.load %arg1[%c0, %c0_0] : memref<16x1024xbf16, #tpu.memory_space<vmem>>, vector<16x1024xbf16>
    %c0_1 = arith.constant 0 : index
    %c0_2 = arith.constant 0 : index
    %1 = vector.load %arg2[%c0_1, %c0_2] : memref<16x32xf32, #tpu.memory_space<vmem>>, vector<16x32xf32>
    %c0_3 = arith.constant 0 : index
    %c0_4 = arith.constant 0 : index
    %2 = vector.load %arg3[%c0_3, %c0_4] : memref<1024x256xbf16, #tpu.memory_space<vmem>>, vector<1024x256xbf16>
    %cst = arith.constant dense<0.000000e+00> : vector<16x256xf32>
    %3 = tpu.matmul %0, %2, %cst {dimension_numbers = #tpu.dot_dimension_numbers<[1], [0], [0], [1], [0, 0, 1, 1], [], []>} : vector<16x1024xbf16>, vector<1024x256xbf16>, vector<16x256xf32> -> vector<16x256xf32>
    %c0_5 = arith.constant 0 : index
    %c0_6 = arith.constant 0 : index
    %4 = vector.load %arg4[%c0_5, %c0_6] : memref<1x256xf32, #tpu.memory_space<vmem>>, vector<1x256xf32>
    %5 = vector.broadcast %4 : vector<1x256xf32> to vector<16x256xf32>
    %6 = arith.addf %3, %5 : vector<16x256xf32>
    %cst_7 = arith.constant 0.000000e+00 : f32
    %7 = vector.broadcast %cst_7 : f32 to vector<16x256xf32>
    %8 = arith.maximumf %6, %7 : vector<16x256xf32>
    %9 = arith.truncf %8 : vector<16x256xf32> to vector<16x256xbf16>
    %c0_8 = arith.constant 0 : index
    %c0_9 = arith.constant 0 : index
    %10 = vector.load %arg5[%c0_8, %c0_9] : memref<256x128xbf16, #tpu.memory_space<vmem>>, vector<256x128xbf16>
    %cst_10 = arith.constant dense<0.000000e+00> : vector<16x128xf32>
    %11 = tpu.matmul %9, %10, %cst_10 {dimension_numbers = #tpu.dot_dimension_numbers<[1], [0], [0], [1], [0, 0, 1, 1], [], []>} : vector<16x256xbf16>, vector<256x128xbf16>, vector<16x128xf32> -> vector<16x128xf32>
    %c0_11 = arith.constant 0 : index
    %c0_12 = arith.constant 0 : index
    %12 = vector.load %arg6[%c0_11, %c0_12] : memref<1x128xf32, #tpu.memory_space<vmem>>, vector<1x128xf32>
    %13 = vector.broadcast %12 : vector<1x128xf32> to vector<16x128xf32>
    %14 = arith.addf %11, %13 : vector<16x128xf32>
    %cst_13 = arith.constant 0.000000e+00 : f32
    %15 = vector.broadcast %cst_13 : f32 to vector<16x128xf32>
    %16 = arith.maximumf %14, %15 : vector<16x128xf32>
    %17 = arith.truncf %16 : vector<16x128xf32> to vector<16x128xbf16>
    %c0_14 = arith.constant 0 : index
    %c0_15 = arith.constant 0 : index
    %18 = vector.load %arg7[%c0_14, %c0_15] : memref<128x32xbf16, #tpu.memory_space<vmem>>, vector<128x32xbf16>
    %cst_16 = arith.constant dense<0.000000e+00> : vector<16x32xf32>
    %19 = tpu.matmul %17, %18, %cst_16 {dimension_numbers = #tpu.dot_dimension_numbers<[1], [0], [0], [1], [0, 0, 1, 1], [], []>} : vector<16x128xbf16>, vector<128x32xbf16>, vector<16x32xf32> -> vector<16x32xf32>
    %c0_17 = arith.constant 0 : index
    %c0_18 = arith.constant 0 : index
    %20 = vector.load %arg8[%c0_17, %c0_18] : memref<1x32xf32, #tpu.memory_space<vmem>>, vector<1x32xf32>
    %21 = vector.broadcast %20 : vector<1x32xf32> to vector<16x32xf32>
    %22 = arith.addf %19, %21 : vector<16x32xf32>
    %c0_19 = arith.constant 0 : index
    %c0_20 = arith.constant 0 : index
    %23 = vector.load %arg9[%c0_19, %c0_20] : memref<128x32xbf16, #tpu.memory_space<vmem>>, vector<128x32xbf16>
    %cst_21 = arith.constant dense<0.000000e+00> : vector<16x32xf32>
    %24 = tpu.matmul %17, %23, %cst_21 {dimension_numbers = #tpu.dot_dimension_numbers<[1], [0], [0], [1], [0, 0, 1, 1], [], []>} : vector<16x128xbf16>, vector<128x32xbf16>, vector<16x32xf32> -> vector<16x32xf32>
    %c0_22 = arith.constant 0 : index
    %c0_23 = arith.constant 0 : index
    %25 = vector.load %arg10[%c0_22, %c0_23] : memref<1x32xf32, #tpu.memory_space<vmem>>, vector<1x32xf32>
    %26 = vector.broadcast %25 : vector<1x32xf32> to vector<16x32xf32>
    %27 = arith.addf %24, %26 : vector<16x32xf32>
    %28 = math.exp %27 : vector<16x32xf32>
    %29 = arith.mulf %28, %1 : vector<16x32xf32>
    %30 = arith.addf %22, %29 : vector<16x32xf32>
    %31 = arith.truncf %30 : vector<16x32xf32> to vector<16x32xbf16>
    %c0_24 = arith.constant 0 : index
    %c0_25 = arith.constant 0 : index
    %32 = vector.load %arg11[%c0_24, %c0_25] : memref<32x128xbf16, #tpu.memory_space<vmem>>, vector<32x128xbf16>
    %cst_26 = arith.constant dense<0.000000e+00> : vector<16x128xf32>
    %33 = tpu.matmul %31, %32, %cst_26 {dimension_numbers = #tpu.dot_dimension_numbers<[1], [0], [0], [1], [0, 0, 1, 1], [], []>} : vector<16x32xbf16>, vector<32x128xbf16>, vector<16x128xf32> -> vector<16x128xf32>
    %c0_27 = arith.constant 0 : index
    %c0_28 = arith.constant 0 : index
    %34 = vector.load %arg12[%c0_27, %c0_28] : memref<1x128xf32, #tpu.memory_space<vmem>>, vector<1x128xf32>
    %35 = vector.broadcast %34 : vector<1x128xf32> to vector<16x128xf32>
    %36 = arith.addf %33, %35 : vector<16x128xf32>
    %cst_29 = arith.constant 0.000000e+00 : f32
    %37 = vector.broadcast %cst_29 : f32 to vector<16x128xf32>
    %38 = arith.maximumf %36, %37 : vector<16x128xf32>
    %39 = arith.truncf %38 : vector<16x128xf32> to vector<16x128xbf16>
    %c0_30 = arith.constant 0 : index
    %c0_31 = arith.constant 0 : index
    %40 = vector.load %arg13[%c0_30, %c0_31] : memref<128x256xbf16, #tpu.memory_space<vmem>>, vector<128x256xbf16>
    %cst_32 = arith.constant dense<0.000000e+00> : vector<16x256xf32>
    %41 = tpu.matmul %39, %40, %cst_32 {dimension_numbers = #tpu.dot_dimension_numbers<[1], [0], [0], [1], [0, 0, 1, 1], [], []>} : vector<16x128xbf16>, vector<128x256xbf16>, vector<16x256xf32> -> vector<16x256xf32>
    %c0_33 = arith.constant 0 : index
    %c0_34 = arith.constant 0 : index
    %42 = vector.load %arg14[%c0_33, %c0_34] : memref<1x256xf32, #tpu.memory_space<vmem>>, vector<1x256xf32>
    %43 = vector.broadcast %42 : vector<1x256xf32> to vector<16x256xf32>
    %44 = arith.addf %41, %43 : vector<16x256xf32>
    %cst_35 = arith.constant 0.000000e+00 : f32
    %45 = vector.broadcast %cst_35 : f32 to vector<16x256xf32>
    %46 = arith.maximumf %44, %45 : vector<16x256xf32>
    %47 = arith.truncf %46 : vector<16x256xf32> to vector<16x256xbf16>
    %c0_36 = arith.constant 0 : index
    %c0_37 = arith.constant 0 : index
    %48 = vector.load %arg15[%c0_36, %c0_37] : memref<256x1024xbf16, #tpu.memory_space<vmem>>, vector<256x1024xbf16>
    %cst_38 = arith.constant dense<0.000000e+00> : vector<16x1024xf32>
    %49 = tpu.matmul %47, %48, %cst_38 {dimension_numbers = #tpu.dot_dimension_numbers<[1], [0], [0], [1], [0, 0, 1, 1], [], []>} : vector<16x256xbf16>, vector<256x1024xbf16>, vector<16x1024xf32> -> vector<16x1024xf32>
    %c0_39 = arith.constant 0 : index
    %c0_40 = arith.constant 0 : index
    %50 = vector.load %arg16[%c0_39, %c0_40] : memref<1x1024xf32, #tpu.memory_space<vmem>>, vector<1x1024xf32>
    %51 = vector.broadcast %50 : vector<1x1024xf32> to vector<16x1024xf32>
    %52 = arith.addf %49, %51 : vector<16x1024xf32>
    %c0_41 = arith.constant 0 : index
    %c0_42 = arith.constant 0 : index
    %53 = vector.load %arg17[%c0_41, %c0_42] : memref<256x1024xbf16, #tpu.memory_space<vmem>>, vector<256x1024xbf16>
    %cst_43 = arith.constant dense<0.000000e+00> : vector<16x1024xf32>
    %54 = tpu.matmul %47, %53, %cst_43 {dimension_numbers = #tpu.dot_dimension_numbers<[1], [0], [0], [1], [0, 0, 1, 1], [], []>} : vector<16x256xbf16>, vector<256x1024xbf16>, vector<16x1024xf32> -> vector<16x1024xf32>
    %c0_44 = arith.constant 0 : index
    %c0_45 = arith.constant 0 : index
    %55 = vector.load %arg18[%c0_44, %c0_45] : memref<1x1024xf32, #tpu.memory_space<vmem>>, vector<1x1024xf32>
    %56 = vector.broadcast %55 : vector<1x1024xf32> to vector<16x1024xf32>
    %57 = arith.addf %54, %56 : vector<16x1024xf32>
    %58 = tpu.concatenate %22, %27, %28, %30 in 1 : vector<16x32xf32>, vector<16x32xf32>, vector<16x32xf32>, vector<16x32xf32> -> vector<16x128xf32>
    %c0_46 = arith.constant 0 : index
    %c0_47 = arith.constant 0 : index
    %59 = vector.load %arg19[%c0_46, %c0_47] : memref<16x128xf32, #tpu.memory_space<vmem>>, vector<16x128xf32>
    tpu.vector_store %arg19[%c0_46, %c0_47], %58 {strides = array<i32>} : memref<16x128xf32, #tpu.memory_space<vmem>>, vector<16x128xf32>,
    %c0_48 = arith.constant 0 : index
    %c0_49 = arith.constant 0 : index
    %60 = vector.load %arg20[%c0_48, %c0_49] : memref<16x1024xf32, #tpu.memory_space<vmem>>, vector<16x1024xf32>
    tpu.vector_store %arg20[%c0_48, %c0_49], %52 {strides = array<i32>} : memref<16x1024xf32, #tpu.memory_space<vmem>>, vector<16x1024xf32>,
    %61 = math.exp %57 : vector<16x1024xf32>
    %c0_50 = arith.constant 0 : index
    %c0_51 = arith.constant 0 : index
    %62 = vector.load %arg21[%c0_50, %c0_51] : memref<16x1024xf32, #tpu.memory_space<vmem>>, vector<16x1024xf32>
    tpu.vector_store %arg21[%c0_50, %c0_51], %61 {strides = array<i32>} : memref<16x1024xf32, #tpu.memory_space<vmem>>, vector<16x1024xf32>,
    return
  }
  func.func @transform_0(%arg0: i32) -> (i32, i32) {
    %c0_i32 = arith.constant 0 : i32
    %c0_i32_0 = arith.constant 0 : i32
    return %arg0, %c0_i32 : i32, i32
  }
  func.func @transform_1(%arg0: i32) -> (i32, i32) {
    %c0_i32 = arith.constant 0 : i32
    %c0_i32_0 = arith.constant 0 : i32
    return %arg0, %c0_i32 : i32, i32
  }
  func.func @transform_2(%arg0: i32) -> (i32, i32) {
    %c0_i32 = arith.constant 0 : i32
    %c0_i32_0 = arith.constant 0 : i32
    %c0_i32_1 = arith.constant 0 : i32
    return %c0_i32, %c0_i32_0 : i32, i32
  }
  func.func @transform_3(%arg0: i32) -> (i32, i32) {
    %c0_i32 = arith.constant 0 : i32
    %c0_i32_0 = arith.constant 0 : i32
    %c0_i32_1 = arith.constant 0 : i32
    return %c0_i32, %c0_i32_0 : i32, i32
  }
  func.func @transform_4(%arg0: i32) -> (i32, i32) {
    %c0_i32 = arith.constant 0 : i32
    %c0_i32_0 = arith.constant 0 : i32
    %c0_i32_1 = arith.constant 0 : i32
    return %c0_i32, %c0_i32_0 : i32, i32
  }
  func.func @transform_5(%arg0: i32) -> (i32, i32) {
    %c0_i32 = arith.constant 0 : i32
    %c0_i32_0 = arith.constant 0 : i32
    %c0_i32_1 = arith.constant 0 : i32
    return %c0_i32, %c0_i32_0 : i32, i32
  }
  func.func @transform_6(%arg0: i32) -> (i32, i32) {
    %c0_i32 = arith.constant 0 : i32
    %c0_i32_0 = arith.constant 0 : i32
    %c0_i32_1 = arith.constant 0 : i32
    return %c0_i32, %c0_i32_0 : i32, i32
  }
  func.func @transform_7(%arg0: i32) -> (i32, i32) {
    %c0_i32 = arith.constant 0 : i32
    %c0_i32_0 = arith.constant 0 : i32
    %c0_i32_1 = arith.constant 0 : i32
    return %c0_i32, %c0_i32_0 : i32, i32
  }
  func.func @transform_8(%arg0: i32) -> (i32, i32) {
    %c0_i32 = arith.constant 0 : i32
    %c0_i32_0 = arith.constant 0 : i32
    %c0_i32_1 = arith.constant 0 : i32
    return %c0_i32, %c0_i32_0 : i32, i32
  }
  func.func @transform_9(%arg0: i32) -> (i32, i32) {
    %c0_i32 = arith.constant 0 : i32
    %c0_i32_0 = arith.constant 0 : i32
    %c0_i32_1 = arith.constant 0 : i32
    return %c0_i32, %c0_i32_0 : i32, i32
  }
  func.func @transform_10(%arg0: i32) -> (i32, i32) {
    %c0_i32 = arith.constant 0 : i32
    %c0_i32_0 = arith.constant 0 : i32
    %c0_i32_1 = arith.constant 0 : i32
    return %c0_i32, %c0_i32_0 : i32, i32
  }
  func.func @transform_11(%arg0: i32) -> (i32, i32) {
    %c0_i32 = arith.constant 0 : i32
    %c0_i32_0 = arith.constant 0 : i32
    %c0_i32_1 = arith.constant 0 : i32
    return %c0_i32, %c0_i32_0 : i32, i32
  }
  func.func @transform_12(%arg0: i32) -> (i32, i32) {
    %c0_i32 = arith.constant 0 : i32
    %c0_i32_0 = arith.constant 0 : i32
    %c0_i32_1 = arith.constant 0 : i32
    return %c0_i32, %c0_i32_0 : i32, i32
  }
  func.func @transform_13(%arg0: i32) -> (i32, i32) {
    %c0_i32 = arith.constant 0 : i32
    %c0_i32_0 = arith.constant 0 : i32
    %c0_i32_1 = arith.constant 0 : i32
    return %c0_i32, %c0_i32_0 : i32, i32
  }
  func.func @transform_14(%arg0: i32) -> (i32, i32) {
    %c0_i32 = arith.constant 0 : i32
    %c0_i32_0 = arith.constant 0 : i32
    %c0_i32_1 = arith.constant 0 : i32
    return %c0_i32, %c0_i32_0 : i32, i32
  }
  func.func @transform_15(%arg0: i32) -> (i32, i32) {
    %c0_i32 = arith.constant 0 : i32
    %c0_i32_0 = arith.constant 0 : i32
    %c0_i32_1 = arith.constant 0 : i32
    return %c0_i32, %c0_i32_0 : i32, i32
  }
  func.func @transform_16(%arg0: i32) -> (i32, i32) {
    %c0_i32 = arith.constant 0 : i32
    %c0_i32_0 = arith.constant 0 : i32
    %c0_i32_1 = arith.constant 0 : i32
    return %c0_i32, %c0_i32_0 : i32, i32
  }
  func.func @transform_17(%arg0: i32) -> (i32, i32) {
    %c0_i32 = arith.constant 0 : i32
    %c0_i32_0 = arith.constant 0 : i32
    %c0_i32_1 = arith.constant 0 : i32
    return %c0_i32, %c0_i32_0 : i32, i32
  }
  func.func @transform_18(%arg0: i32) -> (i32, i32) {
    %c0_i32 = arith.constant 0 : i32
    %c0_i32_0 = arith.constant 0 : i32
    return %arg0, %c0_i32 : i32, i32
  }
  func.func @transform_19(%arg0: i32) -> (i32, i32) {
    %c0_i32 = arith.constant 0 : i32
    %c0_i32_0 = arith.constant 0 : i32
    return %arg0, %c0_i32 : i32, i32
  }
  func.func @transform_20(%arg0: i32) -> (i32, i32) {
    %c0_i32 = arith.constant 0 : i32
    %c0_i32_0 = arith.constant 0 : i32
    return %arg0, %c0_i32 : i32, i32
  }
}

</mosaic_0001>

<llo_original>
// kernel: tpu_custom_call.1
$region0: #{tpu_custom_call.1}
  #allocation0 [shape = 'u32[]', space=smem, size = 0x4, offset = 0x4, fixed_abs, tag = 'smem constant byte address 0x4 - core index']
  #allocation1 [shape = 'u32[144,128]{1,0:T(1,128)}', space=vmem, size = 0x12000, scoped, tag = 'internal scratch']
  %s0 = inlined_call_operand.hbm [shape: bf16[16,1024], index: 0, kind: input, shape index: {}]
  %s1 = inlined_call_operand.vmem [shape: f32[16,32], index: 1, kind: input, shape index: {}]
  %s2 = inlined_call_operand.hbm [shape: bf16[1024,256], index: 2, kind: input, shape index: {}]
  %s3 = inlined_call_operand.vmem [shape: f32[1,256], index: 3, kind: input, shape index: {}]
  %s4 = inlined_call_operand.vmem [shape: bf16[256,128], index: 4, kind: input, shape index: {}]
  %s5 = inlined_call_operand.hbm [shape: f32[1,128], index: 5, kind: input, shape index: {}]
  %s6 = inlined_call_operand.vmem [shape: bf16[128,32], index: 6, kind: input, shape index: {}]
  %s7 = inlined_call_operand.hbm [shape: f32[1,32], index: 7, kind: input, shape index: {}]
  %s8 = inlined_call_operand.vmem [shape: bf16[128,32], index: 8, kind: input, shape index: {}]
  %s9 = inlined_call_operand.hbm [shape: f32[1,32], index: 9, kind: input, shape index: {}]
  %s10 = inlined_call_operand.vmem [shape: bf16[32,128], index: 10, kind: input, shape index: {}]
  %s11 = inlined_call_operand.vmem [shape: f32[1,128], index: 11, kind: input, shape index: {}]
  %s12 = inlined_call_operand.hbm [shape: bf16[128,256], index: 12, kind: input, shape index: {}]
  %s13 = inlined_call_operand.vmem [shape: f32[1,256], index: 13, kind: input, shape index: {}]
  %s14 = inlined_call_operand.hbm [shape: bf16[256,1024], index: 14, kind: input, shape index: {}]
  %s15 = inlined_call_operand.vmem [shape: f32[1,1024], index: 15, kind: input, shape index: {}]
  %s16 = inlined_call_operand.hbm [shape: bf16[256,1024], index: 16, kind: input, shape index: {}]
  %s17 = inlined_call_operand.vmem [shape: f32[1,1024], index: 17, kind: input, shape index: {}]
  %s18 = inlined_call_operand.hbm [shape: f32[16,128], index: 18, kind: output, shape index: {0}]
  %s19 = inlined_call_operand.hbm [shape: f32[16,1024], index: 19, kind: output, shape index: {1}]
  %s20 = inlined_call_operand.hbm [shape: f32[16,1024], index: 20, kind: output, shape index: {2}]
  %21 = xla_tuple %s18, %s19, %s20
  %s22 = sld [smem:[#allocation0]]
  $region130: #{tpu_custom_call.1} parent=0
    _
  %s24 = ssub.s32 1, %s22
  %s25 = scalar_select 0, %s24, %s22
  $region1: #{tpu_custom_call.1} parent=0
    #allocation2 [shape = 'u8[32768]{0}', space=vmem, size = 0x8000, scoped, tag = 'input window, operand 0, single buffered']
    #allocation3 [shape = 's32[1]{0}', space=sflag, size = 0x4, scoped, tag = 'scoped memory for tpu_custom_call.1']
    #allocation4 [shape = 's32[1]{0}', space=sflag, size = 0x4, scoped, tag = 'scoped memory for tpu_custom_call.1']
    #allocation5 [shape = 'u8[524288]{0}', space=vmem, size = 0x80000, scoped, tag = 'input window, operand 2, single buffered']
    #allocation6 [shape = 's32[1]{0}', space=sflag, size = 0x4, scoped, tag = 'scoped memory for tpu_custom_call.1']
    #allocation7 [shape = 'u8[512]{0}', space=vmem, size = 0x400, scoped, tag = 'input window, operand 5, single buffered']
    #allocation8 [shape = 'u8[512]{0}', space=vmem, size = 0x400, scoped, tag = 'input window, operand 7, single buffered']
    #allocation9 [shape = 's32[1]{0}', space=sflag, size = 0x4, scoped, tag = 'scoped memory for tpu_custom_call.1']
    #allocation10 [shape = 'u8[512]{0}', space=vmem, size = 0x400, scoped, tag = 'input window, operand 9, single buffered']
    #allocation11 [shape = 'u8[65536]{0}', space=vmem, size = 0x10000, scoped, tag = 'input window, operand 12, single buffered']
    #allocation12 [shape = 's32[1]{0}', space=sflag, size = 0x4, scoped, tag = 'scoped memory for tpu_custom_call.1']
    #allocation13 [shape = 'u8[524288]{0}', space=vmem, size = 0x80000, scoped, tag = 'input window, operand 14, single buffered']
    #allocation14 [shape = 'u8[524288]{0}', space=vmem, size = 0x80000, scoped, tag = 'input window, operand 16, single buffered']
    #allocation15 [shape = 's32[1]{0}', space=sflag, size = 0x4, scoped, tag = 'scoped memory for tpu_custom_call.1']
    #allocation16 [shape = 'u8[8192]{0}', space=vmem, size = 0x2000, scoped, tag = 'output window, operand 0, single buffered']
    #allocation17 [shape = 'u8[65536]{0}', space=vmem, size = 0x10000, scoped, tag = 'output window, operand 1, single buffered']
    #allocation18 [shape = 's32[1]{0}', space=sflag, size = 0x4, scoped, tag = 'scoped memory for tpu_custom_call.1']
    #allocation19 [shape = 'u8[65536]{0}', space=vmem, size = 0x10000, scoped, tag = 'output window, operand 2, single buffered']
    %26 = vsyncpa [#allocation3], 0
    %27 = vsyncpa [#allocation6], 0
    %28 = vsyncpa [#allocation9], 0
    %29 = vsyncpa [#allocation12], 0
    %30 = vsyncpa [#allocation15], 0
    %31 = vsyncpa [#allocation4], 0
    %32 = vsyncpa [#allocation18], 0
    // Predicated region
    $region2: #{tpu_custom_call.1} parent=1 // pred_check
      _
    $region3: #{tpu_custom_call.1} parent=1 // pred_check_branch
      %34 = sbr.rel (0) target = $region5
    $region4: #{tpu_custom_call.1} parent=1 // pred_region
      %s36 = ssub.s32 1024, 1024
      %37 = vsyncadd [#allocation3], %s36
      %s38 = sshll.u32 [#allocation2], 4
      %s39 = int_to_ptr.vmem [resolvable:$true] %s38
      %44 = dma.hbm_to_vmem [thread:$0]  %s0, 1024, %s39, [#allocation3], 512, 512, 32
    $region5: #{tpu_custom_call.1} parent=1 // pred_fallthru
      _
    // Predicated region
    $region6: #{tpu_custom_call.1} parent=1 // pred_check
      _
    $region7: #{tpu_custom_call.1} parent=1 // pred_check_branch
      %46 = sbr.rel (0) target = $region9
    $region8: #{tpu_custom_call.1} parent=1 // pred_region
      _
    $region9: #{tpu_custom_call.1} parent=1 // pred_fallthru
      _
    // Predicated region
    $region10: #{tpu_custom_call.1} parent=1 // pred_check
      _
    $region11: #{tpu_custom_call.1} parent=1 // pred_check_branch
      %48 = sbr.rel (0) target = $region13
    $region12: #{tpu_custom_call.1} parent=1 // pred_region
      %s50 = ssub.s32 16384, 16384
      %51 = vsyncadd [#allocation6], %s50
      %s52 = sshll.u32 [#allocation5], 4
      %s53 = int_to_ptr.vmem [resolvable:$true] %s52
      %58 = dma.hbm_to_vmem [thread:$0]  %s2, 16384, %s53, [#allocation6], 128, 128, 8
    $region13: #{tpu_custom_call.1} parent=1 // pred_fallthru
      _
    // Predicated region
    $region14: #{tpu_custom_call.1} parent=1 // pred_check
      _
    $region15: #{tpu_custom_call.1} parent=1 // pred_check_branch
      %60 = sbr.rel (0) target = $region17
    $region16: #{tpu_custom_call.1} parent=1 // pred_region
      _
    $region17: #{tpu_custom_call.1} parent=1 // pred_fallthru
      _
    // Predicated region
    $region18: #{tpu_custom_call.1} parent=1 // pred_check
      _
    $region19: #{tpu_custom_call.1} parent=1 // pred_check_branch
      %62 = sbr.rel (0) target = $region21
    $region20: #{tpu_custom_call.1} parent=1 // pred_region
      _
    $region21: #{tpu_custom_call.1} parent=1 // pred_fallthru
      _
    // Predicated region
    $region22: #{tpu_custom_call.1} parent=1 // pred_check
      _
    $region23: #{tpu_custom_call.1} parent=1 // pred_check_branch
      %64 = sbr.rel (0) target = $region25
    $region24: #{tpu_custom_call.1} parent=1 // pred_region
      %s66 = ssub.s32 16, 16
      %67 = vsyncadd [#allocation6], %s66
      %s69 = sshll.u32 [#allocation7], 4
      %s70 = int_to_ptr.vmem [resolvable:$true] %s69
      %72 = dma.hbm_to_vmem [thread:$0]  %s5, 16, %s70, [#allocation6]
    $region25: #{tpu_custom_call.1} parent=1 // pred_fallthru
      _
    // Predicated region
    $region26: #{tpu_custom_call.1} parent=1 // pred_check
      _
    $region27: #{tpu_custom_call.1} parent=1 // pred_check_branch
      %74 = sbr.rel (0) target = $region29
    $region28: #{tpu_custom_call.1} parent=1 // pred_region
      _
    $region29: #{tpu_custom_call.1} parent=1 // pred_fallthru
      _
    // Predicated region
    $region30: #{tpu_custom_call.1} parent=1 // pred_check
      _
    $region31: #{tpu_custom_call.1} parent=1 // pred_check_branch
      %76 = sbr.rel (0) target = $region33
    $region32: #{tpu_custom_call.1} parent=1 // pred_region
      %s78 = ssub.s32 16, 16
      %79 = vsyncadd [#allocation9], %s78
      %s81 = sshll.u32 [#allocation8], 4
      %s82 = int_to_ptr.vmem [resolvable:$true] %s81
      %84 = dma.hbm_to_vmem [thread:$0]  %s7, 16, %s82, [#allocation9]
    $region33: #{tpu_custom_call.1} parent=1 // pred_fallthru
      _
    // Predicated region
    $region34: #{tpu_custom_call.1} parent=1 // pred_check
      _
    $region35: #{tpu_custom_call.1} parent=1 // pred_check_branch
      %86 = sbr.rel (0) target = $region37
    $region36: #{tpu_custom_call.1} parent=1 // pred_region
      _
    $region37: #{tpu_custom_call.1} parent=1 // pred_fallthru
      _
    // Predicated region
    $region38: #{tpu_custom_call.1} parent=1 // pred_check
      _
    $region39: #{tpu_custom_call.1} parent=1 // pred_check_branch
      %88 = sbr.rel (0) target = $region41
    $region40: #{tpu_custom_call.1} parent=1 // pred_region
      %s90 = ssub.s32 16, 16
      %91 = vsyncadd [#allocation9], %s90
      %s93 = sshll.u32 [#allocation10], 4
      %s94 = int_to_ptr.vmem [resolvable:$true] %s93
      %96 = dma.hbm_to_vmem [thread:$0]  %s9, 16, %s94, [#allocation9]
    $region41: #{tpu_custom_call.1} parent=1 // pred_fallthru
      _
    // Predicated region
    $region42: #{tpu_custom_call.1} parent=1 // pred_check
      _
    $region43: #{tpu_custom_call.1} parent=1 // pred_check_branch
      %98 = sbr.rel (0) target = $region45
    $region44: #{tpu_custom_call.1} parent=1 // pred_region
      _
    $region45: #{tpu_custom_call.1} parent=1 // pred_fallthru
      _
    // Predicated region
    $region46: #{tpu_custom_call.1} parent=1 // pred_check
      _
    $region47: #{tpu_custom_call.1} parent=1 // pred_check_branch
      %100 = sbr.rel (0) target = $region49
    $region48: #{tpu_custom_call.1} parent=1 // pred_region
      _
    $region49: #{tpu_custom_call.1} parent=1 // pred_fallthru
      _
    // Predicated region
    $region50: #{tpu_custom_call.1} parent=1 // pred_check
      _
    $region51: #{tpu_custom_call.1} parent=1 // pred_check_branch
      %102 = sbr.rel (0) target = $region53
    $region52: #{tpu_custom_call.1} parent=1 // pred_region
      %s104 = ssub.s32 2048, 2048
      %105 = vsyncadd [#allocation12], %s104
      %s106 = sshll.u32 [#allocation11], 4
      %s107 = int_to_ptr.vmem [resolvable:$true] %s106
      %112 = dma.hbm_to_vmem [thread:$0]  %s12, 2048, %s107, [#allocation12], 128, 128, 8
    $region53: #{tpu_custom_call.1} parent=1 // pred_fallthru
      _
    // Predicated region
    $region54: #{tpu_custom_call.1} parent=1 // pred_check
      _
    $region55: #{tpu_custom_call.1} parent=1 // pred_check_branch
      %114 = sbr.rel (0) target = $region57
    $region56: #{tpu_custom_call.1} parent=1 // pred_region
      _
    $region57: #{tpu_custom_call.1} parent=1 // pred_fallthru
      _
    // Predicated region
    $region58: #{tpu_custom_call.1} parent=1 // pred_check
      _
    $region59: #{tpu_custom_call.1} parent=1 // pred_check_branch
      %116 = sbr.rel (0) target = $region61
    $region60: #{tpu_custom_call.1} parent=1 // pred_region
      %s118 = ssub.s32 16384, 16384
      %119 = vsyncadd [#allocation12], %s118
      %s120 = sshll.u32 [#allocation13], 4
      %s121 = int_to_ptr.vmem [resolvable:$true] %s120
      %126 = dma.hbm_to_vmem [thread:$0]  %s14, 16384, %s121, [#allocation12], 512, 512, 32
    $region61: #{tpu_custom_call.1} parent=1 // pred_fallthru
      _
    // Predicated region
    $region62: #{tpu_custom_call.1} parent=1 // pred_check
      _
    $region63: #{tpu_custom_call.1} parent=1 // pred_check_branch
      %128 = sbr.rel (0) target = $region65
    $region64: #{tpu_custom_call.1} parent=1 // pred_region
      _
    $region65: #{tpu_custom_call.1} parent=1 // pred_fallthru
      _
    // Predicated region
    $region66: #{tpu_custom_call.1} parent=1 // pred_check
      _
    $region67: #{tpu_custom_call.1} parent=1 // pred_check_branch
      %130 = sbr.rel (0) target = $region69
    $region68: #{tpu_custom_call.1} parent=1 // pred_region
      %s132 = ssub.s32 16384, 16384
      %133 = vsyncadd [#allocation15], %s132
      %s134 = sshll.u32 [#allocation14], 4
      %s135 = int_to_ptr.vmem [resolvable:$true] %s134
      %140 = dma.hbm_to_vmem [thread:$0]  %s16, 16384, %s135, [#allocation15], 512, 512, 32
    $region69: #{tpu_custom_call.1} parent=1 // pred_fallthru
      _
    // Predicated region
    $region70: #{tpu_custom_call.1} parent=1 // pred_check
      _
    $region71: #{tpu_custom_call.1} parent=1 // pred_check_branch
      %142 = sbr.rel (0) target = $region73
    $region72: #{tpu_custom_call.1} parent=1 // pred_region
      _
    $region73: #{tpu_custom_call.1} parent=1 // pred_fallthru
      _
    // Predicated region
    $region74: #{tpu_custom_call.1} parent=1 // pred_check
      _
    $region75: #{tpu_custom_call.1} parent=1 // pred_check_branch
      %144 = sbr.rel (0) target = $region77
    $region76: #{tpu_custom_call.1} parent=1 // pred_region
      %145 = dma.done [#allocation3], 1024
    $region77: #{tpu_custom_call.1} parent=1 // pred_fallthru
      _
    // Predicated region
    $region78: #{tpu_custom_call.1} parent=1 // pred_check
      _
    $region79: #{tpu_custom_call.1} parent=1 // pred_check_branch
      %147 = sbr.rel (0) target = $region81
    $region80: #{tpu_custom_call.1} parent=1 // pred_region
      %148 = dma.done [#allocation6], 16384
    $region81: #{tpu_custom_call.1} parent=1 // pred_fallthru
      _
    // Predicated region
    $region82: #{tpu_custom_call.1} parent=1 // pred_check
      _
    $region83: #{tpu_custom_call.1} parent=1 // pred_check_branch
      %150 = sbr.rel (0) target = $region85
    $region84: #{tpu_custom_call.1} parent=1 // pred_region
      %151 = dma.done [#allocation6], 16
    $region85: #{tpu_custom_call.1} parent=1 // pred_fallthru
      _
    // Predicated region
    $region86: #{tpu_custom_call.1} parent=1 // pred_check
      _
    $region87: #{tpu_custom_call.1} parent=1 // pred_check_branch
      %153 = sbr.rel (0) target = $region89
    $region88: #{tpu_custom_call.1} parent=1 // pred_region
      %154 = dma.done [#allocation9], 16
    $region89: #{tpu_custom_call.1} parent=1 // pred_fallthru
      _
    // Predicated region
    $region90: #{tpu_custom_call.1} parent=1 // pred_check
      _
    $region91: #{tpu_custom_call.1} parent=1 // pred_check_branch
      %156 = sbr.rel (0) target = $region93
    $region92: #{tpu_custom_call.1} parent=1 // pred_region
      %157 = dma.done [#allocation9], 16
    $region93: #{tpu_custom_call.1} parent=1 // pred_fallthru
      _
    // Predicated region
    $region94: #{tpu_custom_call.1} parent=1 // pred_check
      _
    $region95: #{tpu_custom_call.1} parent=1 // pred_check_branch
      %159 = sbr.rel (0) target = $region97
    $region96: #{tpu_custom_call.1} parent=1 // pred_region
      %160 = dma.done [#allocation12], 2048
    $region97: #{tpu_custom_call.1} parent=1 // pred_fallthru
      _
    // Predicated region
    $region98: #{tpu_custom_call.1} parent=1 // pred_check
      _
    $region99: #{tpu_custom_call.1} parent=1 // pred_check_branch
      %162 = sbr.rel (0) target = $region101
    $region100: #{tpu_custom_call.1} parent=1 // pred_region
      %163 = dma.done [#allocation12], 16384
    $region101: #{tpu_custom_call.1} parent=1 // pred_fallthru
      _
    // Predicated region
    $region102: #{tpu_custom_call.1} parent=1 // pred_check
      _
    $region103: #{tpu_custom_call.1} parent=1 // pred_check_branch
      %165 = sbr.rel (0) target = $region105
    $region104: #{tpu_custom_call.1} parent=1 // pred_region
      %166 = dma.done [#allocation15], 16384
    $region105: #{tpu_custom_call.1} parent=1 // pred_fallthru
      _
    %v168 = vld [vmem:[#allocation2] sm:$0xff]
    %v169 = vld [vmem:[#allocation2 + $0x8] sm:$0xff]
    %v170 = vld [vmem:[#allocation2 + $0x10] sm:$0xff]
    %v171 = vld [vmem:[#allocation2 + $0x18] sm:$0xff]
    %v172 = vld [vmem:[#allocation2 + $0x20] sm:$0xff]
    %v173 = vld [vmem:[#allocation2 + $0x28] sm:$0xff]
    %v174 = vld [vmem:[#allocation2 + $0x30] sm:$0xff]
    %v175 = vld [vmem:[#allocation2 + $0x38] sm:$0xff]
    %v176 = vld [vmem:[%s1] sm:$0xff]
    %v177 = vld [vmem:[%s1 + $0x8] sm:$0xff]
    %v178 = vld [vmem:[#allocation5] sm:$0xff]
    %v179 = vld [vmem:[#allocation5 + $0x8] sm:$0xff]
    %v180 = vld [vmem:[#allocation5 + $0x10] sm:$0xff]
    %v181 = vld [vmem:[#allocation5 + $0x18] sm:$0xff]
    %v182 = vld [vmem:[#allocation5 + $0x20] sm:$0xff]
    %v183 = vld [vmem:[#allocation5 + $0x28] sm:$0xff]
    %v184 = vld [vmem:[#allocation5 + $0x30] sm:$0xff]
    %v185 = vld [vmem:[#allocation5 + $0x38] sm:$0xff]
    %v186 = vld [vmem:[#allocation5 + $0x40] sm:$0xff]
    %v187 = vld [vmem:[#allocation5 + $0x48] sm:$0xff]
    %v188 = vld [vmem:[#allocation5 + $0x50] sm:$0xff]
    %v189 = vld [vmem:[#allocation5 + $0x58] sm:$0xff]
    %v190 = vld [vmem:[#allocation5 + $0x60] sm:$0xff]
    %v191 = vld [vmem:[#allocation5 + $0x68] sm:$0xff]
    %v192 = vld [vmem:[#allocation5 + $0x70] sm:$0xff]
    %v193 = vld [vmem:[#allocation5 + $0x78] sm:$0xff]
    %v194 = vld [vmem:[#allocation5 + $0x80] sm:$0xff]
    %v195 = vld [vmem:[#allocation5 + $0x88] sm:$0xff]
    %v196 = vld [vmem:[#allocation5 + $0x90] sm:$0xff]
    %v197 = vld [vmem:[#allocation5 + $0x98] sm:$0xff]
    %v198 = vld [vmem:[#allocation5 + $0xa0] sm:$0xff]
    %v199 = vld [vmem:[#allocation5 + $0xa8] sm:$0xff]
    %v200 = vld [vmem:[#allocation5 + $0xb0] sm:$0xff]
    %v201 = vld [vmem:[#allocation5 + $0xb8] sm:$0xff]
    %v202 = vld [vmem:[#allocation5 + $0xc0] sm:$0xff]
    %v203 = vld [vmem:[#allocation5 + $0xc8] sm:$0xff]
    %v204 = vld [vmem:[#allocation5 + $0xd0] sm:$0xff]
    %v205 = vld [vmem:[#allocation5 + $0xd8] sm:$0xff]
    %v206 = vld [vmem:[#allocation5 + $0xe0] sm:$0xff]
    %v207 = vld [vmem:[#allocation5 + $0xe8] sm:$0xff]
    %v208 = vld [vmem:[#allocation5 + $0xf0] sm:$0xff]
    %v209 = vld [vmem:[#allocation5 + $0xf8] sm:$0xff]
    %v210 = vld [vmem:[#allocation5 + $0x100] sm:$0xff]
    %v211 = vld [vmem:[#allocation5 + $0x108] sm:$0xff]
    %v212 = vld [vmem:[#allocation5 + $0x110] sm:$0xff]
    %v213 = vld [vmem:[#allocation5 + $0x118] sm:$0xff]
    %v214 = vld [vmem:[#allocation5 + $0x120] sm:$0xff]
    %v215 = vld [vmem:[#allocation5 + $0x128] sm:$0xff]
    %v216 = vld [vmem:[#allocation5 + $0x130] sm:$0xff]
    %v217 = vld [vmem:[#allocation5 + $0x138] sm:$0xff]
    %v218 = vld [vmem:[#allocation5 + $0x140] sm:$0xff]
    %v219 = vld [vmem:[#allocation5 + $0x148] sm:$0xff]
    %v220 = vld [vmem:[#allocation5 + $0x150] sm:$0xff]
    %v221 = vld [vmem:[#allocation5 + $0x158] sm:$0xff]
    %v222 = vld [vmem:[#allocation5 + $0x160] sm:$0xff]
    %v223 = vld [vmem:[#allocation5 + $0x168] sm:$0xff]
    %v224 = vld [vmem:[#allocation5 + $0x170] sm:$0xff]
    %v225 = vld [vmem:[#allocation5 + $0x178] sm:$0xff]
    %v226 = vld [vmem:[#allocation5 + $0x180] sm:$0xff]
    %v227 = vld [vmem:[#allocation5 + $0x188] sm:$0xff]
    %v228 = vld [vmem:[#allocation5 + $0x190] sm:$0xff]
    %v229 = vld [vmem:[#allocation5 + $0x198] sm:$0xff]
    %v230 = vld [vmem:[#allocation5 + $0x1a0] sm:$0xff]
    %v231 = vld [vmem:[#allocation5 + $0x1a8] sm:$0xff]
    %v232 = vld [vmem:[#allocation5 + $0x1b0] sm:$0xff]
    %v233 = vld [vmem:[#allocation5 + $0x1b8] sm:$0xff]
    %v234 = vld [vmem:[#allocation5 + $0x1c0] sm:$0xff]
    %v235 = vld [vmem:[#allocation5 + $0x1c8] sm:$0xff]
    %v236 = vld [vmem:[#allocation5 + $0x1d0] sm:$0xff]
    %v237 = vld [vmem:[#allocation5 + $0x1d8] sm:$0xff]
    %v238 = vld [vmem:[#allocation5 + $0x1e0] sm:$0xff]
    %v239 = vld [vmem:[#allocation5 + $0x1e8] sm:$0xff]
    %v240 = vld [vmem:[#allocation5 + $0x1f0] sm:$0xff]
    %v241 = vld [vmem:[#allocation5 + $0x1f8] sm:$0xff]
    %v242 = vld [vmem:[#allocation5 + $0x200] sm:$0xff]
    %v243 = vld [vmem:[#allocation5 + $0x208] sm:$0xff]
    %v244 = vld [vmem:[#allocation5 + $0x210] sm:$0xff]
    %v245 = vld [vmem:[#allocation5 + $0x218] sm:$0xff]
    %v246 = vld [vmem:[#allocation5 + $0x220] sm:$0xff]
    %v247 = vld [vmem:[#allocation5 + $0x228] sm:$0xff]
    %v248 = vld [vmem:[#allocation5 + $0x230] sm:$0xff]
    %v249 = vld [vmem:[#allocation5 + $0x238] sm:$0xff]
    %v250 = vld [vmem:[#allocation5 + $0x240] sm:$0xff]
    %v251 = vld [vmem:[#allocation5 + $0x248] sm:$0xff]
    %v252 = vld [vmem:[#allocation5 + $0x250] sm:$0xff]
    %v253 = vld [vmem:[#allocation5 + $0x258] sm:$0xff]
    %v254 = vld [vmem:[#allocation5 + $0x260] sm:$0xff]
    %v255 = vld [vmem:[#allocation5 + $0x268] sm:$0xff]
    %v256 = vld [vmem:[#allocation5 + $0x270] sm:$0xff]
    %v257 = vld [vmem:[#allocation5 + $0x278] sm:$0xff]
    %v258 = vld [vmem:[#allocation5 + $0x280] sm:$0xff]
    %v259 = vld [vmem:[#allocation5 + $0x288] sm:$0xff]
    %v260 = vld [vmem:[#allocation5 + $0x290] sm:$0xff]
    %v261 = vld [vmem:[#allocation5 + $0x298] sm:$0xff]
    %v262 = vld [vmem:[#allocation5 + $0x2a0] sm:$0xff]
    %v263 = vld [vmem:[#allocation5 + $0x2a8] sm:$0xff]
    %v264 = vld [vmem:[#allocation5 + $0x2b0] sm:$0xff]
    %v265 = vld [vmem:[#allocation5 + $0x2b8] sm:$0xff]
    %v266 = vld [vmem:[#allocation5 + $0x2c0] sm:$0xff]
    %v267 = vld [vmem:[#allocation5 + $0x2c8] sm:$0xff]
    %v268 = vld [vmem:[#allocation5 + $0x2d0] sm:$0xff]
    %v269 = vld [vmem:[#allocation5 + $0x2d8] sm:$0xff]
    %v270 = vld [vmem:[#allocation5 + $0x2e0] sm:$0xff]
    %v271 = vld [vmem:[#allocation5 + $0x2e8] sm:$0xff]
    %v272 = vld [vmem:[#allocation5 + $0x2f0] sm:$0xff]
    %v273 = vld [vmem:[#allocation5 + $0x2f8] sm:$0xff]
    %v274 = vld [vmem:[#allocation5 + $0x300] sm:$0xff]
    %v275 = vld [vmem:[#allocation5 + $0x308] sm:$0xff]
    %v276 = vld [vmem:[#allocation5 + $0x310] sm:$0xff]
    %v277 = vld [vmem:[#allocation5 + $0x318] sm:$0xff]
    %v278 = vld [vmem:[#allocation5 + $0x320] sm:$0xff]
    %v279 = vld [vmem:[#allocation5 + $0x328] sm:$0xff]
    %v280 = vld [vmem:[#allocation5 + $0x330] sm:$0xff]
    %v281 = vld [vmem:[#allocation5 + $0x338] sm:$0xff]
    %v282 = vld [vmem:[#allocation5 + $0x340] sm:$0xff]
    %v283 = vld [vmem:[#allocation5 + $0x348] sm:$0xff]
    %v284 = vld [vmem:[#allocation5 + $0x350] sm:$0xff]
    %v285 = vld [vmem:[#allocation5 + $0x358] sm:$0xff]
    %v286 = vld [vmem:[#allocation5 + $0x360] sm:$0xff]
    %v287 = vld [vmem:[#allocation5 + $0x368] sm:$0xff]
    %v288 = vld [vmem:[#allocation5 + $0x370] sm:$0xff]
    %v289 = vld [vmem:[#allocation5 + $0x378] sm:$0xff]
    %v290 = vld [vmem:[#allocation5 + $0x380] sm:$0xff]
    %v291 = vld [vmem:[#allocation5 + $0x388] sm:$0xff]
    %v292 = vld [vmem:[#allocation5 + $0x390] sm:$0xff]
    %v293 = vld [vmem:[#allocation5 + $0x398] sm:$0xff]
    %v294 = vld [vmem:[#allocation5 + $0x3a0] sm:$0xff]
    %v295 = vld [vmem:[#allocation5 + $0x3a8] sm:$0xff]
    %v296 = vld [vmem:[#allocation5 + $0x3b0] sm:$0xff]
    %v297 = vld [vmem:[#allocation5 + $0x3b8] sm:$0xff]
    %v298 = vld [vmem:[#allocation5 + $0x3c0] sm:$0xff]
    %v299 = vld [vmem:[#allocation5 + $0x3c8] sm:$0xff]
    %v300 = vld [vmem:[#allocation5 + $0x3d0] sm:$0xff]
    %v301 = vld [vmem:[#allocation5 + $0x3d8] sm:$0xff]
    %v302 = vld [vmem:[#allocation5 + $0x3e0] sm:$0xff]
    %v303 = vld [vmem:[#allocation5 + $0x3e8] sm:$0xff]
    %v304 = vld [vmem:[#allocation5 + $0x3f0] sm:$0xff]
    %v305 = vld [vmem:[#allocation5 + $0x3f8] sm:$0xff]
    %v306 = vld [vmem:[%s3] sm:$0x3]
    %v308 = vlaneseq
    %v309 = vshrl.u32 %v308, 7
    %v310 = vsub.s32 0, %v309
    %v311 = vrot.slane %v306, %v310
    %v312 = vlaneseq
    %v313 = vshrl.u32 %v312, 7
    %v314 = vsub.s32 1, %v313
    %v315 = vrot.slane %v306, %v314
    %v326 = vunpack.c.l.b16 %v168
    %v327 = vunpack.c.h.b16 %v168
    %v328 = vunpack.c.l.b16 %v169
    %v329 = vunpack.c.h.b16 %v169
    %v330 = vunpack.c.l.b16 %v170
    %v331 = vunpack.c.h.b16 %v170
    %v332 = vunpack.c.l.b16 %v171
    %v333 = vunpack.c.h.b16 %v171
    %v334 = vunpack.c.l.b16 %v172
    %v335 = vunpack.c.h.b16 %v172
    %v336 = vunpack.c.l.b16 %v173
    %v337 = vunpack.c.h.b16 %v173
    %v338 = vunpack.c.l.b16 %v174
    %v339 = vunpack.c.h.b16 %v174
    %v340 = vunpack.c.l.b16 %v175
    %v341 = vunpack.c.h.b16 %v175
    %v342 = vpack.c.b16 %v334, %v326
    %v343 = vpack.c.b16 %v335, %v327
    %v344 = vpack.c.b16 %v336, %v328
    %v345 = vpack.c.b16 %v337, %v329
    %v346 = vpack.c.b16 %v338, %v330
    %v347 = vpack.c.b16 %v339, %v331
    %v348 = vpack.c.b16 %v340, %v332
    %v349 = vpack.c.b16 %v341, %v333
    %v486 = vunpack.c.l.b16 %v178
    %v487 = vunpack.c.h.b16 %v178
    %v488 = vunpack.c.l.b16 %v179
    %v489 = vunpack.c.h.b16 %v179
    %v490 = vunpack.c.l.b16 %v180
    %v491 = vunpack.c.h.b16 %v180
    %v492 = vunpack.c.l.b16 %v181
    %v493 = vunpack.c.h.b16 %v181
    %v494 = vunpack.c.l.b16 %v182
    %v495 = vunpack.c.h.b16 %v182
    %v496 = vunpack.c.l.b16 %v183
    %v497 = vunpack.c.h.b16 %v183
    %v498 = vunpack.c.l.b16 %v184
    %v499 = vunpack.c.h.b16 %v184
    %v500 = vunpack.c.l.b16 %v185
    %v501 = vunpack.c.h.b16 %v185
    %v502 = vunpack.c.l.b16 %v186
    %v503 = vunpack.c.h.b16 %v186
    %v504 = vunpack.c.l.b16 %v187
    %v505 = vunpack.c.h.b16 %v187
    %v506 = vunpack.c.l.b16 %v188
    %v507 = vunpack.c.h.b16 %v188
    %v508 = vunpack.c.l.b16 %v189
    %v509 = vunpack.c.h.b16 %v189
    %v510 = vunpack.c.l.b16 %v190
    %v511 = vunpack.c.h.b16 %v190
    %v512 = vunpack.c.l.b16 %v191
    %v513 = vunpack.c.h.b16 %v191
    %v514 = vunpack.c.l.b16 %v192
    %v515 = vunpack.c.h.b16 %v192
    %v516 = vunpack.c.l.b16 %v193
    %v517 = vunpack.c.h.b16 %v193
    %v518 = vunpack.c.l.b16 %v194
    %v519 = vunpack.c.h.b16 %v194
    %v520 = vunpack.c.l.b16 %v195
    %v521 = vunpack.c.h.b16 %v195
    %v522 = vunpack.c.l.b16 %v196
    %v523 = vunpack.c.h.b16 %v196
    %v524 = vunpack.c.l.b16 %v197
    %v525 = vunpack.c.h.b16 %v197
    %v526 = vunpack.c.l.b16 %v198
    %v527 = vunpack.c.h.b16 %v198
    %v528 = vunpack.c.l.b16 %v199
    %v529 = vunpack.c.h.b16 %v199
    %v530 = vunpack.c.l.b16 %v200
    %v531 = vunpack.c.h.b16 %v200
    %v532 = vunpack.c.l.b16 %v201
    %v533 = vunpack.c.h.b16 %v201
    %v534 = vunpack.c.l.b16 %v202
    %v535 = vunpack.c.h.b16 %v202
    %v536 = vunpack.c.l.b16 %v203
    %v537 = vunpack.c.h.b16 %v203
    %v538 = vunpack.c.l.b16 %v204
    %v539 = vunpack.c.h.b16 %v204
    %v540 = vunpack.c.l.b16 %v205
    %v541 = vunpack.c.h.b16 %v205
    %v542 = vunpack.c.l.b16 %v206
    %v543 = vunpack.c.h.b16 %v206
    %v544 = vunpack.c.l.b16 %v207
    %v545 = vunpack.c.h.b16 %v207
    %v546 = vunpack.c.l.b16 %v208
    %v547 = vunpack.c.h.b16 %v208
    %v548 = vunpack.c.l.b16 %v209
    %v549 = vunpack.c.h.b16 %v209
    %v550 = vunpack.c.l.b16 %v210
    %v551 = vunpack.c.h.b16 %v210
    %v552 = vunpack.c.l.b16 %v211
    %v553 = vunpack.c.h.b16 %v211
    %v554 = vunpack.c.l.b16 %v212
    %v555 = vunpack.c.h.b16 %v212
    %v556 = vunpack.c.l.b16 %v213
    %v557 = vunpack.c.h.b16 %v213
    %v558 = vunpack.c.l.b16 %v214
    %v559 = vunpack.c.h.b16 %v214
    %v560 = vunpack.c.l.b16 %v215
    %v561 = vunpack.c.h.b16 %v215
    %v562 = vunpack.c.l.b16 %v216
    %v563 = vunpack.c.h.b16 %v216
    %v564 = vunpack.c.l.b16 %v217
    %v565 = vunpack.c.h.b16 %v217
    %v566 = vunpack.c.l.b16 %v218
    %v567 = vunpack.c.h.b16 %v218
    %v568 = vunpack.c.l.b16 %v219
    %v569 = vunpack.c.h.b16 %v219
    %v570 = vunpack.c.l.b16 %v220
    %v571 = vunpack.c.h.b16 %v220
    %v572 = vunpack.c.l.b16 %v221
    %v573 = vunpack.c.h.b16 %v221
    %v574 = vunpack.c.l.b16 %v222
    %v575 = vunpack.c.h.b16 %v222
    %v576 = vunpack.c.l.b16 %v223
    %v577 = vunpack.c.h.b16 %v223
    %v578 = vunpack.c.l.b16 %v224
    %v579 = vunpack.c.h.b16 %v224
    %v580 = vunpack.c.l.b16 %v225
    %v581 = vunpack.c.h.b16 %v225
    %v582 = vunpack.c.l.b16 %v226
    %v583 = vunpack.c.h.b16 %v226
    %v584 = vunpack.c.l.b16 %v227
    %v585 = vunpack.c.h.b16 %v227
    %v586 = vunpack.c.l.b16 %v228
    %v587 = vunpack.c.h.b16 %v228
    %v588 = vunpack.c.l.b16 %v229
    %v589 = vunpack.c.h.b16 %v229
    %v590 = vunpack.c.l.b16 %v230
    %v591 = vunpack.c.h.b16 %v230
    %v592 = vunpack.c.l.b16 %v231
    %v593 = vunpack.c.h.b16 %v231
    %v594 = vunpack.c.l.b16 %v232
    %v595 = vunpack.c.h.b16 %v232
    %v596 = vunpack.c.l.b16 %v233
    %v597 = vunpack.c.h.b16 %v233
    %v598 = vunpack.c.l.b16 %v234
    %v599 = vunpack.c.h.b16 %v234
    %v600 = vunpack.c.l.b16 %v235
    %v601 = vunpack.c.h.b16 %v235
    %v602 = vunpack.c.l.b16 %v236
    %v603 = vunpack.c.h.b16 %v236
    %v604 = vunpack.c.l.b16 %v237
    %v605 = vunpack.c.h.b16 %v237
    %v606 = vunpack.c.l.b16 %v238
    %v607 = vunpack.c.h.b16 %v238
    %v608 = vunpack.c.l.b16 %v239
    %v609 = vunpack.c.h.b16 %v239
    %v610 = vunpack.c.l.b16 %v240
    %v611 = vunpack.c.h.b16 %v240
    %v612 = vunpack.c.l.b16 %v241
    %v613 = vunpack.c.h.b16 %v241
    %v614 = vunpack.c.l.b16 %v242
    %v615 = vunpack.c.h.b16 %v242
    %v616 = vunpack.c.l.b16 %v243
    %v617 = vunpack.c.h.b16 %v243
    %v618 = vunpack.c.l.b16 %v244
    %v619 = vunpack.c.h.b16 %v244
    %v620 = vunpack.c.l.b16 %v245
    %v621 = vunpack.c.h.b16 %v245
    %v622 = vunpack.c.l.b16 %v246
    %v623 = vunpack.c.h.b16 %v246
    %v624 = vunpack.c.l.b16 %v247
    %v625 = vunpack.c.h.b16 %v247
    %v626 = vunpack.c.l.b16 %v248
    %v627 = vunpack.c.h.b16 %v248
    %v628 = vunpack.c.l.b16 %v249
    %v629 = vunpack.c.h.b16 %v249
    %v630 = vunpack.c.l.b16 %v250
    %v631 = vunpack.c.h.b16 %v250
    %v632 = vunpack.c.l.b16 %v251
    %v633 = vunpack.c.h.b16 %v251
    %v634 = vunpack.c.l.b16 %v252
    %v635 = vunpack.c.h.b16 %v252
    %v636 = vunpack.c.l.b16 %v253
    %v637 = vunpack.c.h.b16 %v253
    %v638 = vunpack.c.l.b16 %v254
    %v639 = vunpack.c.h.b16 %v254
    %v640 = vunpack.c.l.b16 %v255
    %v641 = vunpack.c.h.b16 %v255
    %v642 = vunpack.c.l.b16 %v256
    %v643 = vunpack.c.h.b16 %v256
    %v644 = vunpack.c.l.b16 %v257
    %v645 = vunpack.c.h.b16 %v257
    %v646 = vunpack.c.l.b16 %v258
    %v647 = vunpack.c.h.b16 %v258
    %v648 = vunpack.c.l.b16 %v259
    %v649 = vunpack.c.h.b16 %v259
    %v650 = vunpack.c.l.b16 %v260
    %v651 = vunpack.c.h.b16 %v260
    %v652 = vunpack.c.l.b16 %v261
    %v653 = vunpack.c.h.b16 %v261
    %v654 = vunpack.c.l.b16 %v262
    %v655 = vunpack.c.h.b16 %v262
    %v656 = vunpack.c.l.b16 %v263
    %v657 = vunpack.c.h.b16 %v263
    %v658 = vunpack.c.l.b16 %v264
    %v659 = vunpack.c.h.b16 %v264
    %v660 = vunpack.c.l.b16 %v265
    %v661 = vunpack.c.h.b16 %v265
    %v662 = vunpack.c.l.b16 %v266
    %v663 = vunpack.c.h.b16 %v266
    %v664 = vunpack.c.l.b16 %v267
    %v665 = vunpack.c.h.b16 %v267
    %v666 = vunpack.c.l.b16 %v268
    %v667 = vunpack.c.h.b16 %v268
    %v668 = vunpack.c.l.b16 %v269
    %v669 = vunpack.c.h.b16 %v269
    %v670 = vunpack.c.l.b16 %v270
    %v671 = vunpack.c.h.b16 %v270
    %v672 = vunpack.c.l.b16 %v271
    %v673 = vunpack.c.h.b16 %v271
    %v674 = vunpack.c.l.b16 %v272
    %v675 = vunpack.c.h.b16 %v272
    %v676 = vunpack.c.l.b16 %v273
    %v677 = vunpack.c.h.b16 %v273
    %v678 = vunpack.c.l.b16 %v274
    %v679 = vunpack.c.h.b16 %v274
    %v680 = vunpack.c.l.b16 %v275
    %v681 = vunpack.c.h.b16 %v275
    %v682 = vunpack.c.l.b16 %v276
    %v683 = vunpack.c.h.b16 %v276
    %v684 = vunpack.c.l.b16 %v277
    %v685 = vunpack.c.h.b16 %v277
    %v686 = vunpack.c.l.b16 %v278
    %v687 = vunpack.c.h.b16 %v278
    %v688 = vunpack.c.l.b16 %v279
    %v689 = vunpack.c.h.b16 %v279
    %v690 = vunpack.c.l.b16 %v280
    %v691 = vunpack.c.h.b16 %v280
    %v692 = vunpack.c.l.b16 %v281
    %v693 = vunpack.c.h.b16 %v281
    %v694 = vunpack.c.l.b16 %v282
    %v695 = vunpack.c.h.b16 %v282
    %v696 = vunpack.c.l.b16 %v283
    %v697 = vunpack.c.h.b16 %v283
    %v698 = vunpack.c.l.b16 %v284
    %v699 = vunpack.c.h.b16 %v284
    %v700 = vunpack.c.l.b16 %v285
    %v701 = vunpack.c.h.b16 %v285
    %v702 = vunpack.c.l.b16 %v286
    %v703 = vunpack.c.h.b16 %v286
    %v704 = vunpack.c.l.b16 %v287
    %v705 = vunpack.c.h.b16 %v287
    %v706 = vunpack.c.l.b16 %v288
    %v707 = vunpack.c.h.b16 %v288
    %v708 = vunpack.c.l.b16 %v289
    %v709 = vunpack.c.h.b16 %v289
    %v710 = vunpack.c.l.b16 %v290
    %v711 = vunpack.c.h.b16 %v290
    %v712 = vunpack.c.l.b16 %v291
    %v713 = vunpack.c.h.b16 %v291
    %v714 = vunpack.c.l.b16 %v292
    %v715 = vunpack.c.h.b16 %v292
    %v716 = vunpack.c.l.b16 %v293
    %v717 = vunpack.c.h.b16 %v293
    %v718 = vunpack.c.l.b16 %v294
    %v719 = vunpack.c.h.b16 %v294
    %v720 = vunpack.c.l.b16 %v295
    %v721 = vunpack.c.h.b16 %v295
    %v722 = vunpack.c.l.b16 %v296
    %v723 = vunpack.c.h.b16 %v296
    %v724 = vunpack.c.l.b16 %v297
    %v725 = vunpack.c.h.b16 %v297
    %v726 = vunpack.c.l.b16 %v298
    %v727 = vunpack.c.h.b16 %v298
    %v728 = vunpack.c.l.b16 %v299
    %v729 = vunpack.c.h.b16 %v299
    %v730 = vunpack.c.l.b16 %v300
    %v731 = vunpack.c.h.b16 %v300
    %v732 = vunpack.c.l.b16 %v301
    %v733 = vunpack.c.h.b16 %v301
    %v734 = vunpack.c.l.b16 %v302
    %v735 = vunpack.c.h.b16 %v302
    %v736 = vunpack.c.l.b16 %v303
    %v737 = vunpack.c.h.b16 %v303
    %v738 = vunpack.c.l.b16 %v304
    %v739 = vunpack.c.h.b16 %v304
    %v740 = vunpack.c.l.b16 %v305
    %v741 = vunpack.c.h.b16 %v305
    %v742 = vpack.c.b16 %v488, %v486
    %v743 = vpack.c.b16 %v489, %v487
    %v744 = vpack.c.b16 %v492, %v490
    %v745 = vpack.c.b16 %v493, %v491
    %v746 = vpack.c.b16 %v496, %v494
    %v747 = vpack.c.b16 %v497, %v495
    %v748 = vpack.c.b16 %v500, %v498
    %v749 = vpack.c.b16 %v501, %v499
    %v750 = vpack.c.b16 %v504, %v502
    %v751 = vpack.c.b16 %v505, %v503
    %v752 = vpack.c.b16 %v508, %v506
    %v753 = vpack.c.b16 %v509, %v507
    %v754 = vpack.c.b16 %v512, %v510
    %v755 = vpack.c.b16 %v513, %v511
    %v756 = vpack.c.b16 %v516, %v514
    %v757 = vpack.c.b16 %v517, %v515
    %v758 = vpack.c.b16 %v520, %v518
    %v759 = vpack.c.b16 %v521, %v519
    %v760 = vpack.c.b16 %v524, %v522
    %v761 = vpack.c.b16 %v525, %v523
    %v762 = vpack.c.b16 %v528, %v526
    %v763 = vpack.c.b16 %v529, %v527
    %v764 = vpack.c.b16 %v532, %v530
    %v765 = vpack.c.b16 %v533, %v531
    %v766 = vpack.c.b16 %v536, %v534
    %v767 = vpack.c.b16 %v537, %v535
    %v768 = vpack.c.b16 %v540, %v538
    %v769 = vpack.c.b16 %v541, %v539
    %v770 = vpack.c.b16 %v544, %v542
    %v771 = vpack.c.b16 %v545, %v543
    %v772 = vpack.c.b16 %v548, %v546
    %v773 = vpack.c.b16 %v549, %v547
    %v774 = vpack.c.b16 %v552, %v550
    %v775 = vpack.c.b16 %v553, %v551
    %v776 = vpack.c.b16 %v556, %v554
    %v777 = vpack.c.b16 %v557, %v555
    %v778 = vpack.c.b16 %v560, %v558
    %v779 = vpack.c.b16 %v561, %v559
    %v780 = vpack.c.b16 %v564, %v562
    %v781 = vpack.c.b16 %v565, %v563
    %v782 = vpack.c.b16 %v568, %v566
    %v783 = vpack.c.b16 %v569, %v567
    %v784 = vpack.c.b16 %v572, %v570
    %v785 = vpack.c.b16 %v573, %v571
    %v786 = vpack.c.b16 %v576, %v574
    %v787 = vpack.c.b16 %v577, %v575
    %v788 = vpack.c.b16 %v580, %v578
    %v789 = vpack.c.b16 %v581, %v579
    %v790 = vpack.c.b16 %v584, %v582
    %v791 = vpack.c.b16 %v585, %v583
    %v792 = vpack.c.b16 %v588, %v586
    %v793 = vpack.c.b16 %v589, %v587
    %v794 = vpack.c.b16 %v592, %v590
    %v795 = vpack.c.b16 %v593, %v591
    %v796 = vpack.c.b16 %v596, %v594
    %v797 = vpack.c.b16 %v597, %v595
    %v798 = vpack.c.b16 %v600, %v598
    %v799 = vpack.c.b16 %v601, %v599
    %v800 = vpack.c.b16 %v604, %v602
    %v801 = vpack.c.b16 %v605, %v603
    %v802 = vpack.c.b16 %v608, %v606
    %v803 = vpack.c.b16 %v609, %v607
    %v804 = vpack.c.b16 %v612, %v610
    %v805 = vpack.c.b16 %v613, %v611
    %v806 = vpack.c.b16 %v616, %v614
    %v807 = vpack.c.b16 %v617, %v615
    %v808 = vpack.c.b16 %v620, %v618
    %v809 = vpack.c.b16 %v621, %v619
    %v810 = vpack.c.b16 %v624, %v622
    %v811 = vpack.c.b16 %v625, %v623
    %v812 = vpack.c.b16 %v628, %v626
    %v813 = vpack.c.b16 %v629, %v627
    %v814 = vpack.c.b16 %v632, %v630
    %v815 = vpack.c.b16 %v633, %v631
    %v816 = vpack.c.b16 %v636, %v634
    %v817 = vpack.c.b16 %v637, %v635
    %v818 = vpack.c.b16 %v640, %v638
    %v819 = vpack.c.b16 %v641, %v639
    %v820 = vpack.c.b16 %v644, %v642
    %v821 = vpack.c.b16 %v645, %v643
    %v822 = vpack.c.b16 %v648, %v646
    %v823 = vpack.c.b16 %v649, %v647
    %v824 = vpack.c.b16 %v652, %v650
    %v825 = vpack.c.b16 %v653, %v651
    %v826 = vpack.c.b16 %v656, %v654
    %v827 = vpack.c.b16 %v657, %v655
    %v828 = vpack.c.b16 %v660, %v658
    %v829 = vpack.c.b16 %v661, %v659
    %v830 = vpack.c.b16 %v664, %v662
    %v831 = vpack.c.b16 %v665, %v663
    %v832 = vpack.c.b16 %v668, %v666
    %v833 = vpack.c.b16 %v669, %v667
    %v834 = vpack.c.b16 %v672, %v670
    %v835 = vpack.c.b16 %v673, %v671
    %v836 = vpack.c.b16 %v676, %v674
    %v837 = vpack.c.b16 %v677, %v675
    %v838 = vpack.c.b16 %v680, %v678
    %v839 = vpack.c.b16 %v681, %v679
    %v840 = vpack.c.b16 %v684, %v682
    %v841 = vpack.c.b16 %v685, %v683
    %v842 = vpack.c.b16 %v688, %v686
    %v843 = vpack.c.b16 %v689, %v687
    %v844 = vpack.c.b16 %v692, %v690
    %v845 = vpack.c.b16 %v693, %v691
    %v846 = vpack.c.b16 %v696, %v694
    %v847 = vpack.c.b16 %v697, %v695
    %v848 = vpack.c.b16 %v700, %v698
    %v849 = vpack.c.b16 %v701, %v699
    %v850 = vpack.c.b16 %v704, %v702
    %v851 = vpack.c.b16 %v705, %v703
    %v852 = vpack.c.b16 %v708, %v706
    %v853 = vpack.c.b16 %v709, %v707
    %v854 = vpack.c.b16 %v712, %v710
    %v855 = vpack.c.b16 %v713, %v711
    %v856 = vpack.c.b16 %v716, %v714
    %v857 = vpack.c.b16 %v717, %v715
    %v858 = vpack.c.b16 %v720, %v718
    %v859 = vpack.c.b16 %v721, %v719
    %v860 = vpack.c.b16 %v724, %v722
    %v861 = vpack.c.b16 %v725, %v723
    %v862 = vpack.c.b16 %v728, %v726
    %v863 = vpack.c.b16 %v729, %v727
    %v864 = vpack.c.b16 %v732, %v730
    %v865 = vpack.c.b16 %v733, %v731
    %v866 = vpack.c.b16 %v736, %v734
    %v867 = vpack.c.b16 %v737, %v735
    %v868 = vpack.c.b16 %v740, %v738
    %v869 = vpack.c.b16 %v741, %v739
    %998 = vmatprep.subr.bf16.mxu0 %v743
    %999 = vmatpush1.bf16.msra.mxu0 %v742
    %1000 = vmatprep.subr.bf16.mxu0 %v745
    %1001 = vmatpush1.bf16.msra.mxu0 %v744
    %1002 = vmatprep.subr.bf16.mxu0 %v747
    %1003 = vmatpush1.bf16.msra.mxu0 %v746
    %1004 = vmatprep.subr.bf16.mxu0 %v749
    %1005 = vmatpush1.bf16.msra.mxu0 %v748
    %1006 = vmatprep.subr.bf16.mxu0 %v751
    %1007 = vmatpush1.bf16.msra.mxu0 %v750
    %1008 = vmatprep.subr.bf16.mxu0 %v753
    %1009 = vmatpush1.bf16.msra.mxu0 %v752
    %1010 = vmatprep.subr.bf16.mxu0 %v755
    %1011 = vmatpush1.bf16.msra.mxu0 %v754
    %1012 = vmatprep.subr.bf16.mxu0 %v757
    %1013 = vmatpush1.bf16.msra.mxu0 %v756
    %1014 = vmatprep.subr.bf16.mxu0 %v759
    %1015 = vmatpush1.bf16.msra.mxu0 %v758
    %1016 = vmatprep.subr.bf16.mxu0 %v761
    %1017 = vmatpush1.bf16.msra.mxu0 %v760
    %1018 = vmatprep.subr.bf16.mxu0 %v763
    %1019 = vmatpush1.bf16.msra.mxu0 %v762
    %1020 = vmatprep.subr.bf16.mxu0 %v765
    %1021 = vmatpush1.bf16.msra.mxu0 %v764
    %1022 = vmatprep.subr.bf16.mxu0 %v767
    %1023 = vmatpush1.bf16.msra.mxu0 %v766
    %1024 = vmatprep.subr.bf16.mxu0 %v769
    %1025 = vmatpush1.bf16.msra.mxu0 %v768
    %1026 = vmatprep.subr.bf16.mxu0 %v771
    %1027 = vmatpush1.bf16.msra.mxu0 %v770
    %1028 = vmatprep.subr.bf16.mxu0 %v773
    %1029 = vmatpush1.bf16.msra.mxu0 %v772
    %1030 = vmatprep.mubr.bf16.mxu0 %v343
    %1031 = vmatmul.mubr.bf16.gmra.mrb[0].mxu0 %v342
    %v1032 = vpop.f32.mrb[0].mxu0
    %v1033 = vadd.f32 %v311, %v1032
    %v1034 = vpop.f32.mrb[0].mxu0
    %v1035 = vadd.f32 %v315, %v1034
    %v1036 = vpop.f32.mrb[0].mxu0
    %v1037 = vadd.f32 %v311, %v1036
    %v1038 = vpop.f32.mrb[0].mxu0
    %v1039 = vadd.f32 %v315, %v1038
    %1040 = vdwg.mxu0
    %1041 = vmatprep.subr.bf16.mxu0 %v775
    %1042 = vmatpush1.bf16.msra.mxu0 %v774
    %1043 = vmatprep.subr.bf16.mxu0 %v777
    %1044 = vmatpush1.bf16.msra.mxu0 %v776
    %1045 = vmatprep.subr.bf16.mxu0 %v779
    %1046 = vmatpush1.bf16.msra.mxu0 %v778
    %1047 = vmatprep.subr.bf16.mxu0 %v781
    %1048 = vmatpush1.bf16.msra.mxu0 %v780
    %1049 = vmatprep.subr.bf16.mxu0 %v783
    %1050 = vmatpush1.bf16.msra.mxu0 %v782
    %1051 = vmatprep.subr.bf16.mxu0 %v785
    %1052 = vmatpush1.bf16.msra.mxu0 %v784
    %1053 = vmatprep.subr.bf16.mxu0 %v787
    %1054 = vmatpush1.bf16.msra.mxu0 %v786
    %1055 = vmatprep.subr.bf16.mxu0 %v789
    %1056 = vmatpush1.bf16.msra.mxu0 %v788
    %1057 = vmatprep.subr.bf16.mxu0 %v791
    %1058 = vmatpush1.bf16.msra.mxu0 %v790
    %1059 = vmatprep.subr.bf16.mxu0 %v793
    %1060 = vmatpush1.bf16.msra.mxu0 %v792
    %1061 = vmatprep.subr.bf16.mxu0 %v795
    %1062 = vmatpush1.bf16.msra.mxu0 %v794
    %1063 = vmatprep.subr.bf16.mxu0 %v797
    %1064 = vmatpush1.bf16.msra.mxu0 %v796
    %1065 = vmatprep.subr.bf16.mxu0 %v799
    %1066 = vmatpush1.bf16.msra.mxu0 %v798
    %1067 = vmatprep.subr.bf16.mxu0 %v801
    %1068 = vmatpush1.bf16.msra.mxu0 %v800
    %1069 = vmatprep.subr.bf16.mxu0 %v803
    %1070 = vmatpush1.bf16.msra.mxu0 %v802
    %1071 = vmatprep.subr.bf16.mxu0 %v805
    %1072 = vmatpush1.bf16.msra.mxu0 %v804
    %1073 = vmatprep.mubr.bf16.mxu0 %v345
    %1074 = vmatmul.mubr.bf16.gmra.mrb[0].mxu0 %v344
    %v1075 = vpop.f32.mrb[0].mxu0
    %v1076 = vadd.f32 %v1033, %v1075
    %v1077 = vpop.f32.mrb[0].mxu0
    %v1078 = vadd.f32 %v1035, %v1077
    %v1079 = vpop.f32.mrb[0].mxu0
    %v1080 = vadd.f32 %v1037, %v1079
    %v1081 = vpop.f32.mrb[0].mxu0
    %v1082 = vadd.f32 %v1039, %v1081
    %1083 = vdwg.mxu0
    %1084 = vmatprep.subr.bf16.mxu0 %v807
    %1085 = vmatpush1.bf16.msra.mxu0 %v806
    %1086 = vmatprep.subr.bf16.mxu0 %v809
    %1087 = vmatpush1.bf16.msra.mxu0 %v808
    %1088 = vmatprep.subr.bf16.mxu0 %v811
    %1089 = vmatpush1.bf16.msra.mxu0 %v810
    %1090 = vmatprep.subr.bf16.mxu0 %v813
    %1091 = vmatpush1.bf16.msra.mxu0 %v812
    %1092 = vmatprep.subr.bf16.mxu0 %v815
    %1093 = vmatpush1.bf16.msra.mxu0 %v814
    %1094 = vmatprep.subr.bf16.mxu0 %v817
    %1095 = vmatpush1.bf16.msra.mxu0 %v816
    %1096 = vmatprep.subr.bf16.mxu0 %v819
    %1097 = vmatpush1.bf16.msra.mxu0 %v818
    %1098 = vmatprep.subr.bf16.mxu0 %v821
    %1099 = vmatpush1.bf16.msra.mxu0 %v820
    %1100 = vmatprep.subr.bf16.mxu0 %v823
    %1101 = vmatpush1.bf16.msra.mxu0 %v822
    %1102 = vmatprep.subr.bf16.mxu0 %v825
    %1103 = vmatpush1.bf16.msra.mxu0 %v824
    %1104 = vmatprep.subr.bf16.mxu0 %v827
    %1105 = vmatpush1.bf16.msra.mxu0 %v826
    %1106 = vmatprep.subr.bf16.mxu0 %v829
    %1107 = vmatpush1.bf16.msra.mxu0 %v828
    %1108 = vmatprep.subr.bf16.mxu0 %v831
    %1109 = vmatpush1.bf16.msra.mxu0 %v830
    %1110 = vmatprep.subr.bf16.mxu0 %v833
    %1111 = vmatpush1.bf16.msra.mxu0 %v832
    %1112 = vmatprep.subr.bf16.mxu0 %v835
    %1113 = vmatpush1.bf16.msra.mxu0 %v834
    %1114 = vmatprep.subr.bf16.mxu0 %v837
    %1115 = vmatpush1.bf16.msra.mxu0 %v836
    %1116 = vmatprep.mubr.bf16.mxu0 %v347
    %1117 = vmatmul.mubr.bf16.gmra.mrb[0].mxu0 %v346
    %v1118 = vpop.f32.mrb[0].mxu0
    %v1119 = vadd.f32 %v1076, %v1118
    %v1120 = vpop.f32.mrb[0].mxu0
    %v1121 = vadd.f32 %v1078, %v1120
    %v1122 = vpop.f32.mrb[0].mxu0
    %v1123 = vadd.f32 %v1080, %v1122
    %v1124 = vpop.f32.mrb[0].mxu0
    %v1125 = vadd.f32 %v1082, %v1124
    %1126 = vdwg.mxu0
    %1127 = vmatprep.subr.bf16.mxu0 %v839
    %1128 = vmatpush1.bf16.msra.mxu0 %v838
    %1129 = vmatprep.subr.bf16.mxu0 %v841
    %1130 = vmatpush1.bf16.msra.mxu0 %v840
    %1131 = vmatprep.subr.bf16.mxu0 %v843
    %1132 = vmatpush1.bf16.msra.mxu0 %v842
    %1133 = vmatprep.subr.bf16.mxu0 %v845
    %1134 = vmatpush1.bf16.msra.mxu0 %v844
    %1135 = vmatprep.subr.bf16.mxu0 %v847
    %1136 = vmatpush1.bf16.msra.mxu0 %v846
    %1137 = vmatprep.subr.bf16.mxu0 %v849
    %1138 = vmatpush1.bf16.msra.mxu0 %v848
    %1139 = vmatprep.subr.bf16.mxu0 %v851
    %1140 = vmatpush1.bf16.msra.mxu0 %v850
    %1141 = vmatprep.subr.bf16.mxu0 %v853
    %1142 = vmatpush1.bf16.msra.mxu0 %v852
    %1143 = vmatprep.subr.bf16.mxu0 %v855
    %1144 = vmatpush1.bf16.msra.mxu0 %v854
    %1145 = vmatprep.subr.bf16.mxu0 %v857
    %1146 = vmatpush1.bf16.msra.mxu0 %v856
    %1147 = vmatprep.subr.bf16.mxu0 %v859
    %1148 = vmatpush1.bf16.msra.mxu0 %v858
    %1149 = vmatprep.subr.bf16.mxu0 %v861
    %1150 = vmatpush1.bf16.msra.mxu0 %v860
    %1151 = vmatprep.subr.bf16.mxu0 %v863
    %1152 = vmatpush1.bf16.msra.mxu0 %v862
    %1153 = vmatprep.subr.bf16.mxu0 %v865
    %1154 = vmatpush1.bf16.msra.mxu0 %v864
    %1155 = vmatprep.subr.bf16.mxu0 %v867
    %1156 = vmatpush1.bf16.msra.mxu0 %v866
    %1157 = vmatprep.subr.bf16.mxu0 %v869
    %1158 = vmatpush1.bf16.msra.mxu0 %v868
    %1159 = vmatprep.mubr.bf16.mxu0 %v349
    %1160 = vmatmul.mubr.bf16.gmra.mrb[0].mxu0 %v348
    %v1161 = vpop.f32.mrb[0].mxu0
    %v1162 = vadd.f32 %v1119, %v1161
    %v1163 = vpop.f32.mrb[0].mxu0
    %v1164 = vadd.f32 %v1121, %v1163
    %v1165 = vpop.f32.mrb[0].mxu0
    %v1166 = vadd.f32 %v1123, %v1165
    %v1167 = vpop.f32.mrb[0].mxu0
    %v1168 = vadd.f32 %v1125, %v1167
    %1169 = vdwg.mxu0
    %v1170 = vmax.f32 %v1162, 0.0
    %v1171 = vmax.f32 %v1164, 0.0
    %v1172 = vmax.f32 %v1166, 0.0
    %v1173 = vmax.f32 %v1168, 0.0
    %v1174 = vpack.c.bf16 %v1172, %v1170
    %v1175 = vpack.c.bf16 %v1173, %v1171
    %v1176 = vld [vmem:[%s4] sm:$0xf]
    %v1177 = vld [vmem:[%s4 + $0x4] sm:$0xf]
    %v1178 = vld [vmem:[%s4 + $0x8] sm:$0xf]
    %v1179 = vld [vmem:[%s4 + $0xc] sm:$0xf]
    %v1180 = vld [vmem:[%s4 + $0x10] sm:$0xf]
    %v1181 = vld [vmem:[%s4 + $0x14] sm:$0xf]
    %v1182 = vld [vmem:[%s4 + $0x18] sm:$0xf]
    %v1183 = vld [vmem:[%s4 + $0x1c] sm:$0xf]
    %v1184 = vld [vmem:[%s4 + $0x20] sm:$0xf]
    %v1185 = vld [vmem:[%s4 + $0x24] sm:$0xf]
    %v1186 = vld [vmem:[%s4 + $0x28] sm:$0xf]
    %v1187 = vld [vmem:[%s4 + $0x2c] sm:$0xf]
    %v1188 = vld [vmem:[%s4 + $0x30] sm:$0xf]
    %v1189 = vld [vmem:[%s4 + $0x34] sm:$0xf]
    %v1190 = vld [vmem:[%s4 + $0x38] sm:$0xf]
    %v1191 = vld [vmem:[%s4 + $0x3c] sm:$0xf]
    %v1192 = vld [vmem:[%s4 + $0x40] sm:$0xf]
    %v1193 = vld [vmem:[%s4 + $0x44] sm:$0xf]
    %v1194 = vld [vmem:[%s4 + $0x48] sm:$0xf]
    %v1195 = vld [vmem:[%s4 + $0x4c] sm:$0xf]
    %v1196 = vld [vmem:[%s4 + $0x50] sm:$0xf]
    %v1197 = vld [vmem:[%s4 + $0x54] sm:$0xf]
    %v1198 = vld [vmem:[%s4 + $0x58] sm:$0xf]
    %v1199 = vld [vmem:[%s4 + $0x5c] sm:$0xf]
    %v1200 = vld [vmem:[%s4 + $0x60] sm:$0xf]
    %v1201 = vld [vmem:[%s4 + $0x64] sm:$0xf]
    %v1202 = vld [vmem:[%s4 + $0x68] sm:$0xf]
    %v1203 = vld [vmem:[%s4 + $0x6c] sm:$0xf]
    %v1204 = vld [vmem:[%s4 + $0x70] sm:$0xf]
    %v1205 = vld [vmem:[%s4 + $0x74] sm:$0xf]
    %v1206 = vld [vmem:[%s4 + $0x78] sm:$0xf]
    %v1207 = vld [vmem:[%s4 + $0x7c] sm:$0xf]
    %v1208 = vld [vmem:[#allocation7] sm:$0x1]
    %v1210 = vlaneseq
    %v1211 = vshrl.u32 %v1210, 7
    %v1212 = vsub.s32 0, %v1211
    %v1213 = vrot.slane %v1208, %v1212
    %v1247 = vunpack.c.l.b16 %v1176
    %v1248 = vunpack.c.l.b16 %v1177
    %v1249 = vunpack.c.l.b16 %v1178
    %v1250 = vunpack.c.l.b16 %v1179
    %v1251 = vunpack.c.l.b16 %v1180
    %v1252 = vunpack.c.l.b16 %v1181
    %v1253 = vunpack.c.l.b16 %v1182
    %v1254 = vunpack.c.l.b16 %v1183
    %v1255 = vunpack.c.l.b16 %v1184
    %v1256 = vunpack.c.l.b16 %v1185
    %v1257 = vunpack.c.l.b16 %v1186
    %v1258 = vunpack.c.l.b16 %v1187
    %v1259 = vunpack.c.l.b16 %v1188
    %v1260 = vunpack.c.l.b16 %v1189
    %v1261 = vunpack.c.l.b16 %v1190
    %v1262 = vunpack.c.l.b16 %v1191
    %v1263 = vunpack.c.l.b16 %v1192
    %v1264 = vunpack.c.l.b16 %v1193
    %v1265 = vunpack.c.l.b16 %v1194
    %v1266 = vunpack.c.l.b16 %v1195
    %v1267 = vunpack.c.l.b16 %v1196
    %v1268 = vunpack.c.l.b16 %v1197
    %v1269 = vunpack.c.l.b16 %v1198
    %v1270 = vunpack.c.l.b16 %v1199
    %v1271 = vunpack.c.l.b16 %v1200
    %v1272 = vunpack.c.l.b16 %v1201
    %v1273 = vunpack.c.l.b16 %v1202
    %v1274 = vunpack.c.l.b16 %v1203
    %v1275 = vunpack.c.l.b16 %v1204
    %v1276 = vunpack.c.l.b16 %v1205
    %v1277 = vunpack.c.l.b16 %v1206
    %v1278 = vunpack.c.l.b16 %v1207
    %v1279 = vpack.c.b16 %v1248, %v1247
    %v1280 = vpack.c.b16 %v1250, %v1249
    %v1281 = vpack.c.b16 %v1252, %v1251
    %v1282 = vpack.c.b16 %v1254, %v1253
    %v1283 = vpack.c.b16 %v1256, %v1255
    %v1284 = vpack.c.b16 %v1258, %v1257
    %v1285 = vpack.c.b16 %v1260, %v1259
    %v1286 = vpack.c.b16 %v1262, %v1261
    %v1287 = vpack.c.b16 %v1264, %v1263
    %v1288 = vpack.c.b16 %v1266, %v1265
    %v1289 = vpack.c.b16 %v1268, %v1267
    %v1290 = vpack.c.b16 %v1270, %v1269
    %v1291 = vpack.c.b16 %v1272, %v1271
    %v1292 = vpack.c.b16 %v1274, %v1273
    %v1293 = vpack.c.b16 %v1276, %v1275
    %v1294 = vpack.c.b16 %v1278, %v1277
    %1311 = vmatprep.subr.bf16.mxu0 0
    %1312 = vmatpush1.bf16.msra.mxu0 %v1279
    %1313 = vmatprep.subr.bf16.mxu0 0
    %1314 = vmatpush1.bf16.msra.mxu0 %v1280
    %1315 = vmatprep.subr.bf16.mxu0 0
    %1316 = vmatpush1.bf16.msra.mxu0 %v1281
    %1317 = vmatprep.subr.bf16.mxu0 0
    %1318 = vmatpush1.bf16.msra.mxu0 %v1282
    %1319 = vmatprep.subr.bf16.mxu0 0
    %1320 = vmatpush1.bf16.msra.mxu0 %v1283
    %1321 = vmatprep.subr.bf16.mxu0 0
    %1322 = vmatpush1.bf16.msra.mxu0 %v1284
    %1323 = vmatprep.subr.bf16.mxu0 0
    %1324 = vmatpush1.bf16.msra.mxu0 %v1285
    %1325 = vmatprep.subr.bf16.mxu0 0
    %1326 = vmatpush1.bf16.msra.mxu0 %v1286
    %1327 = vmatprep.subr.bf16.mxu0 0
    %1328 = vmatpush1.bf16.msra.mxu0 %v1287
    %1329 = vmatprep.subr.bf16.mxu0 0
    %1330 = vmatpush1.bf16.msra.mxu0 %v1288
    %1331 = vmatprep.subr.bf16.mxu0 0
    %1332 = vmatpush1.bf16.msra.mxu0 %v1289
    %1333 = vmatprep.subr.bf16.mxu0 0
    %1334 = vmatpush1.bf16.msra.mxu0 %v1290
    %1335 = vmatprep.subr.bf16.mxu0 0
    %1336 = vmatpush1.bf16.msra.mxu0 %v1291
    %1337 = vmatprep.subr.bf16.mxu0 0
    %1338 = vmatpush1.bf16.msra.mxu0 %v1292
    %1339 = vmatprep.subr.bf16.mxu0 0
    %1340 = vmatpush1.bf16.msra.mxu0 %v1293
    %1341 = vmatprep.subr.bf16.mxu0 0
    %1342 = vmatpush1.bf16.msra.mxu0 %v1294
    %1343 = vmatprep.mubr.bf16.mxu0 %v1175
    %1344 = vmatmul.mubr.bf16.gmra.mrb[0].mxu0 %v1174
    %v1345 = vpop.f32.mrb[0].mxu0
    %v1346 = vadd.f32 %v1213, %v1345
    %v1347 = vpop.f32.mrb[0].mxu0
    %v1348 = vpop.f32.mrb[0].mxu0
    %v1349 = vadd.f32 %v1213, %v1348
    %v1350 = vpop.f32.mrb[0].mxu0
    %1351 = vdwg.mxu0
    %v1352 = vmax.f32 %v1346, 0.0
    %v1353 = vmax.f32 %v1349, 0.0
    %v1354 = vpack.c.bf16 %v1353, %v1352
    %v1355 = vld [vmem:[%s6] sm:$0xf]
    %v1356 = vld [vmem:[%s6 + $0x4] sm:$0xf]
    %v1357 = vld [vmem:[%s6 + $0x8] sm:$0xf]
    %v1358 = vld [vmem:[%s6 + $0xc] sm:$0xf]
    %v1359 = vld [vmem:[%s6 + $0x10] sm:$0xf]
    %v1360 = vld [vmem:[%s6 + $0x14] sm:$0xf]
    %v1361 = vld [vmem:[%s6 + $0x18] sm:$0xf]
    %v1362 = vld [vmem:[%s6 + $0x1c] sm:$0xf]
    %v1363 = vld [vmem:[%s6 + $0x20] sm:$0xf]
    %v1364 = vld [vmem:[%s6 + $0x24] sm:$0xf]
    %v1365 = vld [vmem:[%s6 + $0x28] sm:$0xf]
    %v1366 = vld [vmem:[%s6 + $0x2c] sm:$0xf]
    %v1367 = vld [vmem:[%s6 + $0x30] sm:$0xf]
    %v1368 = vld [vmem:[%s6 + $0x34] sm:$0xf]
    %v1369 = vld [vmem:[%s6 + $0x38] sm:$0xf]
    %v1370 = vld [vmem:[%s6 + $0x3c] sm:$0xf]
    %v1371 = vld [vmem:[#allocation8] sm:$0x1]
    %v1373 = vlaneseq
    %v1374 = vshrl.u32 %v1373, 7
    %v1375 = vsub.s32 0, %v1374
    %v1376 = vrot.slane %v1371, %v1375
    %v1394 = vunpack.c.l.b16 %v1355
    %v1395 = vunpack.c.l.b16 %v1356
    %v1396 = vunpack.c.l.b16 %v1357
    %v1397 = vunpack.c.l.b16 %v1358
    %v1398 = vunpack.c.l.b16 %v1359
    %v1399 = vunpack.c.l.b16 %v1360
    %v1400 = vunpack.c.l.b16 %v1361
    %v1401 = vunpack.c.l.b16 %v1362
    %v1402 = vunpack.c.l.b16 %v1363
    %v1403 = vunpack.c.l.b16 %v1364
    %v1404 = vunpack.c.l.b16 %v1365
    %v1405 = vunpack.c.l.b16 %v1366
    %v1406 = vunpack.c.l.b16 %v1367
    %v1407 = vunpack.c.l.b16 %v1368
    %v1408 = vunpack.c.l.b16 %v1369
    %v1409 = vunpack.c.l.b16 %v1370
    %v1410 = vpack.c.b16 %v1395, %v1394
    %v1411 = vpack.c.b16 %v1397, %v1396
    %v1412 = vpack.c.b16 %v1399, %v1398
    %v1413 = vpack.c.b16 %v1401, %v1400
    %v1414 = vpack.c.b16 %v1403, %v1402
    %v1415 = vpack.c.b16 %v1405, %v1404
    %v1416 = vpack.c.b16 %v1407, %v1406
    %v1417 = vpack.c.b16 %v1409, %v1408
    %1426 = vmatprep.subr.bf16.mxu0 0
    %1427 = vmatpush1.bf16.msra.mxu0 %v1410
    %1428 = vmatprep.subr.bf16.mxu0 0
    %1429 = vmatpush1.bf16.msra.mxu0 %v1411
    %1430 = vmatprep.subr.bf16.mxu0 0
    %1431 = vmatpush1.bf16.msra.mxu0 %v1412
    %1432 = vmatprep.subr.bf16.mxu0 0
    %1433 = vmatpush1.bf16.msra.mxu0 %v1413
    %1434 = vmatprep.subr.bf16.mxu0 0
    %1435 = vmatpush1.bf16.msra.mxu0 %v1414
    %1436 = vmatprep.subr.bf16.mxu0 0
    %1437 = vmatpush1.bf16.msra.mxu0 %v1415
    %1438 = vmatprep.subr.bf16.mxu0 0
    %1439 = vmatpush1.bf16.msra.mxu0 %v1416
    %1440 = vmatprep.subr.bf16.mxu0 0
    %1441 = vmatpush1.bf16.msra.mxu0 %v1417
    %1442 = vmatprep.subr.bf16.mxu0 0
    %1443 = vmatpush1.bf16.msra.mxu0 0
    %1444 = vmatprep.subr.bf16.mxu0 0
    %1445 = vmatpush1.bf16.msra.mxu0 0
    %1446 = vmatprep.subr.bf16.mxu0 0
    %1447 = vmatpush1.bf16.msra.mxu0 0
    %1448 = vmatprep.subr.bf16.mxu0 0
    %1449 = vmatpush1.bf16.msra.mxu0 0
    %1450 = vmatprep.subr.bf16.mxu0 0
    %1451 = vmatpush1.bf16.msra.mxu0 0
    %1452 = vmatprep.subr.bf16.mxu0 0
    %1453 = vmatpush1.bf16.msra.mxu0 0
    %1454 = vmatprep.subr.bf16.mxu0 0
    %1455 = vmatpush1.bf16.msra.mxu0 0
    %1456 = vmatprep.subr.bf16.mxu0 0
    %1457 = vmatpush1.bf16.msra.mxu0 0
    %1458 = vmatprep.mubr.bf16.mxu0 0
    %1459 = vmatmul.mubr.bf16.gmra.mrb[0].mxu0 %v1354
    %v1460 = vpop.f32.mrb[0].mxu0
    %v1461 = vadd.f32 %v1376, %v1460
    %v1462 = vpop.f32.mrb[0].mxu0
    %v1463 = vpop.f32.mrb[0].mxu0
    %v1464 = vadd.f32 %v1376, %v1463
    %v1465 = vpop.f32.mrb[0].mxu0
    %1466 = vdwg.mxu0
    %v1467 = vld [vmem:[%s8] sm:$0xf]
    %v1468 = vld [vmem:[%s8 + $0x4] sm:$0xf]
    %v1469 = vld [vmem:[%s8 + $0x8] sm:$0xf]
    %v1470 = vld [vmem:[%s8 + $0xc] sm:$0xf]
    %v1471 = vld [vmem:[%s8 + $0x10] sm:$0xf]
    %v1472 = vld [vmem:[%s8 + $0x14] sm:$0xf]
    %v1473 = vld [vmem:[%s8 + $0x18] sm:$0xf]
    %v1474 = vld [vmem:[%s8 + $0x1c] sm:$0xf]
    %v1475 = vld [vmem:[%s8 + $0x20] sm:$0xf]
    %v1476 = vld [vmem:[%s8 + $0x24] sm:$0xf]
    %v1477 = vld [vmem:[%s8 + $0x28] sm:$0xf]
    %v1478 = vld [vmem:[%s8 + $0x2c] sm:$0xf]
    %v1479 = vld [vmem:[%s8 + $0x30] sm:$0xf]
    %v1480 = vld [vmem:[%s8 + $0x34] sm:$0xf]
    %v1481 = vld [vmem:[%s8 + $0x38] sm:$0xf]
    %v1482 = vld [vmem:[%s8 + $0x3c] sm:$0xf]
    %v1483 = vld [vmem:[#allocation10] sm:$0x1]
    %v1485 = vlaneseq
    %v1486 = vshrl.u32 %v1485, 7
    %v1487 = vsub.s32 0, %v1486
    %v1488 = vrot.slane %v1483, %v1487
    %v1506 = vunpack.c.l.b16 %v1467
    %v1507 = vunpack.c.l.b16 %v1468
    %v1508 = vunpack.c.l.b16 %v1469
    %v1509 = vunpack.c.l.b16 %v1470
    %v1510 = vunpack.c.l.b16 %v1471
    %v1511 = vunpack.c.l.b16 %v1472
    %v1512 = vunpack.c.l.b16 %v1473
    %v1513 = vunpack.c.l.b16 %v1474
    %v1514 = vunpack.c.l.b16 %v1475
    %v1515 = vunpack.c.l.b16 %v1476
    %v1516 = vunpack.c.l.b16 %v1477
    %v1517 = vunpack.c.l.b16 %v1478
    %v1518 = vunpack.c.l.b16 %v1479
    %v1519 = vunpack.c.l.b16 %v1480
    %v1520 = vunpack.c.l.b16 %v1481
    %v1521 = vunpack.c.l.b16 %v1482
    %v1522 = vpack.c.b16 %v1507, %v1506
    %v1523 = vpack.c.b16 %v1509, %v1508
    %v1524 = vpack.c.b16 %v1511, %v1510
    %v1525 = vpack.c.b16 %v1513, %v1512
    %v1526 = vpack.c.b16 %v1515, %v1514
    %v1527 = vpack.c.b16 %v1517, %v1516
    %v1528 = vpack.c.b16 %v1519, %v1518
    %v1529 = vpack.c.b16 %v1521, %v1520
    %1538 = vmatprep.subr.bf16.mxu0 0
    %1539 = vmatpush1.bf16.msra.mxu0 %v1522
    %1540 = vmatprep.subr.bf16.mxu0 0
    %1541 = vmatpush1.bf16.msra.mxu0 %v1523
    %1542 = vmatprep.subr.bf16.mxu0 0
    %1543 = vmatpush1.bf16.msra.mxu0 %v1524
    %1544 = vmatprep.subr.bf16.mxu0 0
    %1545 = vmatpush1.bf16.msra.mxu0 %v1525
    %1546 = vmatprep.subr.bf16.mxu0 0
    %1547 = vmatpush1.bf16.msra.mxu0 %v1526
    %1548 = vmatprep.subr.bf16.mxu0 0
    %1549 = vmatpush1.bf16.msra.mxu0 %v1527
    %1550 = vmatprep.subr.bf16.mxu0 0
    %1551 = vmatpush1.bf16.msra.mxu0 %v1528
    %1552 = vmatprep.subr.bf16.mxu0 0
    %1553 = vmatpush1.bf16.msra.mxu0 %v1529
    %1554 = vmatprep.subr.bf16.mxu0 0
    %1555 = vmatpush1.bf16.msra.mxu0 0
    %1556 = vmatprep.subr.bf16.mxu0 0
    %1557 = vmatpush1.bf16.msra.mxu0 0
    %1558 = vmatprep.subr.bf16.mxu0 0
    %1559 = vmatpush1.bf16.msra.mxu0 0
    %1560 = vmatprep.subr.bf16.mxu0 0
    %1561 = vmatpush1.bf16.msra.mxu0 0
    %1562 = vmatprep.subr.bf16.mxu0 0
    %1563 = vmatpush1.bf16.msra.mxu0 0
    %1564 = vmatprep.subr.bf16.mxu0 0
    %1565 = vmatpush1.bf16.msra.mxu0 0
    %1566 = vmatprep.subr.bf16.mxu0 0
    %1567 = vmatpush1.bf16.msra.mxu0 0
    %1568 = vmatprep.subr.bf16.mxu0 0
    %1569 = vmatpush1.bf16.msra.mxu0 0
    %1570 = vmatprep.mubr.bf16.mxu0 0
    %1571 = vmatmul.mubr.bf16.gmra.mrb[0].mxu0 %v1354
    %v1572 = vpop.f32.mrb[0].mxu0
    %v1573 = vadd.f32 %v1488, %v1572
    %v1574 = vpop.f32.mrb[0].mxu0
    %v1575 = vpop.f32.mrb[0].mxu0
    %v1576 = vadd.f32 %v1488, %v1575
    %v1577 = vpop.f32.mrb[0].mxu0
    %1578 = vdwg.mxu0
    %v1579 = vmul.f32 %v1573, 1.442695
    %v1580 = vpow.pop %v1579
    %v1581 = vmul.f32 %v1576, 1.442695
    %v1582 = vpow.pop %v1581
    %v1583 = vmul.f32 %v1580, %v176
    %v1584 = vmul.f32 %v1582, %v177
    %v1585 = vadd.f32 %v1461, %v1583
    %v1586 = vadd.f32 %v1464, %v1584
    %v1587 = vpack.c.bf16 %v1586, %v1585
    %v1588 = vld [vmem:[%s10] sm:$0xf]
    %v1589 = vld [vmem:[%s10 + $0x4] sm:$0xf]
    %v1590 = vld [vmem:[%s10 + $0x8] sm:$0xf]
    %v1591 = vld [vmem:[%s10 + $0xc] sm:$0xf]
    %v1592 = vld [vmem:[%s11] sm:$0x1]
    %v1594 = vlaneseq
    %v1595 = vshrl.u32 %v1594, 7
    %v1596 = vsub.s32 0, %v1595
    %v1597 = vrot.slane %v1592, %v1596
    %v1603 = vunpack.c.l.b16 %v1588
    %v1604 = vunpack.c.l.b16 %v1589
    %v1605 = vunpack.c.l.b16 %v1590
    %v1606 = vunpack.c.l.b16 %v1591
    %v1607 = vpack.c.b16 %v1604, %v1603
    %v1608 = vpack.c.b16 %v1606, %v1605
    %vm1611 = vcmask 261120
    %v1613 = vsel %vm1611, %v1587, 0
    %1615 = vmatprep.subr.bf16.mxu0 0
    %1616 = vmatpush1.bf16.msra.mxu0 %v1607
    %1617 = vmatprep.subr.bf16.mxu0 0
    %1618 = vmatpush1.bf16.msra.mxu0 %v1608
    %1619 = vmatprep.subr.bf16.mxu0 0
    %1620 = vmatpush1.bf16.msra.mxu0 0
    %1621 = vmatprep.subr.bf16.mxu0 0
    %1622 = vmatpush1.bf16.msra.mxu0 0
    %1623 = vmatprep.subr.bf16.mxu0 0
    %1624 = vmatpush1.bf16.msra.mxu0 0
    %1625 = vmatprep.subr.bf16.mxu0 0
    %1626 = vmatpush1.bf16.msra.mxu0 0
    %1627 = vmatprep.subr.bf16.mxu0 0
    %1628 = vmatpush1.bf16.msra.mxu0 0
    %1629 = vmatprep.subr.bf16.mxu0 0
    %1630 = vmatpush1.bf16.msra.mxu0 0
    %1631 = vmatprep.subr.bf16.mxu0 0
    %1632 = vmatpush1.bf16.msra.mxu0 0
    %1633 = vmatprep.subr.bf16.mxu0 0
    %1634 = vmatpush1.bf16.msra.mxu0 0
    %1635 = vmatprep.subr.bf16.mxu0 0
    %1636 = vmatpush1.bf16.msra.mxu0 0
    %1637 = vmatprep.subr.bf16.mxu0 0
    %1638 = vmatpush1.bf16.msra.mxu0 0
    %1639 = vmatprep.subr.bf16.mxu0 0
    %1640 = vmatpush1.bf16.msra.mxu0 0
    %1641 = vmatprep.subr.bf16.mxu0 0
    %1642 = vmatpush1.bf16.msra.mxu0 0
    %1643 = vmatprep.subr.bf16.mxu0 0
    %1644 = vmatpush1.bf16.msra.mxu0 0
    %1645 = vmatprep.subr.bf16.mxu0 0
    %1646 = vmatpush1.bf16.msra.mxu0 0
    %1647 = vmatprep.mubr.bf16.mxu0 0
    %1648 = vmatmul.mubr.bf16.gmra.mrb[0].mxu0 %v1613
    %v1649 = vpop.f32.mrb[0].mxu0
    %v1650 = vadd.f32 %v1597, %v1649
    %v1651 = vpop.f32.mrb[0].mxu0
    %v1652 = vpop.f32.mrb[0].mxu0
    %v1653 = vadd.f32 %v1597, %v1652
    %v1654 = vpop.f32.mrb[0].mxu0
    %1655 = vdwg.mxu0
    %v1656 = vmax.f32 %v1650, 0.0
    %v1657 = vmax.f32 %v1653, 0.0
    %v1658 = vpack.c.bf16 %v1657, %v1656
    %v1659 = vld [vmem:[#allocation11] sm:$0xff]
    %v1660 = vld [vmem:[#allocation11 + $0x8] sm:$0xff]
    %v1661 = vld [vmem:[#allocation11 + $0x10] sm:$0xff]
    %v1662 = vld [vmem:[#allocation11 + $0x18] sm:$0xff]
    %v1663 = vld [vmem:[#allocation11 + $0x20] sm:$0xff]
    %v1664 = vld [vmem:[#allocation11 + $0x28] sm:$0xff]
    %v1665 = vld [vmem:[#allocation11 + $0x30] sm:$0xff]
    %v1666 = vld [vmem:[#allocation11 + $0x38] sm:$0xff]
    %v1667 = vld [vmem:[#allocation11 + $0x40] sm:$0xff]
    %v1668 = vld [vmem:[#allocation11 + $0x48] sm:$0xff]
    %v1669 = vld [vmem:[#allocation11 + $0x50] sm:$0xff]
    %v1670 = vld [vmem:[#allocation11 + $0x58] sm:$0xff]
    %v1671 = vld [vmem:[#allocation11 + $0x60] sm:$0xff]
    %v1672 = vld [vmem:[#allocation11 + $0x68] sm:$0xff]
    %v1673 = vld [vmem:[#allocation11 + $0x70] sm:$0xff]
    %v1674 = vld [vmem:[#allocation11 + $0x78] sm:$0xff]
    %v1675 = vld [vmem:[%s13] sm:$0x3]
    %v1677 = vlaneseq
    %v1678 = vshrl.u32 %v1677, 7
    %v1679 = vsub.s32 0, %v1678
    %v1680 = vrot.slane %v1675, %v1679
    %v1681 = vlaneseq
    %v1682 = vshrl.u32 %v1681, 7
    %v1683 = vsub.s32 1, %v1682
    %v1684 = vrot.slane %v1675, %v1683
    %v1703 = vunpack.c.l.b16 %v1659
    %v1704 = vunpack.c.h.b16 %v1659
    %v1705 = vunpack.c.l.b16 %v1660
    %v1706 = vunpack.c.h.b16 %v1660
    %v1707 = vunpack.c.l.b16 %v1661
    %v1708 = vunpack.c.h.b16 %v1661
    %v1709 = vunpack.c.l.b16 %v1662
    %v1710 = vunpack.c.h.b16 %v1662
    %v1711 = vunpack.c.l.b16 %v1663
    %v1712 = vunpack.c.h.b16 %v1663
    %v1713 = vunpack.c.l.b16 %v1664
    %v1714 = vunpack.c.h.b16 %v1664
    %v1715 = vunpack.c.l.b16 %v1665
    %v1716 = vunpack.c.h.b16 %v1665
    %v1717 = vunpack.c.l.b16 %v1666
    %v1718 = vunpack.c.h.b16 %v1666
    %v1719 = vunpack.c.l.b16 %v1667
    %v1720 = vunpack.c.h.b16 %v1667
    %v1721 = vunpack.c.l.b16 %v1668
    %v1722 = vunpack.c.h.b16 %v1668
    %v1723 = vunpack.c.l.b16 %v1669
    %v1724 = vunpack.c.h.b16 %v1669
    %v1725 = vunpack.c.l.b16 %v1670
    %v1726 = vunpack.c.h.b16 %v1670
    %v1727 = vunpack.c.l.b16 %v1671
    %v1728 = vunpack.c.h.b16 %v1671
    %v1729 = vunpack.c.l.b16 %v1672
    %v1730 = vunpack.c.h.b16 %v1672
    %v1731 = vunpack.c.l.b16 %v1673
    %v1732 = vunpack.c.h.b16 %v1673
    %v1733 = vunpack.c.l.b16 %v1674
    %v1734 = vunpack.c.h.b16 %v1674
    %v1735 = vpack.c.b16 %v1705, %v1703
    %v1736 = vpack.c.b16 %v1706, %v1704
    %v1737 = vpack.c.b16 %v1709, %v1707
    %v1738 = vpack.c.b16 %v1710, %v1708
    %v1739 = vpack.c.b16 %v1713, %v1711
    %v1740 = vpack.c.b16 %v1714, %v1712
    %v1741 = vpack.c.b16 %v1717, %v1715
    %v1742 = vpack.c.b16 %v1718, %v1716
    %v1743 = vpack.c.b16 %v1721, %v1719
    %v1744 = vpack.c.b16 %v1722, %v1720
    %v1745 = vpack.c.b16 %v1725, %v1723
    %v1746 = vpack.c.b16 %v1726, %v1724
    %v1747 = vpack.c.b16 %v1729, %v1727
    %v1748 = vpack.c.b16 %v1730, %v1728
    %v1749 = vpack.c.b16 %v1733, %v1731
    %v1750 = vpack.c.b16 %v1734, %v1732
    %1767 = vmatprep.subr.bf16.mxu0 %v1736
    %1768 = vmatpush1.bf16.msra.mxu0 %v1735
    %1769 = vmatprep.subr.bf16.mxu0 %v1738
    %1770 = vmatpush1.bf16.msra.mxu0 %v1737
    %1771 = vmatprep.subr.bf16.mxu0 %v1740
    %1772 = vmatpush1.bf16.msra.mxu0 %v1739
    %1773 = vmatprep.subr.bf16.mxu0 %v1742
    %1774 = vmatpush1.bf16.msra.mxu0 %v1741
    %1775 = vmatprep.subr.bf16.mxu0 %v1744
    %1776 = vmatpush1.bf16.msra.mxu0 %v1743
    %1777 = vmatprep.subr.bf16.mxu0 %v1746
    %1778 = vmatpush1.bf16.msra.mxu0 %v1745
    %1779 = vmatprep.subr.bf16.mxu0 %v1748
    %1780 = vmatpush1.bf16.msra.mxu0 %v1747
    %1781 = vmatprep.subr.bf16.mxu0 %v1750
    %1782 = vmatpush1.bf16.msra.mxu0 %v1749
    %1783 = vmatprep.subr.bf16.mxu0 0
    %1784 = vmatpush1.bf16.msra.mxu0 0
    %1785 = vmatprep.subr.bf16.mxu0 0
    %1786 = vmatpush1.bf16.msra.mxu0 0
    %1787 = vmatprep.subr.bf16.mxu0 0
    %1788 = vmatpush1.bf16.msra.mxu0 0
    %1789 = vmatprep.subr.bf16.mxu0 0
    %1790 = vmatpush1.bf16.msra.mxu0 0
    %1791 = vmatprep.subr.bf16.mxu0 0
    %1792 = vmatpush1.bf16.msra.mxu0 0
    %1793 = vmatprep.subr.bf16.mxu0 0
    %1794 = vmatpush1.bf16.msra.mxu0 0
    %1795 = vmatprep.subr.bf16.mxu0 0
    %1796 = vmatpush1.bf16.msra.mxu0 0
    %1797 = vmatprep.subr.bf16.mxu0 0
    %1798 = vmatpush1.bf16.msra.mxu0 0
    %1799 = vmatprep.mubr.bf16.mxu0 0
    %1800 = vmatmul.mubr.bf16.gmra.mrb[0].mxu0 %v1658
    %v1801 = vpop.f32.mrb[0].mxu0
    %v1802 = vadd.f32 %v1680, %v1801
    %v1803 = vpop.f32.mrb[0].mxu0
    %v1804 = vadd.f32 %v1684, %v1803
    %v1805 = vpop.f32.mrb[0].mxu0
    %v1806 = vadd.f32 %v1680, %v1805
    %v1807 = vpop.f32.mrb[0].mxu0
    %v1808 = vadd.f32 %v1684, %v1807
    %1809 = vdwg.mxu0
    %v1810 = vmax.f32 %v1802, 0.0
    %v1811 = vmax.f32 %v1804, 0.0
    %v1812 = vmax.f32 %v1806, 0.0
    %v1813 = vmax.f32 %v1808, 0.0
    %v1814 = vpack.c.bf16 %v1812, %v1810
    %v1815 = vpack.c.bf16 %v1813, %v1811
    %v1816 = vld [vmem:[#allocation13] sm:$0xff]
    %v1817 = vld [vmem:[#allocation13 + $0x8] sm:$0xff]
    %v1818 = vld [vmem:[#allocation13 + $0x10] sm:$0xff]
    %v1819 = vld [vmem:[#allocation13 + $0x18] sm:$0xff]
    %v1820 = vld [vmem:[#allocation13 + $0x20] sm:$0xff]
    %v1821 = vld [vmem:[#allocation13 + $0x28] sm:$0xff]
    %v1822 = vld [vmem:[#allocation13 + $0x30] sm:$0xff]
    %v1823 = vld [vmem:[#allocation13 + $0x38] sm:$0xff]
    %v1824 = vld [vmem:[#allocation13 + $0x40] sm:$0xff]
    %v1825 = vld [vmem:[#allocation13 + $0x48] sm:$0xff]
    %v1826 = vld [vmem:[#allocation13 + $0x50] sm:$0xff]
    %v1827 = vld [vmem:[#allocation13 + $0x58] sm:$0xff]
    %v1828 = vld [vmem:[#allocation13 + $0x60] sm:$0xff]
    %v1829 = vld [vmem:[#allocation13 + $0x68] sm:$0xff]
    %v1830 = vld [vmem:[#allocation13 + $0x70] sm:$0xff]
    %v1831 = vld [vmem:[#allocation13 + $0x78] sm:$0xff]
    %v1832 = vld [vmem:[#allocation13 + $0x80] sm:$0xff]
    %v1833 = vld [vmem:[#allocation13 + $0x88] sm:$0xff]
    %v1834 = vld [vmem:[#allocation13 + $0x90] sm:$0xff]
    %v1835 = vld [vmem:[#allocation13 + $0x98] sm:$0xff]
    %v1836 = vld [vmem:[#allocation13 + $0xa0] sm:$0xff]
    %v1837 = vld [vmem:[#allocation13 + $0xa8] sm:$0xff]
    %v1838 = vld [vmem:[#allocation13 + $0xb0] sm:$0xff]
    %v1839 = vld [vmem:[#allocation13 + $0xb8] sm:$0xff]
    %v1840 = vld [vmem:[#allocation13 + $0xc0] sm:$0xff]
    %v1841 = vld [vmem:[#allocation13 + $0xc8] sm:$0xff]
    %v1842 = vld [vmem:[#allocation13 + $0xd0] sm:$0xff]
    %v1843 = vld [vmem:[#allocation13 + $0xd8] sm:$0xff]
    %v1844 = vld [vmem:[#allocation13 + $0xe0] sm:$0xff]
    %v1845 = vld [vmem:[#allocation13 + $0xe8] sm:$0xff]
    %v1846 = vld [vmem:[#allocation13 + $0xf0] sm:$0xff]
    %v1847 = vld [vmem:[#allocation13 + $0xf8] sm:$0xff]
    %v1848 = vld [vmem:[#allocation13 + $0x100] sm:$0xff]
    %v1849 = vld [vmem:[#allocation13 + $0x108] sm:$0xff]
    %v1850 = vld [vmem:[#allocation13 + $0x110] sm:$0xff]
    %v1851 = vld [vmem:[#allocation13 + $0x118] sm:$0xff]
    %v1852 = vld [vmem:[#allocation13 + $0x120] sm:$0xff]
    %v1853 = vld [vmem:[#allocation13 + $0x128] sm:$0xff]
    %v1854 = vld [vmem:[#allocation13 + $0x130] sm:$0xff]
    %v1855 = vld [vmem:[#allocation13 + $0x138] sm:$0xff]
    %v1856 = vld [vmem:[#allocation13 + $0x140] sm:$0xff]
    %v1857 = vld [vmem:[#allocation13 + $0x148] sm:$0xff]
    %v1858 = vld [vmem:[#allocation13 + $0x150] sm:$0xff]
    %v1859 = vld [vmem:[#allocation13 + $0x158] sm:$0xff]
    %v1860 = vld [vmem:[#allocation13 + $0x160] sm:$0xff]
    %v1861 = vld [vmem:[#allocation13 + $0x168] sm:$0xff]
    %v1862 = vld [vmem:[#allocation13 + $0x170] sm:$0xff]
    %v1863 = vld [vmem:[#allocation13 + $0x178] sm:$0xff]
    %v1864 = vld [vmem:[#allocation13 + $0x180] sm:$0xff]
    %v1865 = vld [vmem:[#allocation13 + $0x188] sm:$0xff]
    %v1866 = vld [vmem:[#allocation13 + $0x190] sm:$0xff]
    %v1867 = vld [vmem:[#allocation13 + $0x198] sm:$0xff]
    %v1868 = vld [vmem:[#allocation13 + $0x1a0] sm:$0xff]
    %v1869 = vld [vmem:[#allocation13 + $0x1a8] sm:$0xff]
    %v1870 = vld [vmem:[#allocation13 + $0x1b0] sm:$0xff]
    %v1871 = vld [vmem:[#allocation13 + $0x1b8] sm:$0xff]
    %v1872 = vld [vmem:[#allocation13 + $0x1c0] sm:$0xff]
    %v1873 = vld [vmem:[#allocation13 + $0x1c8] sm:$0xff]
    %v1874 = vld [vmem:[#allocation13 + $0x1d0] sm:$0xff]
    %v1875 = vld [vmem:[#allocation13 + $0x1d8] sm:$0xff]
    %v1876 = vld [vmem:[#allocation13 + $0x1e0] sm:$0xff]
    %v1877 = vld [vmem:[#allocation13 + $0x1e8] sm:$0xff]
    %v1878 = vld [vmem:[#allocation13 + $0x1f0] sm:$0xff]
    %v1879 = vld [vmem:[#allocation13 + $0x1f8] sm:$0xff]
    %v1880 = vld [vmem:[#allocation13 + $0x200] sm:$0xff]
    %v1881 = vld [vmem:[#allocation13 + $0x208] sm:$0xff]
    %v1882 = vld [vmem:[#allocation13 + $0x210] sm:$0xff]
    %v1883 = vld [vmem:[#allocation13 + $0x218] sm:$0xff]
    %v1884 = vld [vmem:[#allocation13 + $0x220] sm:$0xff]
    %v1885 = vld [vmem:[#allocation13 + $0x228] sm:$0xff]
    %v1886 = vld [vmem:[#allocation13 + $0x230] sm:$0xff]
    %v1887 = vld [vmem:[#allocation13 + $0x238] sm:$0xff]
    %v1888 = vld [vmem:[#allocation13 + $0x240] sm:$0xff]
    %v1889 = vld [vmem:[#allocation13 + $0x248] sm:$0xff]
    %v1890 = vld [vmem:[#allocation13 + $0x250] sm:$0xff]
    %v1891 = vld [vmem:[#allocation13 + $0x258] sm:$0xff]
    %v1892 = vld [vmem:[#allocation13 + $0x260] sm:$0xff]
    %v1893 = vld [vmem:[#allocation13 + $0x268] sm:$0xff]
    %v1894 = vld [vmem:[#allocation13 + $0x270] sm:$0xff]
    %v1895 = vld [vmem:[#allocation13 + $0x278] sm:$0xff]
    %v1896 = vld [vmem:[#allocation13 + $0x280] sm:$0xff]
    %v1897 = vld [vmem:[#allocation13 + $0x288] sm:$0xff]
    %v1898 = vld [vmem:[#allocation13 + $0x290] sm:$0xff]
    %v1899 = vld [vmem:[#allocation13 + $0x298] sm:$0xff]
    %v1900 = vld [vmem:[#allocation13 + $0x2a0] sm:$0xff]
    %v1901 = vld [vmem:[#allocation13 + $0x2a8] sm:$0xff]
    %v1902 = vld [vmem:[#allocation13 + $0x2b0] sm:$0xff]
    %v1903 = vld [vmem:[#allocation13 + $0x2b8] sm:$0xff]
    %v1904 = vld [vmem:[#allocation13 + $0x2c0] sm:$0xff]
    %v1905 = vld [vmem:[#allocation13 + $0x2c8] sm:$0xff]
    %v1906 = vld [vmem:[#allocation13 + $0x2d0] sm:$0xff]
    %v1907 = vld [vmem:[#allocation13 + $0x2d8] sm:$0xff]
    %v1908 = vld [vmem:[#allocation13 + $0x2e0] sm:$0xff]
    %v1909 = vld [vmem:[#allocation13 + $0x2e8] sm:$0xff]
    %v1910 = vld [vmem:[#allocation13 + $0x2f0] sm:$0xff]
    %v1911 = vld [vmem:[#allocation13 + $0x2f8] sm:$0xff]
    %v1912 = vld [vmem:[#allocation13 + $0x300] sm:$0xff]
    %v1913 = vld [vmem:[#allocation13 + $0x308] sm:$0xff]
    %v1914 = vld [vmem:[#allocation13 + $0x310] sm:$0xff]
    %v1915 = vld [vmem:[#allocation13 + $0x318] sm:$0xff]
    %v1916 = vld [vmem:[#allocation13 + $0x320] sm:$0xff]
    %v1917 = vld [vmem:[#allocation13 + $0x328] sm:$0xff]
    %v1918 = vld [vmem:[#allocation13 + $0x330] sm:$0xff]
    %v1919 = vld [vmem:[#allocation13 + $0x338] sm:$0xff]
    %v1920 = vld [vmem:[#allocation13 + $0x340] sm:$0xff]
    %v1921 = vld [vmem:[#allocation13 + $0x348] sm:$0xff]
    %v1922 = vld [vmem:[#allocation13 + $0x350] sm:$0xff]
    %v1923 = vld [vmem:[#allocation13 + $0x358] sm:$0xff]
    %v1924 = vld [vmem:[#allocation13 + $0x360] sm:$0xff]
    %v1925 = vld [vmem:[#allocation13 + $0x368] sm:$0xff]
    %v1926 = vld [vmem:[#allocation13 + $0x370] sm:$0xff]
    %v1927 = vld [vmem:[#allocation13 + $0x378] sm:$0xff]
    %v1928 = vld [vmem:[#allocation13 + $0x380] sm:$0xff]
    %v1929 = vld [vmem:[#allocation13 + $0x388] sm:$0xff]
    %v1930 = vld [vmem:[#allocation13 + $0x390] sm:$0xff]
    %v1931 = vld [vmem:[#allocation13 + $0x398] sm:$0xff]
    %v1932 = vld [vmem:[#allocation13 + $0x3a0] sm:$0xff]
    %v1933 = vld [vmem:[#allocation13 + $0x3a8] sm:$0xff]
    %v1934 = vld [vmem:[#allocation13 + $0x3b0] sm:$0xff]
    %v1935 = vld [vmem:[#allocation13 + $0x3b8] sm:$0xff]
    %v1936 = vld [vmem:[#allocation13 + $0x3c0] sm:$0xff]
    %v1937 = vld [vmem:[#allocation13 + $0x3c8] sm:$0xff]
    %v1938 = vld [vmem:[#allocation13 + $0x3d0] sm:$0xff]
    %v1939 = vld [vmem:[#allocation13 + $0x3d8] sm:$0xff]
    %v1940 = vld [vmem:[#allocation13 + $0x3e0] sm:$0xff]
    %v1941 = vld [vmem:[#allocation13 + $0x3e8] sm:$0xff]
    %v1942 = vld [vmem:[#allocation13 + $0x3f0] sm:$0xff]
    %v1943 = vld [vmem:[#allocation13 + $0x3f8] sm:$0xff]
    %v1944 = vld [vmem:[%s15] sm:$0xff]
    %v1946 = vlaneseq
    %v1947 = vshrl.u32 %v1946, 7
    %v1948 = vsub.s32 0, %v1947
    %v1949 = vrot.slane %v1944, %v1948
    %v1950 = vlaneseq
    %v1951 = vshrl.u32 %v1950, 7
    %v1952 = vsub.s32 1, %v1951
    %v1953 = vrot.slane %v1944, %v1952
    %v1954 = vlaneseq
    %v1955 = vshrl.u32 %v1954, 7
    %v1956 = vsub.s32 2, %v1955
    %v1957 = vrot.slane %v1944, %v1956
    %v1958 = vlaneseq
    %v1959 = vshrl.u32 %v1958, 7
    %v1960 = vsub.s32 3, %v1959
    %v1961 = vrot.slane %v1944, %v1960
    %v1962 = vlaneseq
    %v1963 = vshrl.u32 %v1962, 7
    %v1964 = vsub.s32 4, %v1963
    %v1965 = vrot.slane %v1944, %v1964
    %v1966 = vlaneseq
    %v1967 = vshrl.u32 %v1966, 7
    %v1968 = vsub.s32 5, %v1967
    %v1969 = vrot.slane %v1944, %v1968
    %v1970 = vlaneseq
    %v1971 = vshrl.u32 %v1970, 7
    %v1972 = vsub.s32 6, %v1971
    %v1973 = vrot.slane %v1944, %v1972
    %v1974 = vlaneseq
    %v1975 = vshrl.u32 %v1974, 7
    %v1976 = vsub.s32 7, %v1975
    %v1977 = vrot.slane %v1944, %v1976
    %v2114 = vunpack.c.l.b16 %v1816
    %v2115 = vunpack.c.h.b16 %v1816
    %v2116 = vunpack.c.l.b16 %v1817
    %v2117 = vunpack.c.h.b16 %v1817
    %v2118 = vunpack.c.l.b16 %v1818
    %v2119 = vunpack.c.h.b16 %v1818
    %v2120 = vunpack.c.l.b16 %v1819
    %v2121 = vunpack.c.h.b16 %v1819
    %v2122 = vunpack.c.l.b16 %v1820
    %v2123 = vunpack.c.h.b16 %v1820
    %v2124 = vunpack.c.l.b16 %v1821
    %v2125 = vunpack.c.h.b16 %v1821
    %v2126 = vunpack.c.l.b16 %v1822
    %v2127 = vunpack.c.h.b16 %v1822
    %v2128 = vunpack.c.l.b16 %v1823
    %v2129 = vunpack.c.h.b16 %v1823
    %v2130 = vunpack.c.l.b16 %v1824
    %v2131 = vunpack.c.h.b16 %v1824
    %v2132 = vunpack.c.l.b16 %v1825
    %v2133 = vunpack.c.h.b16 %v1825
    %v2134 = vunpack.c.l.b16 %v1826
    %v2135 = vunpack.c.h.b16 %v1826
    %v2136 = vunpack.c.l.b16 %v1827
    %v2137 = vunpack.c.h.b16 %v1827
    %v2138 = vunpack.c.l.b16 %v1828
    %v2139 = vunpack.c.h.b16 %v1828
    %v2140 = vunpack.c.l.b16 %v1829
    %v2141 = vunpack.c.h.b16 %v1829
    %v2142 = vunpack.c.l.b16 %v1830
    %v2143 = vunpack.c.h.b16 %v1830
    %v2144 = vunpack.c.l.b16 %v1831
    %v2145 = vunpack.c.h.b16 %v1831
    %v2146 = vunpack.c.l.b16 %v1832
    %v2147 = vunpack.c.h.b16 %v1832
    %v2148 = vunpack.c.l.b16 %v1833
    %v2149 = vunpack.c.h.b16 %v1833
    %v2150 = vunpack.c.l.b16 %v1834
    %v2151 = vunpack.c.h.b16 %v1834
    %v2152 = vunpack.c.l.b16 %v1835
    %v2153 = vunpack.c.h.b16 %v1835
    %v2154 = vunpack.c.l.b16 %v1836
    %v2155 = vunpack.c.h.b16 %v1836
    %v2156 = vunpack.c.l.b16 %v1837
    %v2157 = vunpack.c.h.b16 %v1837
    %v2158 = vunpack.c.l.b16 %v1838
    %v2159 = vunpack.c.h.b16 %v1838
    %v2160 = vunpack.c.l.b16 %v1839
    %v2161 = vunpack.c.h.b16 %v1839
    %v2162 = vunpack.c.l.b16 %v1840
    %v2163 = vunpack.c.h.b16 %v1840
    %v2164 = vunpack.c.l.b16 %v1841
    %v2165 = vunpack.c.h.b16 %v1841
    %v2166 = vunpack.c.l.b16 %v1842
    %v2167 = vunpack.c.h.b16 %v1842
    %v2168 = vunpack.c.l.b16 %v1843
    %v2169 = vunpack.c.h.b16 %v1843
    %v2170 = vunpack.c.l.b16 %v1844
    %v2171 = vunpack.c.h.b16 %v1844
    %v2172 = vunpack.c.l.b16 %v1845
    %v2173 = vunpack.c.h.b16 %v1845
    %v2174 = vunpack.c.l.b16 %v1846
    %v2175 = vunpack.c.h.b16 %v1846
    %v2176 = vunpack.c.l.b16 %v1847
    %v2177 = vunpack.c.h.b16 %v1847
    %v2178 = vunpack.c.l.b16 %v1848
    %v2179 = vunpack.c.h.b16 %v1848
    %v2180 = vunpack.c.l.b16 %v1849
    %v2181 = vunpack.c.h.b16 %v1849
    %v2182 = vunpack.c.l.b16 %v1850
    %v2183 = vunpack.c.h.b16 %v1850
    %v2184 = vunpack.c.l.b16 %v1851
    %v2185 = vunpack.c.h.b16 %v1851
    %v2186 = vunpack.c.l.b16 %v1852
    %v2187 = vunpack.c.h.b16 %v1852
    %v2188 = vunpack.c.l.b16 %v1853
    %v2189 = vunpack.c.h.b16 %v1853
    %v2190 = vunpack.c.l.b16 %v1854
    %v2191 = vunpack.c.h.b16 %v1854
    %v2192 = vunpack.c.l.b16 %v1855
    %v2193 = vunpack.c.h.b16 %v1855
    %v2194 = vunpack.c.l.b16 %v1856
    %v2195 = vunpack.c.h.b16 %v1856
    %v2196 = vunpack.c.l.b16 %v1857
    %v2197 = vunpack.c.h.b16 %v1857
    %v2198 = vunpack.c.l.b16 %v1858
    %v2199 = vunpack.c.h.b16 %v1858
    %v2200 = vunpack.c.l.b16 %v1859
    %v2201 = vunpack.c.h.b16 %v1859
    %v2202 = vunpack.c.l.b16 %v1860
    %v2203 = vunpack.c.h.b16 %v1860
    %v2204 = vunpack.c.l.b16 %v1861
    %v2205 = vunpack.c.h.b16 %v1861
    %v2206 = vunpack.c.l.b16 %v1862
    %v2207 = vunpack.c.h.b16 %v1862
    %v2208 = vunpack.c.l.b16 %v1863
    %v2209 = vunpack.c.h.b16 %v1863
    %v2210 = vunpack.c.l.b16 %v1864
    %v2211 = vunpack.c.h.b16 %v1864
    %v2212 = vunpack.c.l.b16 %v1865
    %v2213 = vunpack.c.h.b16 %v1865
    %v2214 = vunpack.c.l.b16 %v1866
    %v2215 = vunpack.c.h.b16 %v1866
    %v2216 = vunpack.c.l.b16 %v1867
    %v2217 = vunpack.c.h.b16 %v1867
    %v2218 = vunpack.c.l.b16 %v1868
    %v2219 = vunpack.c.h.b16 %v1868
    %v2220 = vunpack.c.l.b16 %v1869
    %v2221 = vunpack.c.h.b16 %v1869
    %v2222 = vunpack.c.l.b16 %v1870
    %v2223 = vunpack.c.h.b16 %v1870
    %v2224 = vunpack.c.l.b16 %v1871
    %v2225 = vunpack.c.h.b16 %v1871
    %v2226 = vunpack.c.l.b16 %v1872
    %v2227 = vunpack.c.h.b16 %v1872
    %v2228 = vunpack.c.l.b16 %v1873
    %v2229 = vunpack.c.h.b16 %v1873
    %v2230 = vunpack.c.l.b16 %v1874
    %v2231 = vunpack.c.h.b16 %v1874
    %v2232 = vunpack.c.l.b16 %v1875
    %v2233 = vunpack.c.h.b16 %v1875
    %v2234 = vunpack.c.l.b16 %v1876
    %v2235 = vunpack.c.h.b16 %v1876
    %v2236 = vunpack.c.l.b16 %v1877
    %v2237 = vunpack.c.h.b16 %v1877
    %v2238 = vunpack.c.l.b16 %v1878
    %v2239 = vunpack.c.h.b16 %v1878
    %v2240 = vunpack.c.l.b16 %v1879
    %v2241 = vunpack.c.h.b16 %v1879
    %v2242 = vunpack.c.l.b16 %v1880
    %v2243 = vunpack.c.h.b16 %v1880
    %v2244 = vunpack.c.l.b16 %v1881
    %v2245 = vunpack.c.h.b16 %v1881
    %v2246 = vunpack.c.l.b16 %v1882
    %v2247 = vunpack.c.h.b16 %v1882
    %v2248 = vunpack.c.l.b16 %v1883
    %v2249 = vunpack.c.h.b16 %v1883
    %v2250 = vunpack.c.l.b16 %v1884
    %v2251 = vunpack.c.h.b16 %v1884
    %v2252 = vunpack.c.l.b16 %v1885
    %v2253 = vunpack.c.h.b16 %v1885
    %v2254 = vunpack.c.l.b16 %v1886
    %v2255 = vunpack.c.h.b16 %v1886
    %v2256 = vunpack.c.l.b16 %v1887
    %v2257 = vunpack.c.h.b16 %v1887
    %v2258 = vunpack.c.l.b16 %v1888
    %v2259 = vunpack.c.h.b16 %v1888
    %v2260 = vunpack.c.l.b16 %v1889
    %v2261 = vunpack.c.h.b16 %v1889
    %v2262 = vunpack.c.l.b16 %v1890
    %v2263 = vunpack.c.h.b16 %v1890
    %v2264 = vunpack.c.l.b16 %v1891
    %v2265 = vunpack.c.h.b16 %v1891
    %v2266 = vunpack.c.l.b16 %v1892
    %v2267 = vunpack.c.h.b16 %v1892
    %v2268 = vunpack.c.l.b16 %v1893
    %v2269 = vunpack.c.h.b16 %v1893
    %v2270 = vunpack.c.l.b16 %v1894
    %v2271 = vunpack.c.h.b16 %v1894
    %v2272 = vunpack.c.l.b16 %v1895
    %v2273 = vunpack.c.h.b16 %v1895
    %v2274 = vunpack.c.l.b16 %v1896
    %v2275 = vunpack.c.h.b16 %v1896
    %v2276 = vunpack.c.l.b16 %v1897
    %v2277 = vunpack.c.h.b16 %v1897
    %v2278 = vunpack.c.l.b16 %v1898
    %v2279 = vunpack.c.h.b16 %v1898
    %v2280 = vunpack.c.l.b16 %v1899
    %v2281 = vunpack.c.h.b16 %v1899
    %v2282 = vunpack.c.l.b16 %v1900
    %v2283 = vunpack.c.h.b16 %v1900
    %v2284 = vunpack.c.l.b16 %v1901
    %v2285 = vunpack.c.h.b16 %v1901
    %v2286 = vunpack.c.l.b16 %v1902
    %v2287 = vunpack.c.h.b16 %v1902
    %v2288 = vunpack.c.l.b16 %v1903
    %v2289 = vunpack.c.h.b16 %v1903
    %v2290 = vunpack.c.l.b16 %v1904
    %v2291 = vunpack.c.h.b16 %v1904
    %v2292 = vunpack.c.l.b16 %v1905
    %v2293 = vunpack.c.h.b16 %v1905
    %v2294 = vunpack.c.l.b16 %v1906
    %v2295 = vunpack.c.h.b16 %v1906
    %v2296 = vunpack.c.l.b16 %v1907
    %v2297 = vunpack.c.h.b16 %v1907
    %v2298 = vunpack.c.l.b16 %v1908
    %v2299 = vunpack.c.h.b16 %v1908
    %v2300 = vunpack.c.l.b16 %v1909
    %v2301 = vunpack.c.h.b16 %v1909
    %v2302 = vunpack.c.l.b16 %v1910
    %v2303 = vunpack.c.h.b16 %v1910
    %v2304 = vunpack.c.l.b16 %v1911
    %v2305 = vunpack.c.h.b16 %v1911
    %v2306 = vunpack.c.l.b16 %v1912
    %v2307 = vunpack.c.h.b16 %v1912
    %v2308 = vunpack.c.l.b16 %v1913
    %v2309 = vunpack.c.h.b16 %v1913
    %v2310 = vunpack.c.l.b16 %v1914
    %v2311 = vunpack.c.h.b16 %v1914
    %v2312 = vunpack.c.l.b16 %v1915
    %v2313 = vunpack.c.h.b16 %v1915
    %v2314 = vunpack.c.l.b16 %v1916
    %v2315 = vunpack.c.h.b16 %v1916
    %v2316 = vunpack.c.l.b16 %v1917
    %v2317 = vunpack.c.h.b16 %v1917
    %v2318 = vunpack.c.l.b16 %v1918
    %v2319 = vunpack.c.h.b16 %v1918
    %v2320 = vunpack.c.l.b16 %v1919
    %v2321 = vunpack.c.h.b16 %v1919
    %v2322 = vunpack.c.l.b16 %v1920
    %v2323 = vunpack.c.h.b16 %v1920
    %v2324 = vunpack.c.l.b16 %v1921
    %v2325 = vunpack.c.h.b16 %v1921
    %v2326 = vunpack.c.l.b16 %v1922
    %v2327 = vunpack.c.h.b16 %v1922
    %v2328 = vunpack.c.l.b16 %v1923
    %v2329 = vunpack.c.h.b16 %v1923
    %v2330 = vunpack.c.l.b16 %v1924
    %v2331 = vunpack.c.h.b16 %v1924
    %v2332 = vunpack.c.l.b16 %v1925
    %v2333 = vunpack.c.h.b16 %v1925
    %v2334 = vunpack.c.l.b16 %v1926
    %v2335 = vunpack.c.h.b16 %v1926
    %v2336 = vunpack.c.l.b16 %v1927
    %v2337 = vunpack.c.h.b16 %v1927
    %v2338 = vunpack.c.l.b16 %v1928
    %v2339 = vunpack.c.h.b16 %v1928
    %v2340 = vunpack.c.l.b16 %v1929
    %v2341 = vunpack.c.h.b16 %v1929
    %v2342 = vunpack.c.l.b16 %v1930
    %v2343 = vunpack.c.h.b16 %v1930
    %v2344 = vunpack.c.l.b16 %v1931
    %v2345 = vunpack.c.h.b16 %v1931
    %v2346 = vunpack.c.l.b16 %v1932
    %v2347 = vunpack.c.h.b16 %v1932
    %v2348 = vunpack.c.l.b16 %v1933
    %v2349 = vunpack.c.h.b16 %v1933
    %v2350 = vunpack.c.l.b16 %v1934
    %v2351 = vunpack.c.h.b16 %v1934
    %v2352 = vunpack.c.l.b16 %v1935
    %v2353 = vunpack.c.h.b16 %v1935
    %v2354 = vunpack.c.l.b16 %v1936
    %v2355 = vunpack.c.h.b16 %v1936
    %v2356 = vunpack.c.l.b16 %v1937
    %v2357 = vunpack.c.h.b16 %v1937
    %v2358 = vunpack.c.l.b16 %v1938
    %v2359 = vunpack.c.h.b16 %v1938
    %v2360 = vunpack.c.l.b16 %v1939
    %v2361 = vunpack.c.h.b16 %v1939
    %v2362 = vunpack.c.l.b16 %v1940
    %v2363 = vunpack.c.h.b16 %v1940
    %v2364 = vunpack.c.l.b16 %v1941
    %v2365 = vunpack.c.h.b16 %v1941
    %v2366 = vunpack.c.l.b16 %v1942
    %v2367 = vunpack.c.h.b16 %v1942
    %v2368 = vunpack.c.l.b16 %v1943
    %v2369 = vunpack.c.h.b16 %v1943
    %v2370 = vpack.c.b16 %v2122, %v2114
    %v2371 = vpack.c.b16 %v2123, %v2115
    %v2372 = vpack.c.b16 %v2124, %v2116
    %v2373 = vpack.c.b16 %v2125, %v2117
    %v2374 = vpack.c.b16 %v2126, %v2118
    %v2375 = vpack.c.b16 %v2127, %v2119
    %v2376 = vpack.c.b16 %v2128, %v2120
    %v2377 = vpack.c.b16 %v2129, %v2121
    %v2378 = vpack.c.b16 %v2138, %v2130
    %v2379 = vpack.c.b16 %v2139, %v2131
    %v2380 = vpack.c.b16 %v2140, %v2132
    %v2381 = vpack.c.b16 %v2141, %v2133
    %v2382 = vpack.c.b16 %v2142, %v2134
    %v2383 = vpack.c.b16 %v2143, %v2135
    %v2384 = vpack.c.b16 %v2144, %v2136
    %v2385 = vpack.c.b16 %v2145, %v2137
    %v2386 = vpack.c.b16 %v2154, %v2146
    %v2387 = vpack.c.b16 %v2155, %v2147
    %v2388 = vpack.c.b16 %v2156, %v2148
    %v2389 = vpack.c.b16 %v2157, %v2149
    %v2390 = vpack.c.b16 %v2158, %v2150
    %v2391 = vpack.c.b16 %v2159, %v2151
    %v2392 = vpack.c.b16 %v2160, %v2152
    %v2393 = vpack.c.b16 %v2161, %v2153
    %v2394 = vpack.c.b16 %v2170, %v2162
    %v2395 = vpack.c.b16 %v2171, %v2163
    %v2396 = vpack.c.b16 %v2172, %v2164
    %v2397 = vpack.c.b16 %v2173, %v2165
    %v2398 = vpack.c.b16 %v2174, %v2166
    %v2399 = vpack.c.b16 %v2175, %v2167
    %v2400 = vpack.c.b16 %v2176, %v2168
    %v2401 = vpack.c.b16 %v2177, %v2169
    %v2402 = vpack.c.b16 %v2186, %v2178
    %v2403 = vpack.c.b16 %v2187, %v2179
    %v2404 = vpack.c.b16 %v2188, %v2180
    %v2405 = vpack.c.b16 %v2189, %v2181
    %v2406 = vpack.c.b16 %v2190, %v2182
    %v2407 = vpack.c.b16 %v2191, %v2183
    %v2408 = vpack.c.b16 %v2192, %v2184
    %v2409 = vpack.c.b16 %v2193, %v2185
    %v2410 = vpack.c.b16 %v2202, %v2194
    %v2411 = vpack.c.b16 %v2203, %v2195
    %v2412 = vpack.c.b16 %v2204, %v2196
    %v2413 = vpack.c.b16 %v2205, %v2197
    %v2414 = vpack.c.b16 %v2206, %v2198
    %v2415 = vpack.c.b16 %v2207, %v2199
    %v2416 = vpack.c.b16 %v2208, %v2200
    %v2417 = vpack.c.b16 %v2209, %v2201
    %v2418 = vpack.c.b16 %v2218, %v2210
    %v2419 = vpack.c.b16 %v2219, %v2211
    %v2420 = vpack.c.b16 %v2220, %v2212
    %v2421 = vpack.c.b16 %v2221, %v2213
    %v2422 = vpack.c.b16 %v2222, %v2214
    %v2423 = vpack.c.b16 %v2223, %v2215
    %v2424 = vpack.c.b16 %v2224, %v2216
    %v2425 = vpack.c.b16 %v2225, %v2217
    %v2426 = vpack.c.b16 %v2234, %v2226
    %v2427 = vpack.c.b16 %v2235, %v2227
    %v2428 = vpack.c.b16 %v2236, %v2228
    %v2429 = vpack.c.b16 %v2237, %v2229
    %v2430 = vpack.c.b16 %v2238, %v2230
    %v2431 = vpack.c.b16 %v2239, %v2231
    %v2432 = vpack.c.b16 %v2240, %v2232
    %v2433 = vpack.c.b16 %v2241, %v2233
    %v2434 = vpack.c.b16 %v2250, %v2242
    %v2435 = vpack.c.b16 %v2251, %v2243
    %v2436 = vpack.c.b16 %v2252, %v2244
    %v2437 = vpack.c.b16 %v2253, %v2245
    %v2438 = vpack.c.b16 %v2254, %v2246
    %v2439 = vpack.c.b16 %v2255, %v2247
    %v2440 = vpack.c.b16 %v2256, %v2248
    %v2441 = vpack.c.b16 %v2257, %v2249
    %v2442 = vpack.c.b16 %v2266, %v2258
    %v2443 = vpack.c.b16 %v2267, %v2259
    %v2444 = vpack.c.b16 %v2268, %v2260
    %v2445 = vpack.c.b16 %v2269, %v2261
    %v2446 = vpack.c.b16 %v2270, %v2262
    %v2447 = vpack.c.b16 %v2271, %v2263
    %v2448 = vpack.c.b16 %v2272, %v2264
    %v2449 = vpack.c.b16 %v2273, %v2265
    %v2450 = vpack.c.b16 %v2282, %v2274
    %v2451 = vpack.c.b16 %v2283, %v2275
    %v2452 = vpack.c.b16 %v2284, %v2276
    %v2453 = vpack.c.b16 %v2285, %v2277
    %v2454 = vpack.c.b16 %v2286, %v2278
    %v2455 = vpack.c.b16 %v2287, %v2279
    %v2456 = vpack.c.b16 %v2288, %v2280
    %v2457 = vpack.c.b16 %v2289, %v2281
    %v2458 = vpack.c.b16 %v2298, %v2290
    %v2459 = vpack.c.b16 %v2299, %v2291
    %v2460 = vpack.c.b16 %v2300, %v2292
    %v2461 = vpack.c.b16 %v2301, %v2293
    %v2462 = vpack.c.b16 %v2302, %v2294
    %v2463 = vpack.c.b16 %v2303, %v2295
    %v2464 = vpack.c.b16 %v2304, %v2296
    %v2465 = vpack.c.b16 %v2305, %v2297
    %v2466 = vpack.c.b16 %v2314, %v2306
    %v2467 = vpack.c.b16 %v2315, %v2307
    %v2468 = vpack.c.b16 %v2316, %v2308
    %v2469 = vpack.c.b16 %v2317, %v2309
    %v2470 = vpack.c.b16 %v2318, %v2310
    %v2471 = vpack.c.b16 %v2319, %v2311
    %v2472 = vpack.c.b16 %v2320, %v2312
    %v2473 = vpack.c.b16 %v2321, %v2313
    %v2474 = vpack.c.b16 %v2330, %v2322
    %v2475 = vpack.c.b16 %v2331, %v2323
    %v2476 = vpack.c.b16 %v2332, %v2324
    %v2477 = vpack.c.b16 %v2333, %v2325
    %v2478 = vpack.c.b16 %v2334, %v2326
    %v2479 = vpack.c.b16 %v2335, %v2327
    %v2480 = vpack.c.b16 %v2336, %v2328
    %v2481 = vpack.c.b16 %v2337, %v2329
    %v2482 = vpack.c.b16 %v2346, %v2338
    %v2483 = vpack.c.b16 %v2347, %v2339
    %v2484 = vpack.c.b16 %v2348, %v2340
    %v2485 = vpack.c.b16 %v2349, %v2341
    %v2486 = vpack.c.b16 %v2350, %v2342
    %v2487 = vpack.c.b16 %v2351, %v2343
    %v2488 = vpack.c.b16 %v2352, %v2344
    %v2489 = vpack.c.b16 %v2353, %v2345
    %v2490 = vpack.c.b16 %v2362, %v2354
    %v2491 = vpack.c.b16 %v2363, %v2355
    %v2492 = vpack.c.b16 %v2364, %v2356
    %v2493 = vpack.c.b16 %v2365, %v2357
    %v2494 = vpack.c.b16 %v2366, %v2358
    %v2495 = vpack.c.b16 %v2367, %v2359
    %v2496 = vpack.c.b16 %v2368, %v2360
    %v2497 = vpack.c.b16 %v2369, %v2361
    %2626 = vmatprep.subr.bf16.mxu0 %v2371
    %2627 = vmatpush1.bf16.msra.mxu0 %v2370
    %2628 = vmatprep.subr.bf16.mxu0 %v2379
    %2629 = vmatpush1.bf16.msra.mxu0 %v2378
    %2630 = vmatprep.subr.bf16.mxu0 %v2387
    %2631 = vmatpush1.bf16.msra.mxu0 %v2386
    %2632 = vmatprep.subr.bf16.mxu0 %v2395
    %2633 = vmatpush1.bf16.msra.mxu0 %v2394
    %2634 = vmatprep.subr.bf16.mxu0 %v2403
    %2635 = vmatpush1.bf16.msra.mxu0 %v2402
    %2636 = vmatprep.subr.bf16.mxu0 %v2411
    %2637 = vmatpush1.bf16.msra.mxu0 %v2410
    %2638 = vmatprep.subr.bf16.mxu0 %v2419
    %2639 = vmatpush1.bf16.msra.mxu0 %v2418
    %2640 = vmatprep.subr.bf16.mxu0 %v2427
    %2641 = vmatpush1.bf16.msra.mxu0 %v2426
    %2642 = vmatprep.subr.bf16.mxu0 %v2435
    %2643 = vmatpush1.bf16.msra.mxu0 %v2434
    %2644 = vmatprep.subr.bf16.mxu0 %v2443
    %2645 = vmatpush1.bf16.msra.mxu0 %v2442
    %2646 = vmatprep.subr.bf16.mxu0 %v2451
    %2647 = vmatpush1.bf16.msra.mxu0 %v2450
    %2648 = vmatprep.subr.bf16.mxu0 %v2459
    %2649 = vmatpush1.bf16.msra.mxu0 %v2458
    %2650 = vmatprep.subr.bf16.mxu0 %v2467
    %2651 = vmatpush1.bf16.msra.mxu0 %v2466
    %2652 = vmatprep.subr.bf16.mxu0 %v2475
    %2653 = vmatpush1.bf16.msra.mxu0 %v2474
    %2654 = vmatprep.subr.bf16.mxu0 %v2483
    %2655 = vmatpush1.bf16.msra.mxu0 %v2482
    %2656 = vmatprep.subr.bf16.mxu0 %v2491
    %2657 = vmatpush1.bf16.msra.mxu0 %v2490
    %2658 = vmatprep.mubr.bf16.mxu0 %v1815
    %2659 = vmatmul.mubr.bf16.gmra.mrb[0].mxu0 %v1814
    %v2660 = vpop.f32.mrb[0].mxu0
    %v2661 = vadd.f32 %v1949, %v2660
    %v2662 = vpop.f32.mrb[0].mxu0
    %v2663 = vadd.f32 %v1953, %v2662
    %v2664 = vpop.f32.mrb[0].mxu0
    %v2665 = vadd.f32 %v1949, %v2664
    %v2666 = vpop.f32.mrb[0].mxu0
    %v2667 = vadd.f32 %v1953, %v2666
    %2668 = vdwg.mxu0
    %2669 = vmatprep.subr.bf16.mxu0 %v2373
    %2670 = vmatpush1.bf16.msra.mxu0 %v2372
    %2671 = vmatprep.subr.bf16.mxu0 %v2381
    %2672 = vmatpush1.bf16.msra.mxu0 %v2380
    %2673 = vmatprep.subr.bf16.mxu0 %v2389
    %2674 = vmatpush1.bf16.msra.mxu0 %v2388
    %2675 = vmatprep.subr.bf16.mxu0 %v2397
    %2676 = vmatpush1.bf16.msra.mxu0 %v2396
    %2677 = vmatprep.subr.bf16.mxu0 %v2405
    %2678 = vmatpush1.bf16.msra.mxu0 %v2404
    %2679 = vmatprep.subr.bf16.mxu0 %v2413
    %2680 = vmatpush1.bf16.msra.mxu0 %v2412
    %2681 = vmatprep.subr.bf16.mxu0 %v2421
    %2682 = vmatpush1.bf16.msra.mxu0 %v2420
    %2683 = vmatprep.subr.bf16.mxu0 %v2429
    %2684 = vmatpush1.bf16.msra.mxu0 %v2428
    %2685 = vmatprep.subr.bf16.mxu0 %v2437
    %2686 = vmatpush1.bf16.msra.mxu0 %v2436
    %2687 = vmatprep.subr.bf16.mxu0 %v2445
    %2688 = vmatpush1.bf16.msra.mxu0 %v2444
    %2689 = vmatprep.subr.bf16.mxu0 %v2453
    %2690 = vmatpush1.bf16.msra.mxu0 %v2452
    %2691 = vmatprep.subr.bf16.mxu0 %v2461
    %2692 = vmatpush1.bf16.msra.mxu0 %v2460
    %2693 = vmatprep.subr.bf16.mxu0 %v2469
    %2694 = vmatpush1.bf16.msra.mxu0 %v2468
    %2695 = vmatprep.subr.bf16.mxu0 %v2477
    %2696 = vmatpush1.bf16.msra.mxu0 %v2476
    %2697 = vmatprep.subr.bf16.mxu0 %v2485
    %2698 = vmatpush1.bf16.msra.mxu0 %v2484
    %2699 = vmatprep.subr.bf16.mxu0 %v2493
    %2700 = vmatpush1.bf16.msra.mxu0 %v2492
    %2701 = vmatprep.mubr.bf16.mxu0 %v1815
    %2702 = vmatmul.mubr.bf16.gmra.mrb[0].mxu0 %v1814
    %v2703 = vpop.f32.mrb[0].mxu0
    %v2704 = vadd.f32 %v1957, %v2703
    %v2705 = vpop.f32.mrb[0].mxu0
    %v2706 = vadd.f32 %v1961, %v2705
    %v2707 = vpop.f32.mrb[0].mxu0
    %v2708 = vadd.f32 %v1957, %v2707
    %v2709 = vpop.f32.mrb[0].mxu0
    %v2710 = vadd.f32 %v1961, %v2709
    %2711 = vdwg.mxu0
    %2712 = vmatprep.subr.bf16.mxu0 %v2375
    %2713 = vmatpush1.bf16.msra.mxu0 %v2374
    %2714 = vmatprep.subr.bf16.mxu0 %v2383
    %2715 = vmatpush1.bf16.msra.mxu0 %v2382
    %2716 = vmatprep.subr.bf16.mxu0 %v2391
    %2717 = vmatpush1.bf16.msra.mxu0 %v2390
    %2718 = vmatprep.subr.bf16.mxu0 %v2399
    %2719 = vmatpush1.bf16.msra.mxu0 %v2398
    %2720 = vmatprep.subr.bf16.mxu0 %v2407
    %2721 = vmatpush1.bf16.msra.mxu0 %v2406
    %2722 = vmatprep.subr.bf16.mxu0 %v2415
    %2723 = vmatpush1.bf16.msra.mxu0 %v2414
    %2724 = vmatprep.subr.bf16.mxu0 %v2423
    %2725 = vmatpush1.bf16.msra.mxu0 %v2422
    %2726 = vmatprep.subr.bf16.mxu0 %v2431
    %2727 = vmatpush1.bf16.msra.mxu0 %v2430
    %2728 = vmatprep.subr.bf16.mxu0 %v2439
    %2729 = vmatpush1.bf16.msra.mxu0 %v2438
    %2730 = vmatprep.subr.bf16.mxu0 %v2447
    %2731 = vmatpush1.bf16.msra.mxu0 %v2446
    %2732 = vmatprep.subr.bf16.mxu0 %v2455
    %2733 = vmatpush1.bf16.msra.mxu0 %v2454
    %2734 = vmatprep.subr.bf16.mxu0 %v2463
    %2735 = vmatpush1.bf16.msra.mxu0 %v2462
    %2736 = vmatprep.subr.bf16.mxu0 %v2471
    %2737 = vmatpush1.bf16.msra.mxu0 %v2470
    %2738 = vmatprep.subr.bf16.mxu0 %v2479
    %2739 = vmatpush1.bf16.msra.mxu0 %v2478
    %2740 = vmatprep.subr.bf16.mxu0 %v2487
    %2741 = vmatpush1.bf16.msra.mxu0 %v2486
    %2742 = vmatprep.subr.bf16.mxu0 %v2495
    %2743 = vmatpush1.bf16.msra.mxu0 %v2494
    %2744 = vmatprep.mubr.bf16.mxu0 %v1815
    %2745 = vmatmul.mubr.bf16.gmra.mrb[0].mxu0 %v1814
    %v2746 = vpop.f32.mrb[0].mxu0
    %v2747 = vadd.f32 %v1965, %v2746
    %v2748 = vpop.f32.mrb[0].mxu0
    %v2749 = vadd.f32 %v1969, %v2748
    %v2750 = vpop.f32.mrb[0].mxu0
    %v2751 = vadd.f32 %v1965, %v2750
    %v2752 = vpop.f32.mrb[0].mxu0
    %v2753 = vadd.f32 %v1969, %v2752
    %2754 = vdwg.mxu0
    %2755 = vmatprep.subr.bf16.mxu0 %v2377
    %2756 = vmatpush1.bf16.msra.mxu0 %v2376
    %2757 = vmatprep.subr.bf16.mxu0 %v2385
    %2758 = vmatpush1.bf16.msra.mxu0 %v2384
    %2759 = vmatprep.subr.bf16.mxu0 %v2393
    %2760 = vmatpush1.bf16.msra.mxu0 %v2392
    %2761 = vmatprep.subr.bf16.mxu0 %v2401
    %2762 = vmatpush1.bf16.msra.mxu0 %v2400
    %2763 = vmatprep.subr.bf16.mxu0 %v2409
    %2764 = vmatpush1.bf16.msra.mxu0 %v2408
    %2765 = vmatprep.subr.bf16.mxu0 %v2417
    %2766 = vmatpush1.bf16.msra.mxu0 %v2416
    %2767 = vmatprep.subr.bf16.mxu0 %v2425
    %2768 = vmatpush1.bf16.msra.mxu0 %v2424
    %2769 = vmatprep.subr.bf16.mxu0 %v2433
    %2770 = vmatpush1.bf16.msra.mxu0 %v2432
    %2771 = vmatprep.subr.bf16.mxu0 %v2441
    %2772 = vmatpush1.bf16.msra.mxu0 %v2440
    %2773 = vmatprep.subr.bf16.mxu0 %v2449
    %2774 = vmatpush1.bf16.msra.mxu0 %v2448
    %2775 = vmatprep.subr.bf16.mxu0 %v2457
    %2776 = vmatpush1.bf16.msra.mxu0 %v2456
    %2777 = vmatprep.subr.bf16.mxu0 %v2465
    %2778 = vmatpush1.bf16.msra.mxu0 %v2464
    %2779 = vmatprep.subr.bf16.mxu0 %v2473
    %2780 = vmatpush1.bf16.msra.mxu0 %v2472
    %2781 = vmatprep.subr.bf16.mxu0 %v2481
    %2782 = vmatpush1.bf16.msra.mxu0 %v2480
    %2783 = vmatprep.subr.bf16.mxu0 %v2489
    %2784 = vmatpush1.bf16.msra.mxu0 %v2488
    %2785 = vmatprep.subr.bf16.mxu0 %v2497
    %2786 = vmatpush1.bf16.msra.mxu0 %v2496
    %2787 = vmatprep.mubr.bf16.mxu0 %v1815
    %2788 = vmatmul.mubr.bf16.gmra.mrb[0].mxu0 %v1814
    %v2789 = vpop.f32.mrb[0].mxu0
    %v2790 = vadd.f32 %v1973, %v2789
    %v2791 = vpop.f32.mrb[0].mxu0
    %v2792 = vadd.f32 %v1977, %v2791
    %v2793 = vpop.f32.mrb[0].mxu0
    %v2794 = vadd.f32 %v1973, %v2793
    %v2795 = vpop.f32.mrb[0].mxu0
    %v2796 = vadd.f32 %v1977, %v2795
    %2797 = vdwg.mxu0
    %v2798 = vld [vmem:[#allocation14] sm:$0xff]
    %v2799 = vld [vmem:[#allocation14 + $0x8] sm:$0xff]
    %v2800 = vld [vmem:[#allocation14 + $0x10] sm:$0xff]
    %v2801 = vld [vmem:[#allocation14 + $0x18] sm:$0xff]
    %v2802 = vld [vmem:[#allocation14 + $0x20] sm:$0xff]
    %v2803 = vld [vmem:[#allocation14 + $0x28] sm:$0xff]
    %v2804 = vld [vmem:[#allocation14 + $0x30] sm:$0xff]
    %v2805 = vld [vmem:[#allocation14 + $0x38] sm:$0xff]
    %v2806 = vld [vmem:[#allocation14 + $0x40] sm:$0xff]
    %v2807 = vld [vmem:[#allocation14 + $0x48] sm:$0xff]
    %v2808 = vld [vmem:[#allocation14 + $0x50] sm:$0xff]
    %v2809 = vld [vmem:[#allocation14 + $0x58] sm:$0xff]
    %v2810 = vld [vmem:[#allocation14 + $0x60] sm:$0xff]
    %v2811 = vld [vmem:[#allocation14 + $0x68] sm:$0xff]
    %v2812 = vld [vmem:[#allocation14 + $0x70] sm:$0xff]
    %v2813 = vld [vmem:[#allocation14 + $0x78] sm:$0xff]
    %v2814 = vld [vmem:[#allocation14 + $0x80] sm:$0xff]
    %v2815 = vld [vmem:[#allocation14 + $0x88] sm:$0xff]
    %v2816 = vld [vmem:[#allocation14 + $0x90] sm:$0xff]
    %v2817 = vld [vmem:[#allocation14 + $0x98] sm:$0xff]
    %v2818 = vld [vmem:[#allocation14 + $0xa0] sm:$0xff]
    %v2819 = vld [vmem:[#allocation14 + $0xa8] sm:$0xff]
    %v2820 = vld [vmem:[#allocation14 + $0xb0] sm:$0xff]
    %v2821 = vld [vmem:[#allocation14 + $0xb8] sm:$0xff]
    %v2822 = vld [vmem:[#allocation14 + $0xc0] sm:$0xff]
    %v2823 = vld [vmem:[#allocation14 + $0xc8] sm:$0xff]
    %v2824 = vld [vmem:[#allocation14 + $0xd0] sm:$0xff]
    %v2825 = vld [vmem:[#allocation14 + $0xd8] sm:$0xff]
    %v2826 = vld [vmem:[#allocation14 + $0xe0] sm:$0xff]
    %v2827 = vld [vmem:[#allocation14 + $0xe8] sm:$0xff]
    %v2828 = vld [vmem:[#allocation14 + $0xf0] sm:$0xff]
    %v2829 = vld [vmem:[#allocation14 + $0xf8] sm:$0xff]
    %v2830 = vld [vmem:[#allocation14 + $0x100] sm:$0xff]
    %v2831 = vld [vmem:[#allocation14 + $0x108] sm:$0xff]
    %v2832 = vld [vmem:[#allocation14 + $0x110] sm:$0xff]
    %v2833 = vld [vmem:[#allocation14 + $0x118] sm:$0xff]
    %v2834 = vld [vmem:[#allocation14 + $0x120] sm:$0xff]
    %v2835 = vld [vmem:[#allocation14 + $0x128] sm:$0xff]
    %v2836 = vld [vmem:[#allocation14 + $0x130] sm:$0xff]
    %v2837 = vld [vmem:[#allocation14 + $0x138] sm:$0xff]
    %v2838 = vld [vmem:[#allocation14 + $0x140] sm:$0xff]
    %v2839 = vld [vmem:[#allocation14 + $0x148] sm:$0xff]
    %v2840 = vld [vmem:[#allocation14 + $0x150] sm:$0xff]
    %v2841 = vld [vmem:[#allocation14 + $0x158] sm:$0xff]
    %v2842 = vld [vmem:[#allocation14 + $0x160] sm:$0xff]
    %v2843 = vld [vmem:[#allocation14 + $0x168] sm:$0xff]
    %v2844 = vld [vmem:[#allocation14 + $0x170] sm:$0xff]
    %v2845 = vld [vmem:[#allocation14 + $0x178] sm:$0xff]
    %v2846 = vld [vmem:[#allocation14 + $0x180] sm:$0xff]
    %v2847 = vld [vmem:[#allocation14 + $0x188] sm:$0xff]
    %v2848 = vld [vmem:[#allocation14 + $0x190] sm:$0xff]
    %v2849 = vld [vmem:[#allocation14 + $0x198] sm:$0xff]
    %v2850 = vld [vmem:[#allocation14 + $0x1a0] sm:$0xff]
    %v2851 = vld [vmem:[#allocation14 + $0x1a8] sm:$0xff]
    %v2852 = vld [vmem:[#allocation14 + $0x1b0] sm:$0xff]
    %v2853 = vld [vmem:[#allocation14 + $0x1b8] sm:$0xff]
    %v2854 = vld [vmem:[#allocation14 + $0x1c0] sm:$0xff]
    %v2855 = vld [vmem:[#allocation14 + $0x1c8] sm:$0xff]
    %v2856 = vld [vmem:[#allocation14 + $0x1d0] sm:$0xff]
    %v2857 = vld [vmem:[#allocation14 + $0x1d8] sm:$0xff]
    %v2858 = vld [vmem:[#allocation14 + $0x1e0] sm:$0xff]
    %v2859 = vld [vmem:[#allocation14 + $0x1e8] sm:$0xff]
    %v2860 = vld [vmem:[#allocation14 + $0x1f0] sm:$0xff]
    %v2861 = vld [vmem:[#allocation14 + $0x1f8] sm:$0xff]
    %v2862 = vld [vmem:[#allocation14 + $0x200] sm:$0xff]
    %v2863 = vld [vmem:[#allocation14 + $0x208] sm:$0xff]
    %v2864 = vld [vmem:[#allocation14 + $0x210] sm:$0xff]
    %v2865 = vld [vmem:[#allocation14 + $0x218] sm:$0xff]
    %v2866 = vld [vmem:[#allocation14 + $0x220] sm:$0xff]
    %v2867 = vld [vmem:[#allocation14 + $0x228] sm:$0xff]
    %v2868 = vld [vmem:[#allocation14 + $0x230] sm:$0xff]
    %v2869 = vld [vmem:[#allocation14 + $0x238] sm:$0xff]
    %v2870 = vld [vmem:[#allocation14 + $0x240] sm:$0xff]
    %v2871 = vld [vmem:[#allocation14 + $0x248] sm:$0xff]
    %v2872 = vld [vmem:[#allocation14 + $0x250] sm:$0xff]
    %v2873 = vld [vmem:[#allocation14 + $0x258] sm:$0xff]
    %v2874 = vld [vmem:[#allocation14 + $0x260] sm:$0xff]
    %v2875 = vld [vmem:[#allocation14 + $0x268] sm:$0xff]
    %v2876 = vld [vmem:[#allocation14 + $0x270] sm:$0xff]
    %v2877 = vld [vmem:[#allocation14 + $0x278] sm:$0xff]
    %v2878 = vld [vmem:[#allocation14 + $0x280] sm:$0xff]
    %v2879 = vld [vmem:[#allocation14 + $0x288] sm:$0xff]
    %v2880 = vld [vmem:[#allocation14 + $0x290] sm:$0xff]
    %v2881 = vld [vmem:[#allocation14 + $0x298] sm:$0xff]
    %v2882 = vld [vmem:[#allocation14 + $0x2a0] sm:$0xff]
    %v2883 = vld [vmem:[#allocation14 + $0x2a8] sm:$0xff]
    %v2884 = vld [vmem:[#allocation14 + $0x2b0] sm:$0xff]
    %v2885 = vld [vmem:[#allocation14 + $0x2b8] sm:$0xff]
    %v2886 = vld [vmem:[#allocation14 + $0x2c0] sm:$0xff]
    %v2887 = vld [vmem:[#allocation14 + $0x2c8] sm:$0xff]
    %v2888 = vld [vmem:[#allocation14 + $0x2d0] sm:$0xff]
    %v2889 = vld [vmem:[#allocation14 + $0x2d8] sm:$0xff]
    %v2890 = vld [vmem:[#allocation14 + $0x2e0] sm:$0xff]
    %v2891 = vld [vmem:[#allocation14 + $0x2e8] sm:$0xff]
    %v2892 = vld [vmem:[#allocation14 + $0x2f0] sm:$0xff]
    %v2893 = vld [vmem:[#allocation14 + $0x2f8] sm:$0xff]
    %v2894 = vld [vmem:[#allocation14 + $0x300] sm:$0xff]
    %v2895 = vld [vmem:[#allocation14 + $0x308] sm:$0xff]
    %v2896 = vld [vmem:[#allocation14 + $0x310] sm:$0xff]
    %v2897 = vld [vmem:[#allocation14 + $0x318] sm:$0xff]
    %v2898 = vld [vmem:[#allocation14 + $0x320] sm:$0xff]
    %v2899 = vld [vmem:[#allocation14 + $0x328] sm:$0xff]
    %v2900 = vld [vmem:[#allocation14 + $0x330] sm:$0xff]
    %v2901 = vld [vmem:[#allocation14 + $0x338] sm:$0xff]
    %v2902 = vld [vmem:[#allocation14 + $0x340] sm:$0xff]
    %v2903 = vld [vmem:[#allocation14 + $0x348] sm:$0xff]
    %v2904 = vld [vmem:[#allocation14 + $0x350] sm:$0xff]
    %v2905 = vld [vmem:[#allocation14 + $0x358] sm:$0xff]
    %v2906 = vld [vmem:[#allocation14 + $0x360] sm:$0xff]
    %v2907 = vld [vmem:[#allocation14 + $0x368] sm:$0xff]
    %v2908 = vld [vmem:[#allocation14 + $0x370] sm:$0xff]
    %v2909 = vld [vmem:[#allocation14 + $0x378] sm:$0xff]
    %v2910 = vld [vmem:[#allocation14 + $0x380] sm:$0xff]
    %v2911 = vld [vmem:[#allocation14 + $0x388] sm:$0xff]
    %v2912 = vld [vmem:[#allocation14 + $0x390] sm:$0xff]
    %v2913 = vld [vmem:[#allocation14 + $0x398] sm:$0xff]
    %v2914 = vld [vmem:[#allocation14 + $0x3a0] sm:$0xff]
    %v2915 = vld [vmem:[#allocation14 + $0x3a8] sm:$0xff]
    %v2916 = vld [vmem:[#allocation14 + $0x3b0] sm:$0xff]
    %v2917 = vld [vmem:[#allocation14 + $0x3b8] sm:$0xff]
    %v2918 = vld [vmem:[#allocation14 + $0x3c0] sm:$0xff]
    %v2919 = vld [vmem:[#allocation14 + $0x3c8] sm:$0xff]
    %v2920 = vld [vmem:[#allocation14 + $0x3d0] sm:$0xff]
    %v2921 = vld [vmem:[#allocation14 + $0x3d8] sm:$0xff]
    %v2922 = vld [vmem:[#allocation14 + $0x3e0] sm:$0xff]
    %v2923 = vld [vmem:[#allocation14 + $0x3e8] sm:$0xff]
    %v2924 = vld [vmem:[#allocation14 + $0x3f0] sm:$0xff]
    %v2925 = vld [vmem:[#allocation14 + $0x3f8] sm:$0xff]
    %v2926 = vld [vmem:[%s17] sm:$0xff]
    %v2928 = vlaneseq
    %v2929 = vshrl.u32 %v2928, 7
    %v2930 = vsub.s32 0, %v2929
    %v2931 = vrot.slane %v2926, %v2930
    %v2932 = vlaneseq
    %v2933 = vshrl.u32 %v2932, 7
    %v2934 = vsub.s32 1, %v2933
    %v2935 = vrot.slane %v2926, %v2934
    %v2936 = vlaneseq
    %v2937 = vshrl.u32 %v2936, 7
    %v2938 = vsub.s32 2, %v2937
    %v2939 = vrot.slane %v2926, %v2938
    %v2940 = vlaneseq
    %v2941 = vshrl.u32 %v2940, 7
    %v2942 = vsub.s32 3, %v2941
    %v2943 = vrot.slane %v2926, %v2942
    %v2944 = vlaneseq
    %v2945 = vshrl.u32 %v2944, 7
    %v2946 = vsub.s32 4, %v2945
    %v2947 = vrot.slane %v2926, %v2946
    %v2948 = vlaneseq
    %v2949 = vshrl.u32 %v2948, 7
    %v2950 = vsub.s32 5, %v2949
    %v2951 = vrot.slane %v2926, %v2950
    %v2952 = vlaneseq
    %v2953 = vshrl.u32 %v2952, 7
    %v2954 = vsub.s32 6, %v2953
    %v2955 = vrot.slane %v2926, %v2954
    %v2956 = vlaneseq
    %v2957 = vshrl.u32 %v2956, 7
    %v2958 = vsub.s32 7, %v2957
    %v2959 = vrot.slane %v2926, %v2958
    %v3096 = vunpack.c.l.b16 %v2798
    %v3097 = vunpack.c.h.b16 %v2798
    %v3098 = vunpack.c.l.b16 %v2799
    %v3099 = vunpack.c.h.b16 %v2799
    %v3100 = vunpack.c.l.b16 %v2800
    %v3101 = vunpack.c.h.b16 %v2800
    %v3102 = vunpack.c.l.b16 %v2801
    %v3103 = vunpack.c.h.b16 %v2801
    %v3104 = vunpack.c.l.b16 %v2802
    %v3105 = vunpack.c.h.b16 %v2802
    %v3106 = vunpack.c.l.b16 %v2803
    %v3107 = vunpack.c.h.b16 %v2803
    %v3108 = vunpack.c.l.b16 %v2804
    %v3109 = vunpack.c.h.b16 %v2804
    %v3110 = vunpack.c.l.b16 %v2805
    %v3111 = vunpack.c.h.b16 %v2805
    %v3112 = vunpack.c.l.b16 %v2806
    %v3113 = vunpack.c.h.b16 %v2806
    %v3114 = vunpack.c.l.b16 %v2807
    %v3115 = vunpack.c.h.b16 %v2807
    %v3116 = vunpack.c.l.b16 %v2808
    %v3117 = vunpack.c.h.b16 %v2808
    %v3118 = vunpack.c.l.b16 %v2809
    %v3119 = vunpack.c.h.b16 %v2809
    %v3120 = vunpack.c.l.b16 %v2810
    %v3121 = vunpack.c.h.b16 %v2810
    %v3122 = vunpack.c.l.b16 %v2811
    %v3123 = vunpack.c.h.b16 %v2811
    %v3124 = vunpack.c.l.b16 %v2812
    %v3125 = vunpack.c.h.b16 %v2812
    %v3126 = vunpack.c.l.b16 %v2813
    %v3127 = vunpack.c.h.b16 %v2813
    %v3128 = vunpack.c.l.b16 %v2814
    %v3129 = vunpack.c.h.b16 %v2814
    %v3130 = vunpack.c.l.b16 %v2815
    %v3131 = vunpack.c.h.b16 %v2815
    %v3132 = vunpack.c.l.b16 %v2816
    %v3133 = vunpack.c.h.b16 %v2816
    %v3134 = vunpack.c.l.b16 %v2817
    %v3135 = vunpack.c.h.b16 %v2817
    %v3136 = vunpack.c.l.b16 %v2818
    %v3137 = vunpack.c.h.b16 %v2818
    %v3138 = vunpack.c.l.b16 %v2819
    %v3139 = vunpack.c.h.b16 %v2819
    %v3140 = vunpack.c.l.b16 %v2820
    %v3141 = vunpack.c.h.b16 %v2820
    %v3142 = vunpack.c.l.b16 %v2821
    %v3143 = vunpack.c.h.b16 %v2821
    %v3144 = vunpack.c.l.b16 %v2822
    %v3145 = vunpack.c.h.b16 %v2822
    %v3146 = vunpack.c.l.b16 %v2823
    %v3147 = vunpack.c.h.b16 %v2823
    %v3148 = vunpack.c.l.b16 %v2824
    %v3149 = vunpack.c.h.b16 %v2824
    %v3150 = vunpack.c.l.b16 %v2825
    %v3151 = vunpack.c.h.b16 %v2825
    %v3152 = vunpack.c.l.b16 %v2826
    %v3153 = vunpack.c.h.b16 %v2826
    %v3154 = vunpack.c.l.b16 %v2827
    %v3155 = vunpack.c.h.b16 %v2827
    %v3156 = vunpack.c.l.b16 %v2828
    %v3157 = vunpack.c.h.b16 %v2828
    %v3158 = vunpack.c.l.b16 %v2829
    %v3159 = vunpack.c.h.b16 %v2829
    %v3160 = vunpack.c.l.b16 %v2830
    %v3161 = vunpack.c.h.b16 %v2830
    %v3162 = vunpack.c.l.b16 %v2831
    %v3163 = vunpack.c.h.b16 %v2831
    %v3164 = vunpack.c.l.b16 %v2832
    %v3165 = vunpack.c.h.b16 %v2832
    %v3166 = vunpack.c.l.b16 %v2833
    %v3167 = vunpack.c.h.b16 %v2833
    %v3168 = vunpack.c.l.b16 %v2834
    %v3169 = vunpack.c.h.b16 %v2834
    %v3170 = vunpack.c.l.b16 %v2835
    %v3171 = vunpack.c.h.b16 %v2835
    %v3172 = vunpack.c.l.b16 %v2836
    %v3173 = vunpack.c.h.b16 %v2836
    %v3174 = vunpack.c.l.b16 %v2837
    %v3175 = vunpack.c.h.b16 %v2837
    %v3176 = vunpack.c.l.b16 %v2838
    %v3177 = vunpack.c.h.b16 %v2838
    %v3178 = vunpack.c.l.b16 %v2839
    %v3179 = vunpack.c.h.b16 %v2839
    %v3180 = vunpack.c.l.b16 %v2840
    %v3181 = vunpack.c.h.b16 %v2840
    %v3182 = vunpack.c.l.b16 %v2841
    %v3183 = vunpack.c.h.b16 %v2841
    %v3184 = vunpack.c.l.b16 %v2842
    %v3185 = vunpack.c.h.b16 %v2842
    %v3186 = vunpack.c.l.b16 %v2843
    %v3187 = vunpack.c.h.b16 %v2843
    %v3188 = vunpack.c.l.b16 %v2844
    %v3189 = vunpack.c.h.b16 %v2844
    %v3190 = vunpack.c.l.b16 %v2845
    %v3191 = vunpack.c.h.b16 %v2845
    %v3192 = vunpack.c.l.b16 %v2846
    %v3193 = vunpack.c.h.b16 %v2846
    %v3194 = vunpack.c.l.b16 %v2847
    %v3195 = vunpack.c.h.b16 %v2847
    %v3196 = vunpack.c.l.b16 %v2848
    %v3197 = vunpack.c.h.b16 %v2848
    %v3198 = vunpack.c.l.b16 %v2849
    %v3199 = vunpack.c.h.b16 %v2849
    %v3200 = vunpack.c.l.b16 %v2850
    %v3201 = vunpack.c.h.b16 %v2850
    %v3202 = vunpack.c.l.b16 %v2851
    %v3203 = vunpack.c.h.b16 %v2851
    %v3204 = vunpack.c.l.b16 %v2852
    %v3205 = vunpack.c.h.b16 %v2852
    %v3206 = vunpack.c.l.b16 %v2853
    %v3207 = vunpack.c.h.b16 %v2853
    %v3208 = vunpack.c.l.b16 %v2854
    %v3209 = vunpack.c.h.b16 %v2854
    %v3210 = vunpack.c.l.b16 %v2855
    %v3211 = vunpack.c.h.b16 %v2855
    %v3212 = vunpack.c.l.b16 %v2856
    %v3213 = vunpack.c.h.b16 %v2856
    %v3214 = vunpack.c.l.b16 %v2857
    %v3215 = vunpack.c.h.b16 %v2857
    %v3216 = vunpack.c.l.b16 %v2858
    %v3217 = vunpack.c.h.b16 %v2858
    %v3218 = vunpack.c.l.b16 %v2859
    %v3219 = vunpack.c.h.b16 %v2859
    %v3220 = vunpack.c.l.b16 %v2860
    %v3221 = vunpack.c.h.b16 %v2860
    %v3222 = vunpack.c.l.b16 %v2861
    %v3223 = vunpack.c.h.b16 %v2861
    %v3224 = vunpack.c.l.b16 %v2862
    %v3225 = vunpack.c.h.b16 %v2862
    %v3226 = vunpack.c.l.b16 %v2863
    %v3227 = vunpack.c.h.b16 %v2863
    %v3228 = vunpack.c.l.b16 %v2864
    %v3229 = vunpack.c.h.b16 %v2864
    %v3230 = vunpack.c.l.b16 %v2865
    %v3231 = vunpack.c.h.b16 %v2865
    %v3232 = vunpack.c.l.b16 %v2866
    %v3233 = vunpack.c.h.b16 %v2866
    %v3234 = vunpack.c.l.b16 %v2867
    %v3235 = vunpack.c.h.b16 %v2867
    %v3236 = vunpack.c.l.b16 %v2868
    %v3237 = vunpack.c.h.b16 %v2868
    %v3238 = vunpack.c.l.b16 %v2869
    %v3239 = vunpack.c.h.b16 %v2869
    %v3240 = vunpack.c.l.b16 %v2870
    %v3241 = vunpack.c.h.b16 %v2870
    %v3242 = vunpack.c.l.b16 %v2871
    %v3243 = vunpack.c.h.b16 %v2871
    %v3244 = vunpack.c.l.b16 %v2872
    %v3245 = vunpack.c.h.b16 %v2872
    %v3246 = vunpack.c.l.b16 %v2873
    %v3247 = vunpack.c.h.b16 %v2873
    %v3248 = vunpack.c.l.b16 %v2874
    %v3249 = vunpack.c.h.b16 %v2874
    %v3250 = vunpack.c.l.b16 %v2875
    %v3251 = vunpack.c.h.b16 %v2875
    %v3252 = vunpack.c.l.b16 %v2876
    %v3253 = vunpack.c.h.b16 %v2876
    %v3254 = vunpack.c.l.b16 %v2877
    %v3255 = vunpack.c.h.b16 %v2877
    %v3256 = vunpack.c.l.b16 %v2878
    %v3257 = vunpack.c.h.b16 %v2878
    %v3258 = vunpack.c.l.b16 %v2879
    %v3259 = vunpack.c.h.b16 %v2879
    %v3260 = vunpack.c.l.b16 %v2880
    %v3261 = vunpack.c.h.b16 %v2880
    %v3262 = vunpack.c.l.b16 %v2881
    %v3263 = vunpack.c.h.b16 %v2881
    %v3264 = vunpack.c.l.b16 %v2882
    %v3265 = vunpack.c.h.b16 %v2882
    %v3266 = vunpack.c.l.b16 %v2883
    %v3267 = vunpack.c.h.b16 %v2883
    %v3268 = vunpack.c.l.b16 %v2884
    %v3269 = vunpack.c.h.b16 %v2884
    %v3270 = vunpack.c.l.b16 %v2885
    %v3271 = vunpack.c.h.b16 %v2885
    %v3272 = vunpack.c.l.b16 %v2886
    %v3273 = vunpack.c.h.b16 %v2886
    %v3274 = vunpack.c.l.b16 %v2887
    %v3275 = vunpack.c.h.b16 %v2887
    %v3276 = vunpack.c.l.b16 %v2888
    %v3277 = vunpack.c.h.b16 %v2888
    %v3278 = vunpack.c.l.b16 %v2889
    %v3279 = vunpack.c.h.b16 %v2889
    %v3280 = vunpack.c.l.b16 %v2890
    %v3281 = vunpack.c.h.b16 %v2890
    %v3282 = vunpack.c.l.b16 %v2891
    %v3283 = vunpack.c.h.b16 %v2891
    %v3284 = vunpack.c.l.b16 %v2892
    %v3285 = vunpack.c.h.b16 %v2892
    %v3286 = vunpack.c.l.b16 %v2893
    %v3287 = vunpack.c.h.b16 %v2893
    %v3288 = vunpack.c.l.b16 %v2894
    %v3289 = vunpack.c.h.b16 %v2894
    %v3290 = vunpack.c.l.b16 %v2895
    %v3291 = vunpack.c.h.b16 %v2895
    %v3292 = vunpack.c.l.b16 %v2896
    %v3293 = vunpack.c.h.b16 %v2896
    %v3294 = vunpack.c.l.b16 %v2897
    %v3295 = vunpack.c.h.b16 %v2897
    %v3296 = vunpack.c.l.b16 %v2898
    %v3297 = vunpack.c.h.b16 %v2898
    %v3298 = vunpack.c.l.b16 %v2899
    %v3299 = vunpack.c.h.b16 %v2899
    %v3300 = vunpack.c.l.b16 %v2900
    %v3301 = vunpack.c.h.b16 %v2900
    %v3302 = vunpack.c.l.b16 %v2901
    %v3303 = vunpack.c.h.b16 %v2901
    %v3304 = vunpack.c.l.b16 %v2902
    %v3305 = vunpack.c.h.b16 %v2902
    %v3306 = vunpack.c.l.b16 %v2903
    %v3307 = vunpack.c.h.b16 %v2903
    %v3308 = vunpack.c.l.b16 %v2904
    %v3309 = vunpack.c.h.b16 %v2904
    %v3310 = vunpack.c.l.b16 %v2905
    %v3311 = vunpack.c.h.b16 %v2905
    %v3312 = vunpack.c.l.b16 %v2906
    %v3313 = vunpack.c.h.b16 %v2906
    %v3314 = vunpack.c.l.b16 %v2907
    %v3315 = vunpack.c.h.b16 %v2907
    %v3316 = vunpack.c.l.b16 %v2908
    %v3317 = vunpack.c.h.b16 %v2908
    %v3318 = vunpack.c.l.b16 %v2909
    %v3319 = vunpack.c.h.b16 %v2909
    %v3320 = vunpack.c.l.b16 %v2910
    %v3321 = vunpack.c.h.b16 %v2910
    %v3322 = vunpack.c.l.b16 %v2911
    %v3323 = vunpack.c.h.b16 %v2911
    %v3324 = vunpack.c.l.b16 %v2912
    %v3325 = vunpack.c.h.b16 %v2912
    %v3326 = vunpack.c.l.b16 %v2913
    %v3327 = vunpack.c.h.b16 %v2913
    %v3328 = vunpack.c.l.b16 %v2914
    %v3329 = vunpack.c.h.b16 %v2914
    %v3330 = vunpack.c.l.b16 %v2915
    %v3331 = vunpack.c.h.b16 %v2915
    %v3332 = vunpack.c.l.b16 %v2916
    %v3333 = vunpack.c.h.b16 %v2916
    %v3334 = vunpack.c.l.b16 %v2917
    %v3335 = vunpack.c.h.b16 %v2917
    %v3336 = vunpack.c.l.b16 %v2918
    %v3337 = vunpack.c.h.b16 %v2918
    %v3338 = vunpack.c.l.b16 %v2919
    %v3339 = vunpack.c.h.b16 %v2919
    %v3340 = vunpack.c.l.b16 %v2920
    %v3341 = vunpack.c.h.b16 %v2920
    %v3342 = vunpack.c.l.b16 %v2921
    %v3343 = vunpack.c.h.b16 %v2921
    %v3344 = vunpack.c.l.b16 %v2922
    %v3345 = vunpack.c.h.b16 %v2922
    %v3346 = vunpack.c.l.b16 %v2923
    %v3347 = vunpack.c.h.b16 %v2923
    %v3348 = vunpack.c.l.b16 %v2924
    %v3349 = vunpack.c.h.b16 %v2924
    %v3350 = vunpack.c.l.b16 %v2925
    %v3351 = vunpack.c.h.b16 %v2925
    %v3352 = vpack.c.b16 %v3104, %v3096
    %v3353 = vpack.c.b16 %v3105, %v3097
    %v3354 = vpack.c.b16 %v3106, %v3098
    %v3355 = vpack.c.b16 %v3107, %v3099
    %v3356 = vpack.c.b16 %v3108, %v3100
    %v3357 = vpack.c.b16 %v3109, %v3101
    %v3358 = vpack.c.b16 %v3110, %v3102
    %v3359 = vpack.c.b16 %v3111, %v3103
    %v3360 = vpack.c.b16 %v3120, %v3112
    %v3361 = vpack.c.b16 %v3121, %v3113
    %v3362 = vpack.c.b16 %v3122, %v3114
    %v3363 = vpack.c.b16 %v3123, %v3115
    %v3364 = vpack.c.b16 %v3124, %v3116
    %v3365 = vpack.c.b16 %v3125, %v3117
    %v3366 = vpack.c.b16 %v3126, %v3118
    %v3367 = vpack.c.b16 %v3127, %v3119
    %v3368 = vpack.c.b16 %v3136, %v3128
    %v3369 = vpack.c.b16 %v3137, %v3129
    %v3370 = vpack.c.b16 %v3138, %v3130
    %v3371 = vpack.c.b16 %v3139, %v3131
    %v3372 = vpack.c.b16 %v3140, %v3132
    %v3373 = vpack.c.b16 %v3141, %v3133
    %v3374 = vpack.c.b16 %v3142, %v3134
    %v3375 = vpack.c.b16 %v3143, %v3135
    %v3376 = vpack.c.b16 %v3152, %v3144
    %v3377 = vpack.c.b16 %v3153, %v3145
    %v3378 = vpack.c.b16 %v3154, %v3146
    %v3379 = vpack.c.b16 %v3155, %v3147
    %v3380 = vpack.c.b16 %v3156, %v3148
    %v3381 = vpack.c.b16 %v3157, %v3149
    %v3382 = vpack.c.b16 %v3158, %v3150
    %v3383 = vpack.c.b16 %v3159, %v3151
    %v3384 = vpack.c.b16 %v3168, %v3160
    %v3385 = vpack.c.b16 %v3169, %v3161
    %v3386 = vpack.c.b16 %v3170, %v3162
    %v3387 = vpack.c.b16 %v3171, %v3163
    %v3388 = vpack.c.b16 %v3172, %v3164
    %v3389 = vpack.c.b16 %v3173, %v3165
    %v3390 = vpack.c.b16 %v3174, %v3166
    %v3391 = vpack.c.b16 %v3175, %v3167
    %v3392 = vpack.c.b16 %v3184, %v3176
    %v3393 = vpack.c.b16 %v3185, %v3177
    %v3394 = vpack.c.b16 %v3186, %v3178
    %v3395 = vpack.c.b16 %v3187, %v3179
    %v3396 = vpack.c.b16 %v3188, %v3180
    %v3397 = vpack.c.b16 %v3189, %v3181
    %v3398 = vpack.c.b16 %v3190, %v3182
    %v3399 = vpack.c.b16 %v3191, %v3183
    %v3400 = vpack.c.b16 %v3200, %v3192
    %v3401 = vpack.c.b16 %v3201, %v3193
    %v3402 = vpack.c.b16 %v3202, %v3194
    %v3403 = vpack.c.b16 %v3203, %v3195
    %v3404 = vpack.c.b16 %v3204, %v3196
    %v3405 = vpack.c.b16 %v3205, %v3197
    %v3406 = vpack.c.b16 %v3206, %v3198
    %v3407 = vpack.c.b16 %v3207, %v3199
    %v3408 = vpack.c.b16 %v3216, %v3208
    %v3409 = vpack.c.b16 %v3217, %v3209
    %v3410 = vpack.c.b16 %v3218, %v3210
    %v3411 = vpack.c.b16 %v3219, %v3211
    %v3412 = vpack.c.b16 %v3220, %v3212
    %v3413 = vpack.c.b16 %v3221, %v3213
    %v3414 = vpack.c.b16 %v3222, %v3214
    %v3415 = vpack.c.b16 %v3223, %v3215
    %v3416 = vpack.c.b16 %v3232, %v3224
    %v3417 = vpack.c.b16 %v3233, %v3225
    %v3418 = vpack.c.b16 %v3234, %v3226
    %v3419 = vpack.c.b16 %v3235, %v3227
    %v3420 = vpack.c.b16 %v3236, %v3228
    %v3421 = vpack.c.b16 %v3237, %v3229
    %v3422 = vpack.c.b16 %v3238, %v3230
    %v3423 = vpack.c.b16 %v3239, %v3231
    %v3424 = vpack.c.b16 %v3248, %v3240
    %v3425 = vpack.c.b16 %v3249, %v3241
    %v3426 = vpack.c.b16 %v3250, %v3242
    %v3427 = vpack.c.b16 %v3251, %v3243
    %v3428 = vpack.c.b16 %v3252, %v3244
    %v3429 = vpack.c.b16 %v3253, %v3245
    %v3430 = vpack.c.b16 %v3254, %v3246
    %v3431 = vpack.c.b16 %v3255, %v3247
    %v3432 = vpack.c.b16 %v3264, %v3256
    %v3433 = vpack.c.b16 %v3265, %v3257
    %v3434 = vpack.c.b16 %v3266, %v3258
    %v3435 = vpack.c.b16 %v3267, %v3259
    %v3436 = vpack.c.b16 %v3268, %v3260
    %v3437 = vpack.c.b16 %v3269, %v3261
    %v3438 = vpack.c.b16 %v3270, %v3262
    %v3439 = vpack.c.b16 %v3271, %v3263
    %v3440 = vpack.c.b16 %v3280, %v3272
    %v3441 = vpack.c.b16 %v3281, %v3273
    %v3442 = vpack.c.b16 %v3282, %v3274
    %v3443 = vpack.c.b16 %v3283, %v3275
    %v3444 = vpack.c.b16 %v3284, %v3276
    %v3445 = vpack.c.b16 %v3285, %v3277
    %v3446 = vpack.c.b16 %v3286, %v3278
    %v3447 = vpack.c.b16 %v3287, %v3279
    %v3448 = vpack.c.b16 %v3296, %v3288
    %v3449 = vpack.c.b16 %v3297, %v3289
    %v3450 = vpack.c.b16 %v3298, %v3290
    %v3451 = vpack.c.b16 %v3299, %v3291
    %v3452 = vpack.c.b16 %v3300, %v3292
    %v3453 = vpack.c.b16 %v3301, %v3293
    %v3454 = vpack.c.b16 %v3302, %v3294
    %v3455 = vpack.c.b16 %v3303, %v3295
    %v3456 = vpack.c.b16 %v3312, %v3304
    %v3457 = vpack.c.b16 %v3313, %v3305
    %v3458 = vpack.c.b16 %v3314, %v3306
    %v3459 = vpack.c.b16 %v3315, %v3307
    %v3460 = vpack.c.b16 %v3316, %v3308
    %v3461 = vpack.c.b16 %v3317, %v3309
    %v3462 = vpack.c.b16 %v3318, %v3310
    %v3463 = vpack.c.b16 %v3319, %v3311
    %v3464 = vpack.c.b16 %v3328, %v3320
    %v3465 = vpack.c.b16 %v3329, %v3321
    %v3466 = vpack.c.b16 %v3330, %v3322
    %v3467 = vpack.c.b16 %v3331, %v3323
    %v3468 = vpack.c.b16 %v3332, %v3324
    %v3469 = vpack.c.b16 %v3333, %v3325
    %v3470 = vpack.c.b16 %v3334, %v3326
    %v3471 = vpack.c.b16 %v3335, %v3327
    %v3472 = vpack.c.b16 %v3344, %v3336
    %v3473 = vpack.c.b16 %v3345, %v3337
    %v3474 = vpack.c.b16 %v3346, %v3338
    %v3475 = vpack.c.b16 %v3347, %v3339
    %v3476 = vpack.c.b16 %v3348, %v3340
    %v3477 = vpack.c.b16 %v3349, %v3341
    %v3478 = vpack.c.b16 %v3350, %v3342
    %v3479 = vpack.c.b16 %v3351, %v3343
    %3608 = vmatprep.subr.bf16.mxu0 %v3353
    %3609 = vmatpush1.bf16.msra.mxu0 %v3352
    %3610 = vmatprep.subr.bf16.mxu0 %v3361
    %3611 = vmatpush1.bf16.msra.mxu0 %v3360
    %3612 = vmatprep.subr.bf16.mxu0 %v3369
    %3613 = vmatpush1.bf16.msra.mxu0 %v3368
    %3614 = vmatprep.subr.bf16.mxu0 %v3377
    %3615 = vmatpush1.bf16.msra.mxu0 %v3376
    %3616 = vmatprep.subr.bf16.mxu0 %v3385
    %3617 = vmatpush1.bf16.msra.mxu0 %v3384
    %3618 = vmatprep.subr.bf16.mxu0 %v3393
    %3619 = vmatpush1.bf16.msra.mxu0 %v3392
    %3620 = vmatprep.subr.bf16.mxu0 %v3401
    %3621 = vmatpush1.bf16.msra.mxu0 %v3400
    %3622 = vmatprep.subr.bf16.mxu0 %v3409
    %3623 = vmatpush1.bf16.msra.mxu0 %v3408
    %3624 = vmatprep.subr.bf16.mxu0 %v3417
    %3625 = vmatpush1.bf16.msra.mxu0 %v3416
    %3626 = vmatprep.subr.bf16.mxu0 %v3425
    %3627 = vmatpush1.bf16.msra.mxu0 %v3424
    %3628 = vmatprep.subr.bf16.mxu0 %v3433
    %3629 = vmatpush1.bf16.msra.mxu0 %v3432
    %3630 = vmatprep.subr.bf16.mxu0 %v3441
    %3631 = vmatpush1.bf16.msra.mxu0 %v3440
    %3632 = vmatprep.subr.bf16.mxu0 %v3449
    %3633 = vmatpush1.bf16.msra.mxu0 %v3448
    %3634 = vmatprep.subr.bf16.mxu0 %v3457
    %3635 = vmatpush1.bf16.msra.mxu0 %v3456
    %3636 = vmatprep.subr.bf16.mxu0 %v3465
    %3637 = vmatpush1.bf16.msra.mxu0 %v3464
    %3638 = vmatprep.subr.bf16.mxu0 %v3473
    %3639 = vmatpush1.bf16.msra.mxu0 %v3472
    %3640 = vmatprep.mubr.bf16.mxu0 %v1815
    %3641 = vmatmul.mubr.bf16.gmra.mrb[0].mxu0 %v1814
    %v3642 = vpop.f32.mrb[0].mxu0
    %v3643 = vadd.f32 %v2931, %v3642
    %v3644 = vpop.f32.mrb[0].mxu0
    %v3645 = vadd.f32 %v2935, %v3644
    %v3646 = vpop.f32.mrb[0].mxu0
    %v3647 = vadd.f32 %v2931, %v3646
    %v3648 = vpop.f32.mrb[0].mxu0
    %v3649 = vadd.f32 %v2935, %v3648
    %3650 = vdwg.mxu0
    %3651 = vmatprep.subr.bf16.mxu0 %v3355
    %3652 = vmatpush1.bf16.msra.mxu0 %v3354
    %3653 = vmatprep.subr.bf16.mxu0 %v3363
    %3654 = vmatpush1.bf16.msra.mxu0 %v3362
    %3655 = vmatprep.subr.bf16.mxu0 %v3371
    %3656 = vmatpush1.bf16.msra.mxu0 %v3370
    %3657 = vmatprep.subr.bf16.mxu0 %v3379
    %3658 = vmatpush1.bf16.msra.mxu0 %v3378
    %3659 = vmatprep.subr.bf16.mxu0 %v3387
    %3660 = vmatpush1.bf16.msra.mxu0 %v3386
    %3661 = vmatprep.subr.bf16.mxu0 %v3395
    %3662 = vmatpush1.bf16.msra.mxu0 %v3394
    %3663 = vmatprep.subr.bf16.mxu0 %v3403
    %3664 = vmatpush1.bf16.msra.mxu0 %v3402
    %3665 = vmatprep.subr.bf16.mxu0 %v3411
    %3666 = vmatpush1.bf16.msra.mxu0 %v3410
    %3667 = vmatprep.subr.bf16.mxu0 %v3419
    %3668 = vmatpush1.bf16.msra.mxu0 %v3418
    %3669 = vmatprep.subr.bf16.mxu0 %v3427
    %3670 = vmatpush1.bf16.msra.mxu0 %v3426
    %3671 = vmatprep.subr.bf16.mxu0 %v3435
    %3672 = vmatpush1.bf16.msra.mxu0 %v3434
    %3673 = vmatprep.subr.bf16.mxu0 %v3443
    %3674 = vmatpush1.bf16.msra.mxu0 %v3442
    %3675 = vmatprep.subr.bf16.mxu0 %v3451
    %3676 = vmatpush1.bf16.msra.mxu0 %v3450
    %3677 = vmatprep.subr.bf16.mxu0 %v3459
    %3678 = vmatpush1.bf16.msra.mxu0 %v3458
    %3679 = vmatprep.subr.bf16.mxu0 %v3467
    %3680 = vmatpush1.bf16.msra.mxu0 %v3466
    %3681 = vmatprep.subr.bf16.mxu0 %v3475
    %3682 = vmatpush1.bf16.msra.mxu0 %v3474
    %3683 = vmatprep.mubr.bf16.mxu0 %v1815
    %3684 = vmatmul.mubr.bf16.gmra.mrb[0].mxu0 %v1814
    %v3685 = vpop.f32.mrb[0].mxu0
    %v3686 = vadd.f32 %v2939, %v3685
    %v3687 = vpop.f32.mrb[0].mxu0
    %v3688 = vadd.f32 %v2943, %v3687
    %v3689 = vpop.f32.mrb[0].mxu0
    %v3690 = vadd.f32 %v2939, %v3689
    %v3691 = vpop.f32.mrb[0].mxu0
    %v3692 = vadd.f32 %v2943, %v3691
    %3693 = vdwg.mxu0
    %3694 = vmatprep.subr.bf16.mxu0 %v3357
    %3695 = vmatpush1.bf16.msra.mxu0 %v3356
    %3696 = vmatprep.subr.bf16.mxu0 %v3365
    %3697 = vmatpush1.bf16.msra.mxu0 %v3364
    %3698 = vmatprep.subr.bf16.mxu0 %v3373
    %3699 = vmatpush1.bf16.msra.mxu0 %v3372
    %3700 = vmatprep.subr.bf16.mxu0 %v3381
    %3701 = vmatpush1.bf16.msra.mxu0 %v3380
    %3702 = vmatprep.subr.bf16.mxu0 %v3389
    %3703 = vmatpush1.bf16.msra.mxu0 %v3388
    %3704 = vmatprep.subr.bf16.mxu0 %v3397
    %3705 = vmatpush1.bf16.msra.mxu0 %v3396
    %3706 = vmatprep.subr.bf16.mxu0 %v3405
    %3707 = vmatpush1.bf16.msra.mxu0 %v3404
    %3708 = vmatprep.subr.bf16.mxu0 %v3413
    %3709 = vmatpush1.bf16.msra.mxu0 %v3412
    %3710 = vmatprep.subr.bf16.mxu0 %v3421
    %3711 = vmatpush1.bf16.msra.mxu0 %v3420
    %3712 = vmatprep.subr.bf16.mxu0 %v3429
    %3713 = vmatpush1.bf16.msra.mxu0 %v3428
    %3714 = vmatprep.subr.bf16.mxu0 %v3437
    %3715 = vmatpush1.bf16.msra.mxu0 %v3436
    %3716 = vmatprep.subr.bf16.mxu0 %v3445
    %3717 = vmatpush1.bf16.msra.mxu0 %v3444
    %3718 = vmatprep.subr.bf16.mxu0 %v3453
    %3719 = vmatpush1.bf16.msra.mxu0 %v3452
    %3720 = vmatprep.subr.bf16.mxu0 %v3461
    %3721 = vmatpush1.bf16.msra.mxu0 %v3460
    %3722 = vmatprep.subr.bf16.mxu0 %v3469
    %3723 = vmatpush1.bf16.msra.mxu0 %v3468
    %3724 = vmatprep.subr.bf16.mxu0 %v3477
    %3725 = vmatpush1.bf16.msra.mxu0 %v3476
    %3726 = vmatprep.mubr.bf16.mxu0 %v1815
    %3727 = vmatmul.mubr.bf16.gmra.mrb[0].mxu0 %v1814
    %v3728 = vpop.f32.mrb[0].mxu0
    %v3729 = vadd.f32 %v2947, %v3728
    %v3730 = vpop.f32.mrb[0].mxu0
    %v3731 = vadd.f32 %v2951, %v3730
    %v3732 = vpop.f32.mrb[0].mxu0
    %v3733 = vadd.f32 %v2947, %v3732
    %v3734 = vpop.f32.mrb[0].mxu0
    %v3735 = vadd.f32 %v2951, %v3734
    %3736 = vdwg.mxu0
    %3737 = vmatprep.subr.bf16.mxu0 %v3359
    %3738 = vmatpush1.bf16.msra.mxu0 %v3358
    %3739 = vmatprep.subr.bf16.mxu0 %v3367
    %3740 = vmatpush1.bf16.msra.mxu0 %v3366
    %3741 = vmatprep.subr.bf16.mxu0 %v3375
    %3742 = vmatpush1.bf16.msra.mxu0 %v3374
    %3743 = vmatprep.subr.bf16.mxu0 %v3383
    %3744 = vmatpush1.bf16.msra.mxu0 %v3382
    %3745 = vmatprep.subr.bf16.mxu0 %v3391
    %3746 = vmatpush1.bf16.msra.mxu0 %v3390
    %3747 = vmatprep.subr.bf16.mxu0 %v3399
    %3748 = vmatpush1.bf16.msra.mxu0 %v3398
    %3749 = vmatprep.subr.bf16.mxu0 %v3407
    %3750 = vmatpush1.bf16.msra.mxu0 %v3406
    %3751 = vmatprep.subr.bf16.mxu0 %v3415
    %3752 = vmatpush1.bf16.msra.mxu0 %v3414
    %3753 = vmatprep.subr.bf16.mxu0 %v3423
    %3754 = vmatpush1.bf16.msra.mxu0 %v3422
    %3755 = vmatprep.subr.bf16.mxu0 %v3431
    %3756 = vmatpush1.bf16.msra.mxu0 %v3430
    %3757 = vmatprep.subr.bf16.mxu0 %v3439
    %3758 = vmatpush1.bf16.msra.mxu0 %v3438
    %3759 = vmatprep.subr.bf16.mxu0 %v3447
    %3760 = vmatpush1.bf16.msra.mxu0 %v3446
    %3761 = vmatprep.subr.bf16.mxu0 %v3455
    %3762 = vmatpush1.bf16.msra.mxu0 %v3454
    %3763 = vmatprep.subr.bf16.mxu0 %v3463
    %3764 = vmatpush1.bf16.msra.mxu0 %v3462
    %3765 = vmatprep.subr.bf16.mxu0 %v3471
    %3766 = vmatpush1.bf16.msra.mxu0 %v3470
    %3767 = vmatprep.subr.bf16.mxu0 %v3479
    %3768 = vmatpush1.bf16.msra.mxu0 %v3478
    %3769 = vmatprep.mubr.bf16.mxu0 %v1815
    %3770 = vmatmul.mubr.bf16.gmra.mrb[0].mxu0 %v1814
    %v3771 = vpop.f32.mrb[0].mxu0
    %v3772 = vadd.f32 %v2955, %v3771
    %v3773 = vpop.f32.mrb[0].mxu0
    %v3774 = vadd.f32 %v2959, %v3773
    %v3775 = vpop.f32.mrb[0].mxu0
    %v3776 = vadd.f32 %v2955, %v3775
    %v3777 = vpop.f32.mrb[0].mxu0
    %v3778 = vadd.f32 %v2959, %v3777
    %3779 = vdwg.mxu0
    %3782 = vrot.lane.b32.xlu0 %v1573, 32
    %v3783 = vpop.permute.xlu0 %3782
    %3784 = vrot.lane.b32.xlu0 %v1576, 32
    %v3785 = vpop.permute.xlu0 %3784
    %3790 = vrot.lane.b32.xlu0 %v1580, 64
    %v3791 = vpop.permute.xlu0 %3790
    %3792 = vrot.lane.b32.xlu0 %v1582, 64
    %v3793 = vpop.permute.xlu0 %3792
    %3798 = vrot.lane.b32.xlu0 %v1585, 96
    %v3799 = vpop.permute.xlu0 %3798
    %3800 = vrot.lane.b32.xlu0 %v1586, 96
    %v3801 = vpop.permute.xlu0 %3800
    %v3804 = vsel %vm1611, %v1461, %v3783
    %v3805 = vsel %vm1611, %v1464, %v3785
    %vm3806 = vcmask 523264
    %v3807 = vsel %vm3806, %v3804, %v3791
    %v3808 = vsel %vm3806, %v3805, %v3793
    %vm3809 = vcmask 785408
    %v3810 = vsel %vm3809, %v3807, %v3799
    %v3811 = vsel %vm3809, %v3808, %v3801
    %3812 = vst [vmem:[#allocation16] sm:$0xff] %v3810
    %3813 = vst [vmem:[#allocation16 + $0x8] sm:$0xff] %v3811
    %3814 = vst [vmem:[#allocation17] sm:$0xff] %v2661
    %3815 = vst [vmem:[#allocation17 + $0x8] sm:$0xff] %v2663
    %3816 = vst [vmem:[#allocation17 + $0x10] sm:$0xff] %v2704
    %3817 = vst [vmem:[#allocation17 + $0x18] sm:$0xff] %v2706
    %3818 = vst [vmem:[#allocation17 + $0x20] sm:$0xff] %v2747
    %3819 = vst [vmem:[#allocation17 + $0x28] sm:$0xff] %v2749
    %3820 = vst [vmem:[#allocation17 + $0x30] sm:$0xff] %v2790
    %3821 = vst [vmem:[#allocation17 + $0x38] sm:$0xff] %v2792
    %3822 = vst [vmem:[#allocation17 + $0x40] sm:$0xff] %v2665
    %3823 = vst [vmem:[#allocation17 + $0x48] sm:$0xff] %v2667
    %3824 = vst [vmem:[#allocation17 + $0x50] sm:$0xff] %v2708
    %3825 = vst [vmem:[#allocation17 + $0x58] sm:$0xff] %v2710
    %3826 = vst [vmem:[#allocation17 + $0x60] sm:$0xff] %v2751
    %3827 = vst [vmem:[#allocation17 + $0x68] sm:$0xff] %v2753
    %3828 = vst [vmem:[#allocation17 + $0x70] sm:$0xff] %v2794
    %3829 = vst [vmem:[#allocation17 + $0x78] sm:$0xff] %v2796
    %v3830 = vmul.f32 %v3643, 1.442695
    %v3831 = vpow.pop %v3830
    %v3832 = vmul.f32 %v3645, 1.442695
    %v3833 = vpow.pop %v3832
    %v3834 = vmul.f32 %v3686, 1.442695
    %v3835 = vpow.pop %v3834
    %v3836 = vmul.f32 %v3688, 1.442695
    %v3837 = vpow.pop %v3836
    %v3838 = vmul.f32 %v3729, 1.442695
    %v3839 = vpow.pop %v3838
    %v3840 = vmul.f32 %v3731, 1.442695
    %v3841 = vpow.pop %v3840
    %v3842 = vmul.f32 %v3772, 1.442695
    %v3843 = vpow.pop %v3842
    %v3844 = vmul.f32 %v3774, 1.442695
    %v3845 = vpow.pop %v3844
    %v3846 = vmul.f32 %v3647, 1.442695
    %v3847 = vpow.pop %v3846
    %v3848 = vmul.f32 %v3649, 1.442695
    %v3849 = vpow.pop %v3848
    %v3850 = vmul.f32 %v3690, 1.442695
    %v3851 = vpow.pop %v3850
    %v3852 = vmul.f32 %v3692, 1.442695
    %v3853 = vpow.pop %v3852
    %v3854 = vmul.f32 %v3733, 1.442695
    %v3855 = vpow.pop %v3854
    %v3856 = vmul.f32 %v3735, 1.442695
    %v3857 = vpow.pop %v3856
    %v3858 = vmul.f32 %v3776, 1.442695
    %v3859 = vpow.pop %v3858
    %v3860 = vmul.f32 %v3778, 1.442695
    %v3861 = vpow.pop %v3860
    %3862 = vst [vmem:[#allocation19] sm:$0xff] %v3831
    %3863 = vst [vmem:[#allocation19 + $0x8] sm:$0xff] %v3833
    %3864 = vst [vmem:[#allocation19 + $0x10] sm:$0xff] %v3835
    %3865 = vst [vmem:[#allocation19 + $0x18] sm:$0xff] %v3837
    %3866 = vst [vmem:[#allocation19 + $0x20] sm:$0xff] %v3839
    %3867 = vst [vmem:[#allocation19 + $0x28] sm:$0xff] %v3841
    %3868 = vst [vmem:[#allocation19 + $0x30] sm:$0xff] %v3843
    %3869 = vst [vmem:[#allocation19 + $0x38] sm:$0xff] %v3845
    %3870 = vst [vmem:[#allocation19 + $0x40] sm:$0xff] %v3847
    %3871 = vst [vmem:[#allocation19 + $0x48] sm:$0xff] %v3849
    %3872 = vst [vmem:[#allocation19 + $0x50] sm:$0xff] %v3851
    %3873 = vst [vmem:[#allocation19 + $0x58] sm:$0xff] %v3853
    %3874 = vst [vmem:[#allocation19 + $0x60] sm:$0xff] %v3855
    %3875 = vst [vmem:[#allocation19 + $0x68] sm:$0xff] %v3857
    %3876 = vst [vmem:[#allocation19 + $0x70] sm:$0xff] %v3859
    %3877 = vst [vmem:[#allocation19 + $0x78] sm:$0xff] %v3861
    // Predicated region
    $region106: #{tpu_custom_call.1} parent=1 // pred_check
      _
    $region107: #{tpu_custom_call.1} parent=1 // pred_check_branch
      %3879 = sbr.rel (0) target = $region109
    $region108: #{tpu_custom_call.1} parent=1 // pred_region
      %s3881 = ssub.s32 256, 256
      %3882 = vsyncadd [#allocation4], %s3881
      %s3883 = sshll.u32 [#allocation16], 4
      %s3884 = int_to_ptr.vmem [resolvable:$true] %s3883
      %3889 = dma.vmem_to_hbm [thread:$0]  %s3884, 256, %s18, [#allocation4], 128, 128, 8
    $region109: #{tpu_custom_call.1} parent=1 // pred_fallthru
      _
    // Predicated region
    $region110: #{tpu_custom_call.1} parent=1 // pred_check
      _
    $region111: #{tpu_custom_call.1} parent=1 // pred_check_branch
      %3891 = sbr.rel (0) target = $region113
    $region112: #{tpu_custom_call.1} parent=1 // pred_region
      %s3893 = ssub.s32 2048, 2048
      %3894 = vsyncadd [#allocation18], %s3893
      %s3895 = sshll.u32 [#allocation17], 4
      %s3896 = int_to_ptr.vmem [resolvable:$true] %s3895
      %3901 = dma.vmem_to_hbm [thread:$0]  %s3896, 2048, %s19, [#allocation18], 1024, 1024, 64
    $region113: #{tpu_custom_call.1} parent=1 // pred_fallthru
      _
    // Predicated region
    $region114: #{tpu_custom_call.1} parent=1 // pred_check
      _
    $region115: #{tpu_custom_call.1} parent=1 // pred_check_branch
      %3903 = sbr.rel (0) target = $region117
    $region116: #{tpu_custom_call.1} parent=1 // pred_region
      %s3905 = ssub.s32 2048, 2048
      %3906 = vsyncadd [#allocation18], %s3905
      %s3907 = sshll.u32 [#allocation19], 4
      %s3908 = int_to_ptr.vmem [resolvable:$true] %s3907
      %3913 = dma.vmem_to_hbm [thread:$0]  %s3908, 2048, %s20, [#allocation18], 1024, 1024, 64
    $region117: #{tpu_custom_call.1} parent=1 // pred_fallthru
      _
    // Predicated region
    $region118: #{tpu_custom_call.1} parent=1 // pred_check
      _
    $region119: #{tpu_custom_call.1} parent=1 // pred_check_branch
      %3915 = sbr.rel (0) target = $region121
    $region120: #{tpu_custom_call.1} parent=1 // pred_region
      %3916 = dma.done [#allocation4], 256
    $region121: #{tpu_custom_call.1} parent=1 // pred_fallthru
      _
    // Predicated region
    $region122: #{tpu_custom_call.1} parent=1 // pred_check
      _
    $region123: #{tpu_custom_call.1} parent=1 // pred_check_branch
      %3918 = sbr.rel (0) target = $region125
    $region124: #{tpu_custom_call.1} parent=1 // pred_region
      %3919 = dma.done [#allocation18], 2048
    $region125: #{tpu_custom_call.1} parent=1 // pred_fallthru
      _
    // Predicated region
    $region126: #{tpu_custom_call.1} parent=1 // pred_check
      _
    $region127: #{tpu_custom_call.1} parent=1 // pred_check_branch
      %3921 = sbr.rel (0) target = $region129
    $region128: #{tpu_custom_call.1} parent=1 // pred_region
      %3922 = dma.done [#allocation18], 2048
    $region129: #{tpu_custom_call.1} parent=1 // pred_fallthru
      _
    %3923 = vsyncpa [#allocation3], 1
    %3924 = vsyncpa [#allocation6], 1
    %3925 = vsyncpa [#allocation9], 1
    %3926 = vsyncpa [#allocation12], 1
    %3927 = vsyncpa [#allocation15], 1
    %3928 = vsyncpa [#allocation4], 1
    %3929 = vsyncpa [#allocation18], 1

</llo_original>
